<compile_context>
chip_gen: v5e
topology: v5e:2x2
jax: 0.10.0
libtpu: 0.0.40
codegen_flags: <defaults>
</compile_context>

<pallas_src>
import functools

import jax
import jax.numpy as jnp
from jax.experimental import pallas as pl
from jax.experimental.pallas import tpu as pltpu

P = 128                               # lane width; feature dims padded to this
_RESIDENT_A_BYTES = 20 * 1024 * 1024  # budget for A incl. 2 pipeline buffers


def _round_up(v, m):
    return (v + m - 1) // m * m


def _gcn_stack_kernel(a_ref, x_ref, w_ref, b_ref, out_ref,
                      acc_ref, z_ref, src_ref, *, tm, tk, resident_a):
    """Grid step (l, i, k): accumulate A[i, k] @ Z_l[k] into layer-l row tile i.

    a_ref  : (tm, tk) bf16 streamed A tile, or (N_pad, N_pad) bf16 if resident
    x_ref  : (tk, P)  bf16 input-feature rows [k*tk, (k+1)*tk) (layer 0 only)
    w_ref  : (P, P)   bf16 layer-l weight (padded)
    b_ref  : (1, P)   f32  layer-l bias (padded)
    out_ref: (tm, P)  f32  layer-l output row tile (column slab l*P)
    acc_ref: (tm, P)  f32  k-reduction accumulator            (VMEM scratch)
    z_ref  : (N_pad,P) bf16 Z_l = X_l @ W_l, built per k slice (VMEM scratch)
    src_ref: (N_pad,P) bf16 relu(H_{l-1}), written by layer l-1 (VMEM scratch)
    """
    l = pl.program_id(0)
    i = pl.program_id(1)
    k = pl.program_id(2)
    nk = pl.num_programs(2)

    i0 = pl.multiple_of(i * tm, tm)
    k0 = pl.multiple_of(k * tk, tk)

    # --- distributed Z prologue (row-tile 0 only): Z rows [k0, k0+tk) --------
    # bf16 x bf16 MXU matmul, overlapped with the A-tile DMA stream over k.
    @pl.when((i == 0) & (l == 0))
    def _():
        z = jnp.dot(x_ref[...], w_ref[...], preferred_element_type=jnp.float32)
        z_ref[pl.ds(k0, tk), :] = z.astype(z_ref.dtype)

    @pl.when((i == 0) & (l > 0))
    def _():
        z = jnp.dot(src_ref[pl.ds(k0, tk), :], w_ref[...],
                    preferred_element_type=jnp.float32)
        z_ref[pl.ds(k0, tk), :] = z.astype(z_ref.dtype)

    # --- k-axis accumulation in f32 ------------------------------------------
    @pl.when(k == 0)
    def _():
        acc_ref[...] = jnp.zeros_like(acc_ref)

    if resident_a:                       # A lives in VMEM; slice rows in place
        a_tile = a_ref[pl.ds(i0, tm), :]
    else:                                # A streamed (tm, tk) tile for (i, k)
        a_tile = a_ref[...]
    acc_ref[...] += jnp.dot(a_tile, z_ref[pl.ds(k0, tk), :],
                            preferred_element_type=jnp.float32)

    # --- finalize row tile: bias, emit H_l, stash relu(H_l) for layer l+1 ----
    @pl.when(k == nk - 1)
    def _():
        h = acc_ref[...] + b_ref[...]
        out_ref[...] = h
        # NOTE: padded rows (>= N) also pick up the bias; harmless because the
        # padded *columns* of A are zero, so they never feed the next layer.
        src_ref[pl.ds(i0, tm), :] = jnp.maximum(h, 0.0).astype(src_ref.dtype)
    # F.dropout(p, training=False) is the identity in eval mode -> omitted.


def autolink_l3_forward(x, adj_norm, params, *, tile=512, force_streamed=False):
    """x: [N, C] f32, adj_norm: [N, N] f32 (= D^-1/2 (A+I) D^-1/2),
    params: list of (W [C_l, H], b [1, H]) per GCNConv layer.
    Returns the stack of per-layer (pre-relu) outputs, [N, L, H]."""
    N, C = x.shape
    L = len(params)
    H = params[0][0].shape[1]
    assert C <= P and H <= P, "kernel pads feature dims up to 128 lanes"

    TM = tile
    N_pad = _round_up(N, tile)

    resident_a = (not force_streamed) and (2 * N_pad * N_pad * 2 <= _RESIDENT_A_BYTES)
    TK = N_pad if resident_a else tile       # resident path: single k step

    # Lane-pad parameters / features; quantize matmul operands to bf16.
    w_stack = jnp.zeros((L, P, P), jnp.bfloat16)
    b_stack = jnp.zeros((L, 1, P), jnp.float32)
    for li, (w, b) in enumerate(params):
        w_stack = w_stack.at[li, :w.shape[0], :w.shape[1]].set(w.astype(jnp.bfloat16))
        b_stack = b_stack.at[li, 0, :b.shape[-1]].set(b.reshape(-1).astype(jnp.float32))
    x_pad = jnp.zeros((N_pad, P), jnp.bfloat16).at[:N, :C].set(x.astype(jnp.bfloat16))
    # Cast to bf16 *before* padding: never materializes an f32 N_pad^2 array.
    a_pad = jnp.zeros((N_pad, N_pad), jnp.bfloat16).at[:N, :N].set(
        adj_norm.astype(jnp.bfloat16))

    grid = (L, N_pad // TM, N_pad // TK)

    if resident_a:
        a_spec = pl.BlockSpec((N_pad, N_pad), lambda l, i, k: (0, 0))
    else:
        a_spec = pl.BlockSpec((TM, TK), lambda l, i, k: (i, k))

    # x is only consumed at (l == 0, i == 0); pin its block index otherwise so
    # it is not re-streamed during the other (l, i) iterations.
    x_spec = pl.BlockSpec(
        (TK, P), lambda l, i, k: (jnp.where((l == 0) & (i == 0), k, 0), 0))

    kernel = functools.partial(_gcn_stack_kernel,
                               tm=TM, tk=TK, resident_a=resident_a)

    flops = 2 * L * (N_pad * N_pad * P + N_pad * P * P)
    a_stream = N_pad * N_pad * 2 * (1 if resident_a else L)
    bytes_accessed = (a_stream + N_pad * P * 2            # A + x
                      + L * (P * P * 2 + P * 4)           # W, b
                      + L * N_pad * P * 4)                # output slab

    out = pl.pallas_call(
        kernel,
        out_shape=jax.ShapeDtypeStruct((N_pad, L * P), jnp.float32),
        grid_spec=pltpu.PrefetchScalarGridSpec(
            num_scalar_prefetch=0,
            grid=grid,
            in_specs=[
                a_spec,                                                 # A_norm
                x_spec,                                                 # x rows
                pl.BlockSpec((None, P, P), lambda l, i, k: (l, 0, 0)),  # W_l
                pl.BlockSpec((None, 1, P), lambda l, i, k: (l, 0, 0)),  # b_l
            ],
            out_specs=pl.BlockSpec((TM, P), lambda l, i, k: (i, l)),
            scratch_shapes=[
                pltpu.VMEM((TM, P), jnp.float32),        # acc
                pltpu.VMEM((N_pad, P), jnp.bfloat16),    # Z_l
                pltpu.VMEM((N_pad, P), jnp.bfloat16),    # relu(H_{l-1})
            ],
        ),
        compiler_params=pltpu.CompilerParams(
            # Layer chaining flows through per-core VMEM scratch, so neither
            # the layer nor the row-tile axis can be megacore-"parallel" in
            # this fused single-call form (see TODO above for v7x).
            dimension_semantics=("arbitrary", "arbitrary", "arbitrary"),
            vmem_limit_bytes=32 * 1024 * 1024,
        ),
        cost_estimate=pl.CostEstimate(flops=flops, transcendentals=0,
                                      bytes_accessed=bytes_accessed),
    )(a_pad, x_pad, w_stack, b_stack)

    # [N_pad, L*P] -> [N, L, H]: free row-major reshape + slice, no transpose.
    return out.reshape(N_pad, L, P)[:N, :, :H]


# ---------------------------- references ------------------------------------
def reference_f32(x, a, params):
    """Pure-JAX f32 reference mirroring the PyTorch eval-mode forward."""
    hs = []
    h = x
    for li, (w, b) in enumerate(params):
        h = a @ (h @ w) + b
        hs.append(h)
        if li != len(params) - 1:
            h = jnp.maximum(h, 0.0)
    return jnp.stack(hs, axis=1)


def reference_quantized(x, a, params):
    """Reference with the same bf16 quantization of A / X / W / Z as the kernel."""
    aq = a.astype(jnp.bfloat16)
    src = x.astype(jnp.bfloat16)
    hs = []
    for (w, b) in params:
        z = jnp.dot(src, w.astype(jnp.bfloat16),
                    preferred_element_type=jnp.float32).astype(jnp.bfloat16)
        h = jnp.dot(aq, z, preferred_element_type=jnp.float32) + b
        hs.append(h)
        src = jnp.maximum(h, 0.0).astype(jnp.bfloat16)
    return jnp.stack(hs, axis=1)


if __name__ == "__main__":
    # N chosen non-multiple-of-tile to exercise the row/col padding path.
    N, C_IN, HID, L = 500, 16, 32, 3

    key = jax.random.PRNGKey(0)
    k_x, k_adj, *k_w = jax.random.split(key, 2 + 2 * L)

    # Node features.
    x = jax.random.normal(k_x, (N, C_IN), dtype=jnp.float32)

    # Random symmetric adjacency + self-loops, GCN symmetric normalization.
    a_rand = jax.random.uniform(k_adj, (N, N)) < 0.02
    a = jnp.logical_or(a_rand, a_rand.T).astype(jnp.float32)
    a = a * (1.0 - jnp.eye(N)) + jnp.eye(N)                      # A + I
    deg = jnp.sum(a, axis=1)
    d_inv_sqrt = 1.0 / jnp.sqrt(deg)
    adj_norm = (a * d_inv_sqrt[:, None]) * d_inv_sqrt[None, :]   # D^-1/2(A+I)D^-1/2

    # Deterministic glorot-uniform-ish layer parameters.
    params = []
    dims = [(C_IN, HID), (HID, HID), (HID, HID)]
    for li, (fan_in, fan_out) in enumerate(dims):
        bound = (6.0 / (fan_in + fan_out)) ** 0.5
        w = jax.random.uniform(k_w[2 * li], (fan_in, fan_out),
                               minval=-bound, maxval=bound, dtype=jnp.float32)
        b = jax.random.uniform(k_w[2 * li + 1], (1, fan_out),
                               minval=-0.1, maxval=0.1, dtype=jnp.float32)
        params.append((w, b))

    ref32 = reference_f32(x, adj_norm, params)          # exact module semantics
    refq = reference_quantized(x, adj_norm, params)     # same quantization as kernel

    # Default path: resident A (fits VMEM at this size), tile=512, grid (3,1,1).
    out_res = jax.block_until_ready(autolink_l3_forward(x, adj_norm, params))
    # Streamed path with a multi-tile grid (3,2,2): exercises the k-distributed
    # Z prologue, multi-row-tile accumulation and cross-layer scratch chaining.
    out_str = jax.block_until_ready(
        autolink_l3_forward(x, adj_norm, params, tile=256, force_streamed=True))

    for out in (out_res, out_str):
        assert out.shape == (N, L, HID), out.shape
        assert bool(jnp.allclose(out, refq, atol=2e-2, rtol=2e-2))
        assert bool(jnp.allclose(out, ref32, atol=8e-2, rtol=8e-2))

    print("KERNEL_OK")
</pallas_src>

<mosaic_0001>
module attributes {stable_mosaic.version = 11 : i64} {
  func.func @_gcn_stack_kernel(%arg0: i32, %arg1: i32, %arg2: i32, %arg3: memref<512x512xbf16, #tpu.memory_space<vmem>>, %arg4: memref<512x128xbf16, #tpu.memory_space<vmem>>, %arg5: memref<1x128x128xbf16, #tpu.memory_space<vmem>>, %arg6: memref<1x1x128xf32, #tpu.memory_space<vmem>>, %arg7: memref<512x128xf32, #tpu.memory_space<vmem>>, %arg8: memref<512x128xf32, #tpu.memory_space<vmem>>, %arg9: memref<512x128xbf16, #tpu.memory_space<vmem>>, %arg10: memref<512x128xbf16, #tpu.memory_space<vmem>>) attributes {dimension_semantics = [#tpu.dimension_semantics<arbitrary>, #tpu.dimension_semantics<arbitrary>, #tpu.dimension_semantics<arbitrary>], iteration_bounds = array<i64: 3, 1, 1>, scalar_prefetch = 0 : i64, scratch_operands = 3 : i64, tpu.core_type = #tpu.core_type<tc>, window_params = [{pipeline_mode = #tpu.pipeline_mode<synchronous>, transform_indices = @transform_0, window_bounds = array<i64: 512, 512>}, {transform_indices = @transform_1, window_bounds = array<i64: 512, 128>}, {transform_indices = @transform_2, window_bounds = array<i64: 1, 128, 128>}, {transform_indices = @transform_3, window_bounds = array<i64: 1, 1, 128>}, {transform_indices = @transform_4, window_bounds = array<i64: 512, 128>}]} {
    %c512_i32 = arith.constant 512 : i32
    %0 = arith.muli %arg1, %c512_i32 : i32
    %1 = tpu.assume_multiple %0, 512 : i32
    %c512_i32_0 = arith.constant 512 : i32
    %2 = arith.muli %arg2, %c512_i32_0 : i32
    %3 = tpu.assume_multiple %2, 512 : i32
    %c0_i32 = arith.constant 0 : i32
    %4 = arith.cmpi eq, %arg1, %c0_i32 : i32
    %c0_i32_1 = arith.constant 0 : i32
    %5 = arith.cmpi eq, %arg0, %c0_i32_1 : i32
    %6 = arith.andi %4, %5 : i1
    %7 = arith.extui %6 : i1 to i32
    %c0_i32_2 = arith.constant 0 : i32
    %8 = arith.cmpi ne, %7, %c0_i32_2 : i32
    scf.if %8 {
      %c0_15 = arith.constant 0 : index
      %c0_16 = arith.constant 0 : index
      %28 = vector.load %arg4[%c0_15, %c0_16] : memref<512x128xbf16, #tpu.memory_space<vmem>>, vector<512x128xbf16>
      %c0_17 = arith.constant 0 : index
      %c0_18 = arith.constant 0 : index
      %c0_19 = arith.constant 0 : index
      %29 = vector.load %arg5[%c0_17, %c0_18, %c0_19] : memref<1x128x128xbf16, #tpu.memory_space<vmem>>, vector<1x128x128xbf16>
      %30 = vector.shape_cast %29 : vector<1x128x128xbf16> to vector<128x128xbf16>
      %cst_20 = arith.constant dense<0.000000e+00> : vector<512x128xf32>
      %31 = tpu.matmul %28, %30, %cst_20 {dimension_numbers = #tpu.dot_dimension_numbers<[1], [0], [0], [1], [0, 0, 1, 1], [], []>} : vector<512x128xbf16>, vector<128x128xbf16>, vector<512x128xf32> -> vector<512x128xf32>
      %32 = arith.truncf %31 : vector<512x128xf32> to vector<512x128xbf16>
      %33 = arith.index_cast %3 : i32 to index
      %c0_21 = arith.constant 0 : index
      %34 = vector.load %arg9[%33, %c0_21] : memref<512x128xbf16, #tpu.memory_space<vmem>>, vector<512x128xbf16>
      tpu.vector_store %arg9[%33, %c0_21], %32 {strides = array<i32>} : memref<512x128xbf16, #tpu.memory_space<vmem>>, vector<512x128xbf16>,
    } else {
    }
    %c0_i32_3 = arith.constant 0 : i32
    %9 = arith.cmpi eq, %arg1, %c0_i32_3 : i32
    %c0_i32_4 = arith.constant 0 : i32
    %10 = arith.cmpi sgt, %arg0, %c0_i32_4 : i32
    %11 = arith.andi %9, %10 : i1
    %12 = arith.extui %11 : i1 to i32
    %c0_i32_5 = arith.constant 0 : i32
    %13 = arith.cmpi ne, %12, %c0_i32_5 : i32
    scf.if %13 {
      %28 = arith.index_cast %3 : i32 to index
      %c0_15 = arith.constant 0 : index
      %29 = vector.load %arg10[%28, %c0_15] : memref<512x128xbf16, #tpu.memory_space<vmem>>, vector<512x128xbf16>
      %c0_16 = arith.constant 0 : index
      %c0_17 = arith.constant 0 : index
      %c0_18 = arith.constant 0 : index
      %30 = vector.load %arg5[%c0_16, %c0_17, %c0_18] : memref<1x128x128xbf16, #tpu.memory_space<vmem>>, vector<1x128x128xbf16>
      %31 = vector.shape_cast %30 : vector<1x128x128xbf16> to vector<128x128xbf16>
      %cst_19 = arith.constant dense<0.000000e+00> : vector<512x128xf32>
      %32 = tpu.matmul %29, %31, %cst_19 {dimension_numbers = #tpu.dot_dimension_numbers<[1], [0], [0], [1], [0, 0, 1, 1], [], []>} : vector<512x128xbf16>, vector<128x128xbf16>, vector<512x128xf32> -> vector<512x128xf32>
      %33 = arith.truncf %32 : vector<512x128xf32> to vector<512x128xbf16>
      %34 = arith.index_cast %3 : i32 to index
      %c0_20 = arith.constant 0 : index
      %35 = vector.load %arg9[%34, %c0_20] : memref<512x128xbf16, #tpu.memory_space<vmem>>, vector<512x128xbf16>
      tpu.vector_store %arg9[%34, %c0_20], %33 {strides = array<i32>} : memref<512x128xbf16, #tpu.memory_space<vmem>>, vector<512x128xbf16>,
    } else {
    }
    %c0_i32_6 = arith.constant 0 : i32
    %14 = arith.cmpi eq, %arg2, %c0_i32_6 : i32
    %15 = arith.extui %14 : i1 to i32
    %c0_i32_7 = arith.constant 0 : i32
    %16 = arith.cmpi ne, %15, %c0_i32_7 : i32
    scf.if %16 {
      %cst_15 = arith.constant 0.000000e+00 : f32
      %28 = vector.broadcast %cst_15 : f32 to vector<512x128xf32>
      %c0_16 = arith.constant 0 : index
      %c0_17 = arith.constant 0 : index
      %29 = vector.load %arg8[%c0_16, %c0_17] : memref<512x128xf32, #tpu.memory_space<vmem>>, vector<512x128xf32>
      tpu.vector_store %arg8[%c0_16, %c0_17], %28 {strides = array<i32>} : memref<512x128xf32, #tpu.memory_space<vmem>>, vector<512x128xf32>,
    } else {
    }
    %17 = arith.index_cast %1 : i32 to index
    %c0 = arith.constant 0 : index
    %18 = vector.load %arg3[%17, %c0] : memref<512x512xbf16, #tpu.memory_space<vmem>>, vector<512x512xbf16>
    %c0_8 = arith.constant 0 : index
    %c0_9 = arith.constant 0 : index
    %19 = vector.load %arg8[%c0_8, %c0_9] : memref<512x128xf32, #tpu.memory_space<vmem>>, vector<512x128xf32>
    %20 = arith.index_cast %3 : i32 to index
    %c0_10 = arith.constant 0 : index
    %21 = vector.load %arg9[%20, %c0_10] : memref<512x128xbf16, #tpu.memory_space<vmem>>, vector<512x128xbf16>
    %cst = arith.constant dense<0.000000e+00> : vector<512x128xf32>
    %22 = tpu.matmul %18, %21, %cst {dimension_numbers = #tpu.dot_dimension_numbers<[1], [0], [0], [1], [0, 0, 1, 1], [], []>} : vector<512x512xbf16>, vector<512x128xbf16>, vector<512x128xf32> -> vector<512x128xf32>
    %23 = arith.addf %19, %22 : vector<512x128xf32>
    %c0_11 = arith.constant 0 : index
    %c0_12 = arith.constant 0 : index
    %24 = vector.load %arg8[%c0_11, %c0_12] : memref<512x128xf32, #tpu.memory_space<vmem>>, vector<512x128xf32>
    tpu.vector_store %arg8[%c0_11, %c0_12], %23 {strides = array<i32>} : memref<512x128xf32, #tpu.memory_space<vmem>>, vector<512x128xf32>,
    %c0_i32_13 = arith.constant 0 : i32
    %25 = arith.cmpi eq, %arg2, %c0_i32_13 : i32
    %26 = arith.extui %25 : i1 to i32
    %c0_i32_14 = arith.constant 0 : i32
    %27 = arith.cmpi ne, %26, %c0_i32_14 : i32
    scf.if %27 {
      %c0_15 = arith.constant 0 : index
      %c0_16 = arith.constant 0 : index
      %28 = vector.load %arg8[%c0_15, %c0_16] : memref<512x128xf32, #tpu.memory_space<vmem>>, vector<512x128xf32>
      %c0_17 = arith.constant 0 : index
      %c0_18 = arith.constant 0 : index
      %c0_19 = arith.constant 0 : index
      %29 = vector.load %arg6[%c0_17, %c0_18, %c0_19] : memref<1x1x128xf32, #tpu.memory_space<vmem>>, vector<1x1x128xf32>
      %30 = vector.shape_cast %29 : vector<1x1x128xf32> to vector<1x128xf32>
      %31 = vector.broadcast %30 : vector<1x128xf32> to vector<512x128xf32>
      %32 = arith.addf %28, %31 : vector<512x128xf32>
      %c0_20 = arith.constant 0 : index
      %c0_21 = arith.constant 0 : index
      %33 = vector.load %arg7[%c0_20, %c0_21] : memref<512x128xf32, #tpu.memory_space<vmem>>, vector<512x128xf32>
      tpu.vector_store %arg7[%c0_20, %c0_21], %32 {strides = array<i32>} : memref<512x128xf32, #tpu.memory_space<vmem>>, vector<512x128xf32>,
      %cst_22 = arith.constant 0.000000e+00 : f32
      %34 = vector.broadcast %cst_22 : f32 to vector<512x128xf32>
      %35 = arith.maximumf %32, %34 : vector<512x128xf32>
      %36 = arith.truncf %35 : vector<512x128xf32> to vector<512x128xbf16>
      %37 = arith.index_cast %1 : i32 to index
      %c0_23 = arith.constant 0 : index
      %38 = vector.load %arg10[%37, %c0_23] : memref<512x128xbf16, #tpu.memory_space<vmem>>, vector<512x128xbf16>
      tpu.vector_store %arg10[%37, %c0_23], %36 {strides = array<i32>} : memref<512x128xbf16, #tpu.memory_space<vmem>>, vector<512x128xbf16>,
    } else {
    }
    return
  }
  func.func @transform_0(%arg0: i32, %arg1: i32, %arg2: i32) -> (i32, i32) {
    %c0_i32 = arith.constant 0 : i32
    %c0_i32_0 = arith.constant 0 : i32
    %c0_i32_1 = arith.constant 0 : i32
    return %c0_i32, %c0_i32_0 : i32, i32
  }
  func.func @transform_1(%arg0: i32, %arg1: i32, %arg2: i32) -> (i32, i32) {
    %c0_i32 = arith.constant 0 : i32
    %0 = arith.cmpi eq, %arg0, %c0_i32 : i32
    %c0_i32_0 = arith.constant 0 : i32
    %1 = arith.cmpi eq, %arg1, %c0_i32_0 : i32
    %2 = arith.andi %0, %1 : i1
    %c0_i32_1 = arith.constant 0 : i32
    %3 = arith.select %2, %arg2, %c0_i32_1 : i32
    %c0_i32_2 = arith.constant 0 : i32
    %c0_i32_3 = arith.constant 0 : i32
    return %3, %c0_i32_2 : i32, i32
  }
  func.func @transform_2(%arg0: i32, %arg1: i32, %arg2: i32) -> (i32, i32, i32) {
    %c0_i32 = arith.constant 0 : i32
    %c0_i32_0 = arith.constant 0 : i32
    %c0_i32_1 = arith.constant 0 : i32
    return %arg0, %c0_i32, %c0_i32_0 : i32, i32, i32
  }
  func.func @transform_3(%arg0: i32, %arg1: i32, %arg2: i32) -> (i32, i32, i32) {
    %c0_i32 = arith.constant 0 : i32
    %c0_i32_0 = arith.constant 0 : i32
    %c0_i32_1 = arith.constant 0 : i32
    return %arg0, %c0_i32, %c0_i32_0 : i32, i32, i32
  }
  func.func @transform_4(%arg0: i32, %arg1: i32, %arg2: i32) -> (i32, i32) {
    %c0_i32 = arith.constant 0 : i32
    return %arg1, %arg0 : i32, i32
  }
}

</mosaic_0001>

<llo_original>
// kernel: tpu_custom_call.1
$region0: #{tpu_custom_call.1}
  #allocation0 [shape = 'u32[]', space=smem, size = 0x4, offset = 0x4, fixed_abs, tag = 'smem constant byte address 0x4 - core index']
  #allocation1 [shape = 'u32[72,128]{1,0:T(1,128)}', space=vmem, size = 0x9000, scoped, tag = 'internal scratch']
  #allocation2 [shape = 'f32[512,128]{1,0:T(8,128)}', space=vmem, size = 0x40000, scoped, tag = 'scratch operand']
  #allocation3 [shape = 'bf16[512,128]{1,0:T(8,128)(2,1)}', space=vmem, size = 0x20000, scoped, tag = 'scratch operand']
  #allocation4 [shape = 'bf16[512,128]{1,0:T(8,128)(2,1)}', space=vmem, size = 0x20000, scoped, tag = 'scratch operand']
  %s0 = inlined_call_operand.hbm [shape: bf16[512,512], index: 0, kind: input, shape index: {}]
  %s1 = inlined_call_operand.hbm [shape: bf16[512,128], index: 1, kind: input, shape index: {}]
  %s2 = inlined_call_operand.hbm [shape: bf16[3,128,128], index: 2, kind: input, shape index: {}]
  %s3 = inlined_call_operand.hbm [shape: f32[3,1,128], index: 3, kind: input, shape index: {}]
  %s4 = inlined_call_operand.hbm [shape: f32[512,384], index: 4, kind: output, shape index: {}]
  %s5 = sld [smem:[#allocation0]]
  $region81: #{tpu_custom_call.1} parent=0
    _
  %s7 = ssub.s32 1, %s5
  %s8 = scalar_select 0, %s7, %s5
  $region1: #{tpu_custom_call.1} parent=0
    #allocation5 [shape = 'u8[524288]{0}', space=vmem, size = 0x80000, scoped, tag = 'input window, operand 0, single buffered']
    #allocation6 [shape = 's32[2]{0}', space=sflag, size = 0x8, scoped, tag = 'scoped memory for tpu_custom_call.1']
    #allocation7 [shape = 's32[2]{0}', space=sflag, size = 0x8, scoped, tag = 'scoped memory for tpu_custom_call.1']
    #allocation8 [shape = 'u8[262144]{0}', space=vmem, size = 0x40000, scoped, tag = 'input window, operand 1']
    #allocation9 [shape = 's32[2]{0}', space=sflag, size = 0x8, scoped, tag = 'scoped memory for tpu_custom_call.1']
    #allocation10 [shape = 'u8[65536]{0}', space=vmem, size = 0x10000, scoped, tag = 'input window, operand 2']
    #allocation11 [shape = 'u8[1024]{0}', space=vmem, size = 0x400, scoped, tag = 'input window, operand 3']
    #allocation12 [shape = 's32[2]{0}', space=sflag, size = 0x8, scoped, tag = 'scoped memory for tpu_custom_call.1']
    #allocation13 [shape = 'u8[524288]{0}', space=vmem, size = 0x80000, scoped, tag = 'output window, operand 0']
    %9 = vsyncpa [#allocation6], 0
    %10 = vsyncpa [#allocation9], 0
    %s11 = scalar_lea.sflag [#allocation9], 1
    %12 = vsyncpa %s11, 0
    %13 = vsyncpa [#allocation12], 0
    %s14 = scalar_lea.sflag [#allocation12], 1
    %15 = vsyncpa %s14, 0
    %16 = vsyncpa [#allocation7], 0
    %s17 = scalar_lea.sflag [#allocation7], 1
    %18 = vsyncpa %s17, 0
    loop: start=0, step=1, limit=5
    $region2: #{tpu_custom_call.1} parent=1 // loop_pre_header
      _
    $region3: #{tpu_custom_call.1} parent=1 // loop_header
      %s20 = sphi 0, %s24
      %p21 = scmp.ge.s32.totalorder %s20, 5
      %s27 = sphi 0, %s46
      %s28 = sphi 0, %s42
      %s29 = sphi 0, %s38
      %s30 = sphi 0, %s27
      %s31 = sphi 0, %s28
      %s32 = sphi 0, %s29
      %s33 = sphi 0, %s30
      %s34 = sphi 0, %s31
      %s35 = sphi 0, %s32
      %s47 = sphi 0, %s47
      %s49 = sphi 0, %s47
      %s50 = sphi 0, %s49
      %s64 = sphi 0, %s50
      %s80 = sphi 0, %s82
      %s83 = sphi 0, %s80
      %s84 = sphi 0, %s83
      %s100 = sphi 0, %s84
      %s106 = sphi 0, %s108
      %s109 = sphi 0, %s106
      %s110 = sphi 0, %s109
      %s126 = sphi 0, %s110
      %s132 = sphi 0, %s134
      %s135 = sphi 0, %s132
      %s136 = sphi 0, %s135
      %s152 = sphi 0, %s136
      %s160 = sphi 0, %s162
      %s163 = sphi 0, %s160
      %s164 = sphi 0, %s163
      %s180 = sphi 0, %s164
    $region4: #{tpu_custom_call.1} parent=1 // loop_header_branch
      %23 = sbr.rel (%p21) target = $region8
    $region5: #{tpu_custom_call.1} parent=1 // loop_body
      %s25 = ssub.s32 %s20, 1
      %s26 = ssub.s32 %s20, 2
      %s36 = sadd.s32 1, %s29
      %p37 = scmp.ge.s32.totalorder %s36, 1
      %s38 = scalar_select %p37, 0, %s36
      %s39 = sadd.s32 1, %s28
      %s40 = scalar_select %p37, %s39, %s28
      %p41 = scmp.ge.s32.totalorder %s40, 1
      %s42 = scalar_select %p41, 0, %s40
      %s43 = sadd.s32 1, %s27
      %s44 = scalar_select %p41, %s43, %s27
      %p45 = scmp.ge.s32.totalorder %s44, 3
      %s46 = scalar_select %p45, 0, %s44
      %s48 = sadd.s32 %s47, 1
      %p51 = scmp.eq.s32.totalorder %s20, 2
      %p52 = scmp.ne.s32.totalorder %s47, %s49
      %p53 = scmp.eq.s32.totalorder %s20, 0
      %p54 = por %p52, %p53
      %p55 = scmp.ne.s32.totalorder %s47, %s49
      %p56 = scmp.eq.s32.totalorder %s25, 2
      %p57 = por %p55, %p56
      %p58 = scmp.ne.s32.totalorder %s49, %s50
      %p59 = scmp.eq.s32.totalorder %s25, 0
      %p60 = por %p58, %p59
      %p61 = scmp.ne.s32.totalorder %s49, %s50
      %p62 = scmp.eq.s32.totalorder %s26, 2
      %p63 = por %p61, %p62
      %p65 = scmp.ne.s32.totalorder %s50, %s64
      %p66 = scmp.eq.s32.totalorder %s26, 0
      %p67 = por %p65, %p66
      %p68 = scmp.eq.s32.totalorder %s27, 0
      %p69 = scmp.eq.s32.totalorder %s28, 0
      %p70 = pnand %p68, %p69
      %p71 = pneg %p70
      %s72 = scalar_select %p71, %s29, 0
      %p73 = scmp.eq.s32.totalorder %s46, 0
      %p74 = scmp.eq.s32.totalorder %s42, 0
      %p75 = pnand %p73, %p74
      %p76 = pneg %p75
      %s77 = scalar_select %p76, %s38, 0
      %s78 = ssub.s32 %s72, %s77
      %p79 = scmp.eq.s32.totalorder %s78, 0
      %s81 = sadd.s32 %s80, 1
      %s82 = scalar_select %p79, %s80, %s81
      %p85 = pneg %p79
      %p86 = scmp.eq.s32.totalorder %s20, 2
      %p87 = por %p85, %p86
      %p88 = scmp.ne.s32.totalorder %s80, %s83
      %p89 = scmp.eq.s32.totalorder %s20, 0
      %p90 = por %p88, %p89
      %p91 = scmp.ne.s32.totalorder %s80, %s83
      %p92 = scmp.eq.s32.totalorder %s25, 2
      %p93 = por %p91, %p92
      %p94 = scmp.ne.s32.totalorder %s83, %s84
      %p95 = scmp.eq.s32.totalorder %s25, 0
      %p96 = por %p94, %p95
      %p97 = scmp.ne.s32.totalorder %s83, %s84
      %p98 = scmp.eq.s32.totalorder %s26, 2
      %p99 = por %p97, %p98
      %p101 = scmp.ne.s32.totalorder %s84, %s100
      %p102 = scmp.eq.s32.totalorder %s26, 0
      %p103 = por %p101, %p102
      %s104 = ssub.s32 %s27, %s46
      %p105 = scmp.eq.s32.totalorder %s104, 0
      %s107 = sadd.s32 %s106, 1
      %s108 = scalar_select %p105, %s106, %s107
      %p111 = pneg %p105
      %p112 = scmp.eq.s32.totalorder %s20, 2
      %p113 = por %p111, %p112
      %p114 = scmp.ne.s32.totalorder %s106, %s109
      %p115 = scmp.eq.s32.totalorder %s20, 0
      %p116 = por %p114, %p115
      %p117 = scmp.ne.s32.totalorder %s106, %s109
      %p118 = scmp.eq.s32.totalorder %s25, 2
      %p119 = por %p117, %p118
      %p120 = scmp.ne.s32.totalorder %s109, %s110
      %p121 = scmp.eq.s32.totalorder %s25, 0
      %p122 = por %p120, %p121
      %p123 = scmp.ne.s32.totalorder %s109, %s110
      %p124 = scmp.eq.s32.totalorder %s26, 2
      %p125 = por %p123, %p124
      %p127 = scmp.ne.s32.totalorder %s110, %s126
      %p128 = scmp.eq.s32.totalorder %s26, 0
      %p129 = por %p127, %p128
      %s130 = ssub.s32 %s27, %s46
      %p131 = scmp.eq.s32.totalorder %s130, 0
      %s133 = sadd.s32 %s132, 1
      %s134 = scalar_select %p131, %s132, %s133
      %p137 = pneg %p131
      %p138 = scmp.eq.s32.totalorder %s20, 2
      %p139 = por %p137, %p138
      %p140 = scmp.ne.s32.totalorder %s132, %s135
      %p141 = scmp.eq.s32.totalorder %s20, 0
      %p142 = por %p140, %p141
      %p143 = scmp.ne.s32.totalorder %s132, %s135
      %p144 = scmp.eq.s32.totalorder %s25, 2
      %p145 = por %p143, %p144
      %p146 = scmp.ne.s32.totalorder %s135, %s136
      %p147 = scmp.eq.s32.totalorder %s25, 0
      %p148 = por %p146, %p147
      %p149 = scmp.ne.s32.totalorder %s135, %s136
      %p150 = scmp.eq.s32.totalorder %s26, 2
      %p151 = por %p149, %p150
      %p153 = scmp.ne.s32.totalorder %s136, %s152
      %p154 = scmp.eq.s32.totalorder %s26, 0
      %p155 = por %p153, %p154
      %s156 = ssub.s32 %s28, %s42
      %s157 = ssub.s32 %s27, %s46
      %s158 = sor.u32 %s156, %s157
      %p159 = scmp.eq.s32.totalorder %s158, 0
      %s161 = sadd.s32 %s160, 1
      %s162 = scalar_select %p159, %s160, %s161
      %p165 = pneg %p159
      %p166 = scmp.eq.s32.totalorder %s20, 2
      %p167 = por %p165, %p166
      %p168 = scmp.ne.s32.totalorder %s160, %s163
      %p169 = scmp.eq.s32.totalorder %s20, 0
      %p170 = por %p168, %p169
      %p171 = scmp.ne.s32.totalorder %s160, %s163
      %p172 = scmp.eq.s32.totalorder %s25, 2
      %p173 = por %p171, %p172
      %p174 = scmp.ne.s32.totalorder %s163, %s164
      %p175 = scmp.eq.s32.totalorder %s25, 0
      %p176 = por %p174, %p175
      %p177 = scmp.ne.s32.totalorder %s163, %s164
      %p178 = scmp.eq.s32.totalorder %s26, 2
      %p179 = por %p177, %p178
      %p181 = scmp.ne.s32.totalorder %s164, %s180
      %p182 = scmp.eq.s32.totalorder %s26, 0
      %p183 = por %p181, %p182
      %p184 = scmp.le.s32.totalorder 1, %s20
      %p185 = scmp.lt.s32.totalorder %s20, 4
      %p186 = pnand %p184, %p185
      %p187 = pneg %p186
      // Predicated region
      $region9: #{tpu_custom_call.1} parent=5 // pred_check
        _
      $region10: #{tpu_custom_call.1} parent=5 // pred_check_branch
        %189 = sbr.rel (%p186) target = $region12
      $region11: #{tpu_custom_call.1} parent=5 // pred_region
        %s190 = ssub.s32 %s20, 1
        // Predicated region
        $region13: #{tpu_custom_call.1} parent=11 // pred_check
          %p191 = pneg %p60
        $region14: #{tpu_custom_call.1} parent=11 // pred_check_branch
          %193 = sbr.rel (%p191) target = $region16
        $region15: #{tpu_custom_call.1} parent=11 // pred_region
          %195 = vsyncadd [#allocation6], 0
          %s196 = sshll.u32 %s0, 4
          %s197 = int_to_ptr.hbm [resolvable:$true] %s196
          %s198 = sshll.u32 [#allocation5], 4
          %s199 = int_to_ptr.vmem [resolvable:$true] %s198
          %204 = dma.hbm_to_vmem [thread:$0]  %s197, 16384, %s199, [#allocation6], 256, 256, 16
        $region16: #{tpu_custom_call.1} parent=11 // pred_fallthru
          _
      $region12: #{tpu_custom_call.1} parent=5 // pred_fallthru
        _
      %p205 = scmp.lt.s32.totalorder %s20, 3
      // Predicated region
      $region17: #{tpu_custom_call.1} parent=5 // pred_check
        %p206 = pneg %p205
      $region18: #{tpu_custom_call.1} parent=5 // pred_check_branch
        %208 = sbr.rel (%p206) target = $region20
      $region19: #{tpu_custom_call.1} parent=5 // pred_region
        // Predicated region
        $region21: #{tpu_custom_call.1} parent=19 // pred_check
          %p209 = pneg %p90
        $region22: #{tpu_custom_call.1} parent=19 // pred_check_branch
          %211 = sbr.rel (%p209) target = $region24
        $region23: #{tpu_custom_call.1} parent=19 // pred_region
          %s212 = sand.u32 %s20, 1
          %s213 = scalar_lea.sflag [#allocation9], %s212
          %s214 = sand.u32 %s80, 1
          %s215 = smul.addr %s214, 256
          %s216 = scalar_lea.vmem [#allocation8], %s215
          %p217 = scmp.eq.s32.totalorder %s27, 0
          %p218 = scmp.eq.s32.totalorder %s28, 0
          %p219 = pnand %p217, %p218
          %p220 = pneg %p219
          %s221 = scalar_select %p220, %s29, 0
          %s222 = smul.u32 64, %s221
          %224 = vsyncadd %s213, 0
          %s225 = smul.addr %s222, 4
          %s226 = scalar_lea.hbm %s1, %s225
          %s227 = sshll.u32 %s226, 4
          %s228 = int_to_ptr.hbm [resolvable:$true] %s227
          %s229 = sshll.u32 %s216, 4
          %s230 = int_to_ptr.vmem [resolvable:$true] %s229
          %235 = dma.hbm_to_vmem [thread:$0]  %s228, 4096, %s230, %s213, 64, 64, 4
        $region24: #{tpu_custom_call.1} parent=19 // pred_fallthru
          _
        // Predicated region
        $region25: #{tpu_custom_call.1} parent=19 // pred_check
          %p236 = pneg %p116
        $region26: #{tpu_custom_call.1} parent=19 // pred_check_branch
          %238 = sbr.rel (%p236) target = $region28
        $region27: #{tpu_custom_call.1} parent=19 // pred_region
          %s239 = sand.u32 %s20, 1
          %s240 = scalar_lea.sflag [#allocation9], %s239
          %s241 = sand.u32 %s106, 1
          %s242 = smul.addr %s241, 64
          %s243 = scalar_lea.vmem [#allocation10], %s242
          %245 = vsyncadd %s240, 0
          %s246 = smul.addr %s27, 16
          %s247 = smul.addr %s246, 4
          %s248 = scalar_lea.hbm %s2, %s247
          %s249 = sshll.u32 %s248, 4
          %s250 = int_to_ptr.hbm [resolvable:$true] %s249
          %s251 = sshll.u32 %s243, 4
          %s252 = int_to_ptr.vmem [resolvable:$true] %s251
          %257 = dma.hbm_to_vmem [thread:$0]  %s250, 1024, %s252, %s240, 64, 64, 4
        $region28: #{tpu_custom_call.1} parent=19 // pred_fallthru
          _
        // Predicated region
        $region29: #{tpu_custom_call.1} parent=19 // pred_check
          %p258 = pneg %p142
        $region30: #{tpu_custom_call.1} parent=19 // pred_check_branch
          %260 = sbr.rel (%p258) target = $region32
        $region31: #{tpu_custom_call.1} parent=19 // pred_region
          %s261 = sand.u32 %s132, 1
          %s262 = scalar_lea.sflag [#allocation12], %s261
          %s263 = sand.u32 %s132, 1
          %s264 = scalar_lea.vmem [#allocation11], %s263
          %266 = vsyncadd %s262, 0
          %s267 = scalar_lea.hbm %s3, %s27
          %s269 = sshll.u32 %s267, 4
          %s270 = int_to_ptr.hbm [resolvable:$true] %s269
          %s271 = sshll.u32 %s264, 4
          %s272 = int_to_ptr.vmem [resolvable:$true] %s271
          %274 = dma.hbm_to_vmem [thread:$0]  %s270, 16, %s272, %s262
        $region32: #{tpu_custom_call.1} parent=19 // pred_fallthru
          _
      $region20: #{tpu_custom_call.1} parent=5 // pred_fallthru
        _
      %p275 = scmp.le.s32.totalorder 1, %s20
      %p276 = scmp.lt.s32.totalorder %s20, 4
      %p277 = pnand %p275, %p276
      %p278 = pneg %p277
      // Predicated region
      $region33: #{tpu_custom_call.1} parent=5 // pred_check
        _
      $region34: #{tpu_custom_call.1} parent=5 // pred_check_branch
        %280 = sbr.rel (%p277) target = $region36
      $region35: #{tpu_custom_call.1} parent=5 // pred_region
        %s281 = ssub.s32 %s20, 1
        // Predicated region
        $region37: #{tpu_custom_call.1} parent=35 // pred_check
          %p282 = pneg %p60
        $region38: #{tpu_custom_call.1} parent=35 // pred_check_branch
          %284 = sbr.rel (%p282) target = $region40
        $region39: #{tpu_custom_call.1} parent=35 // pred_region
          %286 = dma.done [#allocation6], 16384
        $region40: #{tpu_custom_call.1} parent=35 // pred_fallthru
          _
        %s287 = sand.u32 %s25, 1
        %s288 = scalar_lea.sflag [#allocation9], %s287
        %s289 = sand.u32 %s83, 1
        %s290 = smul.addr %s289, 256
        %s291 = scalar_lea.vmem [#allocation8], %s290
        // Predicated region
        $region41: #{tpu_custom_call.1} parent=35 // pred_check
          %p292 = pneg %p96
        $region42: #{tpu_custom_call.1} parent=35 // pred_check_branch
          %294 = sbr.rel (%p292) target = $region44
        $region43: #{tpu_custom_call.1} parent=35 // pred_region
          %296 = dma.done %s288, 4096
        $region44: #{tpu_custom_call.1} parent=35 // pred_fallthru
          _
        %s297 = sand.u32 %s25, 1
        %s298 = scalar_lea.sflag [#allocation9], %s297
        %s299 = sand.u32 %s109, 1
        %s300 = smul.addr %s299, 64
        %s301 = scalar_lea.vmem [#allocation10], %s300
        // Predicated region
        $region45: #{tpu_custom_call.1} parent=35 // pred_check
          %p302 = pneg %p122
        $region46: #{tpu_custom_call.1} parent=35 // pred_check_branch
          %304 = sbr.rel (%p302) target = $region48
        $region47: #{tpu_custom_call.1} parent=35 // pred_region
          %306 = dma.done %s298, 1024
        $region48: #{tpu_custom_call.1} parent=35 // pred_fallthru
          _
        %s307 = sand.u32 %s135, 1
        %s308 = scalar_lea.sflag [#allocation12], %s307
        %s309 = sand.u32 %s135, 1
        %s310 = scalar_lea.vmem [#allocation11], %s309
        // Predicated region
        $region49: #{tpu_custom_call.1} parent=35 // pred_check
          %p311 = pneg %p148
        $region50: #{tpu_custom_call.1} parent=35 // pred_check_branch
          %313 = sbr.rel (%p311) target = $region52
        $region51: #{tpu_custom_call.1} parent=35 // pred_region
          %315 = dma.done %s308, 16
        $region52: #{tpu_custom_call.1} parent=35 // pred_fallthru
          _
        %p316 = pneg %p60
        %p317 = pneg %p57
        %s318 = sand.u32 %s25, 1
        %s319 = scalar_lea.sflag [#allocation9], %s318
        %s320 = sand.u32 %s83, 1
        %s321 = smul.addr %s320, 256
        %s322 = scalar_lea.vmem [#allocation8], %s321
        %p323 = pneg %p96
        %p324 = pneg %p93
        %s325 = sand.u32 %s25, 1
        %s326 = scalar_lea.sflag [#allocation9], %s325
        %s327 = sand.u32 %s109, 1
        %s328 = smul.addr %s327, 64
        %s329 = scalar_lea.vmem [#allocation10], %s328
        %p330 = pneg %p122
        %p331 = pneg %p119
        %s332 = sand.u32 %s135, 1
        %s333 = scalar_lea.sflag [#allocation12], %s332
        %s334 = sand.u32 %s135, 1
        %s335 = scalar_lea.vmem [#allocation11], %s334
        %p336 = pneg %p148
        %p337 = pneg %p145
        %p338 = pneg %p176
        %p339 = pneg %p173
        %s340 = sand.u32 %s163, 1
        %s341 = scalar_lea.sflag [#allocation7], %s340
        %s342 = sand.u32 %s163, 1
        %s343 = smul.addr %s342, 512
        %s344 = scalar_lea.vmem [#allocation13], %s343
        %p345 = scmp.eq.s32.totalorder %s30, 0
        %p346 = scmp.eq.s32.totalorder %s31, 0
        %p347 = pnand %p345, %p346
        %p348 = pneg %p347
        %s349 = scalar_select %p348, %s32, 0
        %s350 = smul.u32 64, %s349
        %s351 = smul.u32 64, %s31
        %s352 = smul.u32 %s31, 512
        %s353 = smul.u32 %s32, 512
        %p354 = scmp.eq.s32.totalorder %s31, 0
        %p355 = scmp.eq.s32.totalorder %s30, 0
        %p356 = pnand %p354, %p355
        %p357 = pneg %p356
        // Predicated region
        $region53: #{tpu_custom_call.1} parent=35 // pred_check
          _
        $region54: #{tpu_custom_call.1} parent=35 // pred_check_branch
          %359 = sbr.rel (%p356) target = $region56
        $region55: #{tpu_custom_call.1} parent=35 // pred_region
          %v360 = vld [vmem:[%s291] sm:$0xf]
          %v361 = vld [vmem:[%s291 + $0x4] sm:$0xf]
          %v362 = vld [vmem:[%s291 + $0x8] sm:$0xf]
          %v363 = vld [vmem:[%s291 + $0xc] sm:$0xf]
          %v364 = vld [vmem:[%s291 + $0x10] sm:$0xf]
          %v365 = vld [vmem:[%s291 + $0x14] sm:$0xf]
          %v366 = vld [vmem:[%s291 + $0x18] sm:$0xf]
          %v367 = vld [vmem:[%s291 + $0x1c] sm:$0xf]
          %v368 = vld [vmem:[%s291 + $0x20] sm:$0xf]
          %v369 = vld [vmem:[%s291 + $0x24] sm:$0xf]
          %v370 = vld [vmem:[%s291 + $0x28] sm:$0xf]
          %v371 = vld [vmem:[%s291 + $0x2c] sm:$0xf]
          %v372 = vld [vmem:[%s291 + $0x30] sm:$0xf]
          %v373 = vld [vmem:[%s291 + $0x34] sm:$0xf]
          %v374 = vld [vmem:[%s291 + $0x38] sm:$0xf]
          %v375 = vld [vmem:[%s291 + $0x3c] sm:$0xf]
          %v376 = vld [vmem:[%s291 + $0x40] sm:$0xf]
          %v377 = vld [vmem:[%s291 + $0x44] sm:$0xf]
          %v378 = vld [vmem:[%s291 + $0x48] sm:$0xf]
          %v379 = vld [vmem:[%s291 + $0x4c] sm:$0xf]
          %v380 = vld [vmem:[%s291 + $0x50] sm:$0xf]
          %v381 = vld [vmem:[%s291 + $0x54] sm:$0xf]
          %v382 = vld [vmem:[%s291 + $0x58] sm:$0xf]
          %v383 = vld [vmem:[%s291 + $0x5c] sm:$0xf]
          %v384 = vld [vmem:[%s291 + $0x60] sm:$0xf]
          %v385 = vld [vmem:[%s291 + $0x64] sm:$0xf]
          %v386 = vld [vmem:[%s291 + $0x68] sm:$0xf]
          %v387 = vld [vmem:[%s291 + $0x6c] sm:$0xf]
          %v388 = vld [vmem:[%s291 + $0x70] sm:$0xf]
          %v389 = vld [vmem:[%s291 + $0x74] sm:$0xf]
          %v390 = vld [vmem:[%s291 + $0x78] sm:$0xf]
          %v391 = vld [vmem:[%s291 + $0x7c] sm:$0xf]
          %v392 = vld [vmem:[%s291 + $0x80] sm:$0xf]
          %v393 = vld [vmem:[%s291 + $0x84] sm:$0xf]
          %v394 = vld [vmem:[%s291 + $0x88] sm:$0xf]
          %v395 = vld [vmem:[%s291 + $0x8c] sm:$0xf]
          %v396 = vld [vmem:[%s291 + $0x90] sm:$0xf]
          %v397 = vld [vmem:[%s291 + $0x94] sm:$0xf]
          %v398 = vld [vmem:[%s291 + $0x98] sm:$0xf]
          %v399 = vld [vmem:[%s291 + $0x9c] sm:$0xf]
          %v400 = vld [vmem:[%s291 + $0xa0] sm:$0xf]
          %v401 = vld [vmem:[%s291 + $0xa4] sm:$0xf]
          %v402 = vld [vmem:[%s291 + $0xa8] sm:$0xf]
          %v403 = vld [vmem:[%s291 + $0xac] sm:$0xf]
          %v404 = vld [vmem:[%s291 + $0xb0] sm:$0xf]
          %v405 = vld [vmem:[%s291 + $0xb4] sm:$0xf]
          %v406 = vld [vmem:[%s291 + $0xb8] sm:$0xf]
          %v407 = vld [vmem:[%s291 + $0xbc] sm:$0xf]
          %v408 = vld [vmem:[%s291 + $0xc0] sm:$0xf]
          %v409 = vld [vmem:[%s291 + $0xc4] sm:$0xf]
          %v410 = vld [vmem:[%s291 + $0xc8] sm:$0xf]
          %v411 = vld [vmem:[%s291 + $0xcc] sm:$0xf]
          %v412 = vld [vmem:[%s291 + $0xd0] sm:$0xf]
          %v413 = vld [vmem:[%s291 + $0xd4] sm:$0xf]
          %v414 = vld [vmem:[%s291 + $0xd8] sm:$0xf]
          %v415 = vld [vmem:[%s291 + $0xdc] sm:$0xf]
          %v416 = vld [vmem:[%s291 + $0xe0] sm:$0xf]
          %v417 = vld [vmem:[%s291 + $0xe4] sm:$0xf]
          %v418 = vld [vmem:[%s291 + $0xe8] sm:$0xf]
          %v419 = vld [vmem:[%s291 + $0xec] sm:$0xf]
          %v420 = vld [vmem:[%s291 + $0xf0] sm:$0xf]
          %v421 = vld [vmem:[%s291 + $0xf4] sm:$0xf]
          %v422 = vld [vmem:[%s291 + $0xf8] sm:$0xf]
          %v423 = vld [vmem:[%s291 + $0xfc] sm:$0xf]
          %v424 = vld [vmem:[%s301] sm:$0xf]
          %v425 = vld [vmem:[%s301 + $0x4] sm:$0xf]
          %v426 = vld [vmem:[%s301 + $0x8] sm:$0xf]
          %v427 = vld [vmem:[%s301 + $0xc] sm:$0xf]
          %v428 = vld [vmem:[%s301 + $0x10] sm:$0xf]
          %v429 = vld [vmem:[%s301 + $0x14] sm:$0xf]
          %v430 = vld [vmem:[%s301 + $0x18] sm:$0xf]
          %v431 = vld [vmem:[%s301 + $0x1c] sm:$0xf]
          %v432 = vld [vmem:[%s301 + $0x20] sm:$0xf]
          %v433 = vld [vmem:[%s301 + $0x24] sm:$0xf]
          %v434 = vld [vmem:[%s301 + $0x28] sm:$0xf]
          %v435 = vld [vmem:[%s301 + $0x2c] sm:$0xf]
          %v436 = vld [vmem:[%s301 + $0x30] sm:$0xf]
          %v437 = vld [vmem:[%s301 + $0x34] sm:$0xf]
          %v438 = vld [vmem:[%s301 + $0x38] sm:$0xf]
          %v439 = vld [vmem:[%s301 + $0x3c] sm:$0xf]
          %v504 = vunpack.c.l.b16 %v360
          %v505 = vunpack.c.l.b16 %v361
          %v506 = vunpack.c.l.b16 %v362
          %v507 = vunpack.c.l.b16 %v363
          %v508 = vunpack.c.l.b16 %v364
          %v509 = vunpack.c.l.b16 %v365
          %v510 = vunpack.c.l.b16 %v366
          %v511 = vunpack.c.l.b16 %v367
          %v512 = vunpack.c.l.b16 %v368
          %v513 = vunpack.c.l.b16 %v369
          %v514 = vunpack.c.l.b16 %v370
          %v515 = vunpack.c.l.b16 %v371
          %v516 = vunpack.c.l.b16 %v372
          %v517 = vunpack.c.l.b16 %v373
          %v518 = vunpack.c.l.b16 %v374
          %v519 = vunpack.c.l.b16 %v375
          %v520 = vunpack.c.l.b16 %v376
          %v521 = vunpack.c.l.b16 %v377
          %v522 = vunpack.c.l.b16 %v378
          %v523 = vunpack.c.l.b16 %v379
          %v524 = vunpack.c.l.b16 %v380
          %v525 = vunpack.c.l.b16 %v381
          %v526 = vunpack.c.l.b16 %v382
          %v527 = vunpack.c.l.b16 %v383
          %v528 = vunpack.c.l.b16 %v384
          %v529 = vunpack.c.l.b16 %v385
          %v530 = vunpack.c.l.b16 %v386
          %v531 = vunpack.c.l.b16 %v387
          %v532 = vunpack.c.l.b16 %v388
          %v533 = vunpack.c.l.b16 %v389
          %v534 = vunpack.c.l.b16 %v390
          %v535 = vunpack.c.l.b16 %v391
          %v536 = vunpack.c.l.b16 %v392
          %v537 = vunpack.c.l.b16 %v393
          %v538 = vunpack.c.l.b16 %v394
          %v539 = vunpack.c.l.b16 %v395
          %v540 = vunpack.c.l.b16 %v396
          %v541 = vunpack.c.l.b16 %v397
          %v542 = vunpack.c.l.b16 %v398
          %v543 = vunpack.c.l.b16 %v399
          %v544 = vunpack.c.l.b16 %v400
          %v545 = vunpack.c.l.b16 %v401
          %v546 = vunpack.c.l.b16 %v402
          %v547 = vunpack.c.l.b16 %v403
          %v548 = vunpack.c.l.b16 %v404
          %v549 = vunpack.c.l.b16 %v405
          %v550 = vunpack.c.l.b16 %v406
          %v551 = vunpack.c.l.b16 %v407
          %v552 = vunpack.c.l.b16 %v408
          %v553 = vunpack.c.l.b16 %v409
          %v554 = vunpack.c.l.b16 %v410
          %v555 = vunpack.c.l.b16 %v411
          %v556 = vunpack.c.l.b16 %v412
          %v557 = vunpack.c.l.b16 %v413
          %v558 = vunpack.c.l.b16 %v414
          %v559 = vunpack.c.l.b16 %v415
          %v560 = vunpack.c.l.b16 %v416
          %v561 = vunpack.c.l.b16 %v417
          %v562 = vunpack.c.l.b16 %v418
          %v563 = vunpack.c.l.b16 %v419
          %v564 = vunpack.c.l.b16 %v420
          %v565 = vunpack.c.l.b16 %v421
          %v566 = vunpack.c.l.b16 %v422
          %v567 = vunpack.c.l.b16 %v423
          %v568 = vpack.c.b16 %v505, %v504
          %v569 = vpack.c.b16 %v507, %v506
          %v570 = vpack.c.b16 %v509, %v508
          %v571 = vpack.c.b16 %v511, %v510
          %v572 = vpack.c.b16 %v513, %v512
          %v573 = vpack.c.b16 %v515, %v514
          %v574 = vpack.c.b16 %v517, %v516
          %v575 = vpack.c.b16 %v519, %v518
          %v576 = vpack.c.b16 %v521, %v520
          %v577 = vpack.c.b16 %v523, %v522
          %v578 = vpack.c.b16 %v525, %v524
          %v579 = vpack.c.b16 %v527, %v526
          %v580 = vpack.c.b16 %v529, %v528
          %v581 = vpack.c.b16 %v531, %v530
          %v582 = vpack.c.b16 %v533, %v532
          %v583 = vpack.c.b16 %v535, %v534
          %v584 = vpack.c.b16 %v537, %v536
          %v585 = vpack.c.b16 %v539, %v538
          %v586 = vpack.c.b16 %v541, %v540
          %v587 = vpack.c.b16 %v543, %v542
          %v588 = vpack.c.b16 %v545, %v544
          %v589 = vpack.c.b16 %v547, %v546
          %v590 = vpack.c.b16 %v549, %v548
          %v591 = vpack.c.b16 %v551, %v550
          %v592 = vpack.c.b16 %v553, %v552
          %v593 = vpack.c.b16 %v555, %v554
          %v594 = vpack.c.b16 %v557, %v556
          %v595 = vpack.c.b16 %v559, %v558
          %v596 = vpack.c.b16 %v561, %v560
          %v597 = vpack.c.b16 %v563, %v562
          %v598 = vpack.c.b16 %v565, %v564
          %v599 = vpack.c.b16 %v567, %v566
          %v648 = vunpack.c.l.b16 %v424
          %v649 = vunpack.c.l.b16 %v425
          %v650 = vunpack.c.l.b16 %v426
          %v651 = vunpack.c.l.b16 %v427
          %v652 = vunpack.c.l.b16 %v428
          %v653 = vunpack.c.l.b16 %v429
          %v654 = vunpack.c.l.b16 %v430
          %v655 = vunpack.c.l.b16 %v431
          %v656 = vunpack.c.l.b16 %v432
          %v657 = vunpack.c.l.b16 %v433
          %v658 = vunpack.c.l.b16 %v434
          %v659 = vunpack.c.l.b16 %v435
          %v660 = vunpack.c.l.b16 %v436
          %v661 = vunpack.c.l.b16 %v437
          %v662 = vunpack.c.l.b16 %v438
          %v663 = vunpack.c.l.b16 %v439
          %v664 = vpack.c.b16 %v649, %v648
          %v665 = vpack.c.b16 %v651, %v650
          %v666 = vpack.c.b16 %v653, %v652
          %v667 = vpack.c.b16 %v655, %v654
          %v668 = vpack.c.b16 %v657, %v656
          %v669 = vpack.c.b16 %v659, %v658
          %v670 = vpack.c.b16 %v661, %v660
          %v671 = vpack.c.b16 %v663, %v662
          %680 = vmatpush.bf16.msra.mxu0 %v671
          %681 = vmatpush.bf16.msra.mxu0 %v670
          %682 = vmatpush.bf16.msra.mxu0 %v669
          %683 = vmatpush.bf16.msra.mxu0 %v668
          %684 = vmatpush.bf16.msra.mxu0 %v667
          %685 = vmatpush.bf16.msra.mxu0 %v666
          %686 = vmatpush.bf16.msra.mxu0 %v665
          %687 = vmatpush.bf16.msra.mxu0 %v664
          %688 = vmatmul.bf16.gmra.mxu0 %v568
          %v689 = vpop.f32.mrf.mxu0
          %v690 = vadd.f32 0.0, %v689
          %v691 = vpop.f32.mrf.mxu0
          %v692 = vadd.f32 0.0, %v691
          %693 = vmatmul.bf16.gmra.mxu0 %v569
          %v694 = vpop.f32.mrf.mxu0
          %v695 = vadd.f32 0.0, %v694
          %v696 = vpop.f32.mrf.mxu0
          %v697 = vadd.f32 0.0, %v696
          %698 = vmatmul.bf16.gmra.mxu0 %v570
          %v699 = vpop.f32.mrf.mxu0
          %v700 = vadd.f32 0.0, %v699
          %v701 = vpop.f32.mrf.mxu0
          %v702 = vadd.f32 0.0, %v701
          %703 = vmatmul.bf16.gmra.mxu0 %v571
          %v704 = vpop.f32.mrf.mxu0
          %v705 = vadd.f32 0.0, %v704
          %v706 = vpop.f32.mrf.mxu0
          %v707 = vadd.f32 0.0, %v706
          %708 = vmatmul.bf16.gmra.mxu0 %v572
          %v709 = vpop.f32.mrf.mxu0
          %v710 = vadd.f32 0.0, %v709
          %v711 = vpop.f32.mrf.mxu0
          %v712 = vadd.f32 0.0, %v711
          %713 = vmatmul.bf16.gmra.mxu0 %v573
          %v714 = vpop.f32.mrf.mxu0
          %v715 = vadd.f32 0.0, %v714
          %v716 = vpop.f32.mrf.mxu0
          %v717 = vadd.f32 0.0, %v716
          %718 = vmatmul.bf16.gmra.mxu0 %v574
          %v719 = vpop.f32.mrf.mxu0
          %v720 = vadd.f32 0.0, %v719
          %v721 = vpop.f32.mrf.mxu0
          %v722 = vadd.f32 0.0, %v721
          %723 = vmatmul.bf16.gmra.mxu0 %v575
          %v724 = vpop.f32.mrf.mxu0
          %v725 = vadd.f32 0.0, %v724
          %v726 = vpop.f32.mrf.mxu0
          %v727 = vadd.f32 0.0, %v726
          %728 = vmatmul.bf16.gmra.mxu0 %v576
          %v729 = vpop.f32.mrf.mxu0
          %v730 = vadd.f32 0.0, %v729
          %v731 = vpop.f32.mrf.mxu0
          %v732 = vadd.f32 0.0, %v731
          %733 = vmatmul.bf16.gmra.mxu0 %v577
          %v734 = vpop.f32.mrf.mxu0
          %v735 = vadd.f32 0.0, %v734
          %v736 = vpop.f32.mrf.mxu0
          %v737 = vadd.f32 0.0, %v736
          %738 = vmatmul.bf16.gmra.mxu0 %v578
          %v739 = vpop.f32.mrf.mxu0
          %v740 = vadd.f32 0.0, %v739
          %v741 = vpop.f32.mrf.mxu0
          %v742 = vadd.f32 0.0, %v741
          %743 = vmatmul.bf16.gmra.mxu0 %v579
          %v744 = vpop.f32.mrf.mxu0
          %v745 = vadd.f32 0.0, %v744
          %v746 = vpop.f32.mrf.mxu0
          %v747 = vadd.f32 0.0, %v746
          %748 = vmatmul.bf16.gmra.mxu0 %v580
          %v749 = vpop.f32.mrf.mxu0
          %v750 = vadd.f32 0.0, %v749
          %v751 = vpop.f32.mrf.mxu0
          %v752 = vadd.f32 0.0, %v751
          %753 = vmatmul.bf16.gmra.mxu0 %v581
          %v754 = vpop.f32.mrf.mxu0
          %v755 = vadd.f32 0.0, %v754
          %v756 = vpop.f32.mrf.mxu0
          %v757 = vadd.f32 0.0, %v756
          %758 = vmatmul.bf16.gmra.mxu0 %v582
          %v759 = vpop.f32.mrf.mxu0
          %v760 = vadd.f32 0.0, %v759
          %v761 = vpop.f32.mrf.mxu0
          %v762 = vadd.f32 0.0, %v761
          %763 = vmatmul.bf16.gmra.mxu0 %v583
          %v764 = vpop.f32.mrf.mxu0
          %v765 = vadd.f32 0.0, %v764
          %v766 = vpop.f32.mrf.mxu0
          %v767 = vadd.f32 0.0, %v766
          %768 = vmatmul.bf16.gmra.mxu0 %v584
          %v769 = vpop.f32.mrf.mxu0
          %v770 = vadd.f32 0.0, %v769
          %v771 = vpop.f32.mrf.mxu0
          %v772 = vadd.f32 0.0, %v771
          %773 = vmatmul.bf16.gmra.mxu0 %v585
          %v774 = vpop.f32.mrf.mxu0
          %v775 = vadd.f32 0.0, %v774
          %v776 = vpop.f32.mrf.mxu0
          %v777 = vadd.f32 0.0, %v776
          %778 = vmatmul.bf16.gmra.mxu0 %v586
          %v779 = vpop.f32.mrf.mxu0
          %v780 = vadd.f32 0.0, %v779
          %v781 = vpop.f32.mrf.mxu0
          %v782 = vadd.f32 0.0, %v781
          %783 = vmatmul.bf16.gmra.mxu0 %v587
          %v784 = vpop.f32.mrf.mxu0
          %v785 = vadd.f32 0.0, %v784
          %v786 = vpop.f32.mrf.mxu0
          %v787 = vadd.f32 0.0, %v786
          %788 = vmatmul.bf16.gmra.mxu0 %v588
          %v789 = vpop.f32.mrf.mxu0
          %v790 = vadd.f32 0.0, %v789
          %v791 = vpop.f32.mrf.mxu0
          %v792 = vadd.f32 0.0, %v791
          %793 = vmatmul.bf16.gmra.mxu0 %v589
          %v794 = vpop.f32.mrf.mxu0
          %v795 = vadd.f32 0.0, %v794
          %v796 = vpop.f32.mrf.mxu0
          %v797 = vadd.f32 0.0, %v796
          %798 = vmatmul.bf16.gmra.mxu0 %v590
          %v799 = vpop.f32.mrf.mxu0
          %v800 = vadd.f32 0.0, %v799
          %v801 = vpop.f32.mrf.mxu0
          %v802 = vadd.f32 0.0, %v801
          %803 = vmatmul.bf16.gmra.mxu0 %v591
          %v804 = vpop.f32.mrf.mxu0
          %v805 = vadd.f32 0.0, %v804
          %v806 = vpop.f32.mrf.mxu0
          %v807 = vadd.f32 0.0, %v806
          %808 = vmatmul.bf16.gmra.mxu0 %v592
          %v809 = vpop.f32.mrf.mxu0
          %v810 = vadd.f32 0.0, %v809
          %v811 = vpop.f32.mrf.mxu0
          %v812 = vadd.f32 0.0, %v811
          %813 = vmatmul.bf16.gmra.mxu0 %v593
          %v814 = vpop.f32.mrf.mxu0
          %v815 = vadd.f32 0.0, %v814
          %v816 = vpop.f32.mrf.mxu0
          %v817 = vadd.f32 0.0, %v816
          %818 = vmatmul.bf16.gmra.mxu0 %v594
          %v819 = vpop.f32.mrf.mxu0
          %v820 = vadd.f32 0.0, %v819
          %v821 = vpop.f32.mrf.mxu0
          %v822 = vadd.f32 0.0, %v821
          %823 = vmatmul.bf16.gmra.mxu0 %v595
          %v824 = vpop.f32.mrf.mxu0
          %v825 = vadd.f32 0.0, %v824
          %v826 = vpop.f32.mrf.mxu0
          %v827 = vadd.f32 0.0, %v826
          %828 = vmatmul.bf16.gmra.mxu0 %v596
          %v829 = vpop.f32.mrf.mxu0
          %v830 = vadd.f32 0.0, %v829
          %v831 = vpop.f32.mrf.mxu0
          %v832 = vadd.f32 0.0, %v831
          %833 = vmatmul.bf16.gmra.mxu0 %v597
          %v834 = vpop.f32.mrf.mxu0
          %v835 = vadd.f32 0.0, %v834
          %v836 = vpop.f32.mrf.mxu0
          %v837 = vadd.f32 0.0, %v836
          %838 = vmatmul.bf16.gmra.mxu0 %v598
          %v839 = vpop.f32.mrf.mxu0
          %v840 = vadd.f32 0.0, %v839
          %v841 = vpop.f32.mrf.mxu0
          %v842 = vadd.f32 0.0, %v841
          %843 = vmatmul.bf16.gmra.mxu0 %v599
          %v844 = vpop.f32.mrf.mxu0
          %v845 = vadd.f32 0.0, %v844
          %v846 = vpop.f32.mrf.mxu0
          %v847 = vadd.f32 0.0, %v846
          %848 = vdwg.mxu0
          %v849 = vpack.c.bf16 %v690, %v690
          %v850 = vpack.c.bf16 %v692, %v692
          %v851 = vpack.c.bf16 %v695, %v695
          %v852 = vpack.c.bf16 %v697, %v697
          %v853 = vpack.c.bf16 %v700, %v700
          %v854 = vpack.c.bf16 %v702, %v702
          %v855 = vpack.c.bf16 %v705, %v705
          %v856 = vpack.c.bf16 %v707, %v707
          %v857 = vpack.c.bf16 %v710, %v710
          %v858 = vpack.c.bf16 %v712, %v712
          %v859 = vpack.c.bf16 %v715, %v715
          %v860 = vpack.c.bf16 %v717, %v717
          %v861 = vpack.c.bf16 %v720, %v720
          %v862 = vpack.c.bf16 %v722, %v722
          %v863 = vpack.c.bf16 %v725, %v725
          %v864 = vpack.c.bf16 %v727, %v727
          %v865 = vpack.c.bf16 %v730, %v730
          %v866 = vpack.c.bf16 %v732, %v732
          %v867 = vpack.c.bf16 %v735, %v735
          %v868 = vpack.c.bf16 %v737, %v737
          %v869 = vpack.c.bf16 %v740, %v740
          %v870 = vpack.c.bf16 %v742, %v742
          %v871 = vpack.c.bf16 %v745, %v745
          %v872 = vpack.c.bf16 %v747, %v747
          %v873 = vpack.c.bf16 %v750, %v750
          %v874 = vpack.c.bf16 %v752, %v752
          %v875 = vpack.c.bf16 %v755, %v755
          %v876 = vpack.c.bf16 %v757, %v757
          %v877 = vpack.c.bf16 %v760, %v760
          %v878 = vpack.c.bf16 %v762, %v762
          %v879 = vpack.c.bf16 %v765, %v765
          %v880 = vpack.c.bf16 %v767, %v767
          %v881 = vpack.c.bf16 %v770, %v770
          %v882 = vpack.c.bf16 %v772, %v772
          %v883 = vpack.c.bf16 %v775, %v775
          %v884 = vpack.c.bf16 %v777, %v777
          %v885 = vpack.c.bf16 %v780, %v780
          %v886 = vpack.c.bf16 %v782, %v782
          %v887 = vpack.c.bf16 %v785, %v785
          %v888 = vpack.c.bf16 %v787, %v787
          %v889 = vpack.c.bf16 %v790, %v790
          %v890 = vpack.c.bf16 %v792, %v792
          %v891 = vpack.c.bf16 %v795, %v795
          %v892 = vpack.c.bf16 %v797, %v797
          %v893 = vpack.c.bf16 %v800, %v800
          %v894 = vpack.c.bf16 %v802, %v802
          %v895 = vpack.c.bf16 %v805, %v805
          %v896 = vpack.c.bf16 %v807, %v807
          %v897 = vpack.c.bf16 %v810, %v810
          %v898 = vpack.c.bf16 %v812, %v812
          %v899 = vpack.c.bf16 %v815, %v815
          %v900 = vpack.c.bf16 %v817, %v817
          %v901 = vpack.c.bf16 %v820, %v820
          %v902 = vpack.c.bf16 %v822, %v822
          %v903 = vpack.c.bf16 %v825, %v825
          %v904 = vpack.c.bf16 %v827, %v827
          %v905 = vpack.c.bf16 %v830, %v830
          %v906 = vpack.c.bf16 %v832, %v832
          %v907 = vpack.c.bf16 %v835, %v835
          %v908 = vpack.c.bf16 %v837, %v837
          %v909 = vpack.c.bf16 %v840, %v840
          %v910 = vpack.c.bf16 %v842, %v842
          %v911 = vpack.c.bf16 %v845, %v845
          %v912 = vpack.c.bf16 %v847, %v847
          %s913 = sshra.s32 %s353, 3
          %s914 = sand.u32 %s353, 7
          %s915 = smul.addr %s913, 4
          %s916 = scalar_lea.vmem [#allocation3], %s915
          %917 = vst [vmem:[%s916] sm:$0xf] %v849
          %918 = vst [vmem:[%s916 + $0x4] sm:$0xf] %v850
          %919 = vst [vmem:[%s916 + $0x8] sm:$0xf] %v851
          %920 = vst [vmem:[%s916 + $0xc] sm:$0xf] %v852
          %921 = vst [vmem:[%s916 + $0x10] sm:$0xf] %v853
          %922 = vst [vmem:[%s916 + $0x14] sm:$0xf] %v854
          %923 = vst [vmem:[%s916 + $0x18] sm:$0xf] %v855
          %924 = vst [vmem:[%s916 + $0x1c] sm:$0xf] %v856
          %925 = vst [vmem:[%s916 + $0x20] sm:$0xf] %v857
          %926 = vst [vmem:[%s916 + $0x24] sm:$0xf] %v858
          %927 = vst [vmem:[%s916 + $0x28] sm:$0xf] %v859
          %928 = vst [vmem:[%s916 + $0x2c] sm:$0xf] %v860
          %929 = vst [vmem:[%s916 + $0x30] sm:$0xf] %v861
          %930 = vst [vmem:[%s916 + $0x34] sm:$0xf] %v862
          %931 = vst [vmem:[%s916 + $0x38] sm:$0xf] %v863
          %932 = vst [vmem:[%s916 + $0x3c] sm:$0xf] %v864
          %933 = vst [vmem:[%s916 + $0x40] sm:$0xf] %v865
          %934 = vst [vmem:[%s916 + $0x44] sm:$0xf] %v866
          %935 = vst [vmem:[%s916 + $0x48] sm:$0xf] %v867
          %936 = vst [vmem:[%s916 + $0x4c] sm:$0xf] %v868
          %937 = vst [vmem:[%s916 + $0x50] sm:$0xf] %v869
          %938 = vst [vmem:[%s916 + $0x54] sm:$0xf] %v870
          %939 = vst [vmem:[%s916 + $0x58] sm:$0xf] %v871
          %940 = vst [vmem:[%s916 + $0x5c] sm:$0xf] %v872
          %941 = vst [vmem:[%s916 + $0x60] sm:$0xf] %v873
          %942 = vst [vmem:[%s916 + $0x64] sm:$0xf] %v874
          %943 = vst [vmem:[%s916 + $0x68] sm:$0xf] %v875
          %944 = vst [vmem:[%s916 + $0x6c] sm:$0xf] %v876
          %945 = vst [vmem:[%s916 + $0x70] sm:$0xf] %v877
          %946 = vst [vmem:[%s916 + $0x74] sm:$0xf] %v878
          %947 = vst [vmem:[%s916 + $0x78] sm:$0xf] %v879
          %948 = vst [vmem:[%s916 + $0x7c] sm:$0xf] %v880
          %949 = vst [vmem:[%s916 + $0x80] sm:$0xf] %v881
          %950 = vst [vmem:[%s916 + $0x84] sm:$0xf] %v882
          %951 = vst [vmem:[%s916 + $0x88] sm:$0xf] %v883
          %952 = vst [vmem:[%s916 + $0x8c] sm:$0xf] %v884
          %953 = vst [vmem:[%s916 + $0x90] sm:$0xf] %v885
          %954 = vst [vmem:[%s916 + $0x94] sm:$0xf] %v886
          %955 = vst [vmem:[%s916 + $0x98] sm:$0xf] %v887
          %956 = vst [vmem:[%s916 + $0x9c] sm:$0xf] %v888
          %957 = vst [vmem:[%s916 + $0xa0] sm:$0xf] %v889
          %958 = vst [vmem:[%s916 + $0xa4] sm:$0xf] %v890
          %959 = vst [vmem:[%s916 + $0xa8] sm:$0xf] %v891
          %960 = vst [vmem:[%s916 + $0xac] sm:$0xf] %v892
          %961 = vst [vmem:[%s916 + $0xb0] sm:$0xf] %v893
          %962 = vst [vmem:[%s916 + $0xb4] sm:$0xf] %v894
          %963 = vst [vmem:[%s916 + $0xb8] sm:$0xf] %v895
          %964 = vst [vmem:[%s916 + $0xbc] sm:$0xf] %v896
          %965 = vst [vmem:[%s916 + $0xc0] sm:$0xf] %v897
          %966 = vst [vmem:[%s916 + $0xc4] sm:$0xf] %v898
          %967 = vst [vmem:[%s916 + $0xc8] sm:$0xf] %v899
          %968 = vst [vmem:[%s916 + $0xcc] sm:$0xf] %v900
          %969 = vst [vmem:[%s916 + $0xd0] sm:$0xf] %v901
          %970 = vst [vmem:[%s916 + $0xd4] sm:$0xf] %v902
          %971 = vst [vmem:[%s916 + $0xd8] sm:$0xf] %v903
          %972 = vst [vmem:[%s916 + $0xdc] sm:$0xf] %v904
          %973 = vst [vmem:[%s916 + $0xe0] sm:$0xf] %v905
          %974 = vst [vmem:[%s916 + $0xe4] sm:$0xf] %v906
          %975 = vst [vmem:[%s916 + $0xe8] sm:$0xf] %v907
          %976 = vst [vmem:[%s916 + $0xec] sm:$0xf] %v908
          %977 = vst [vmem:[%s916 + $0xf0] sm:$0xf] %v909
          %978 = vst [vmem:[%s916 + $0xf4] sm:$0xf] %v910
          %979 = vst [vmem:[%s916 + $0xf8] sm:$0xf] %v911
          %980 = vst [vmem:[%s916 + $0xfc] sm:$0xf] %v912
        $region56: #{tpu_custom_call.1} parent=35 // pred_fallthru
          _
        %p981 = scmp.gt.s32.totalorder %s30, 0
        %p982 = pnand %p354, %p981
        %p983 = pneg %p982
        // Predicated region
        $region57: #{tpu_custom_call.1} parent=35 // pred_check
          _
        $region58: #{tpu_custom_call.1} parent=35 // pred_check_branch
          %985 = sbr.rel (%p982) target = $region60
        $region59: #{tpu_custom_call.1} parent=35 // pred_region
          %s986 = sshra.s32 %s353, 3
          %s987 = sand.u32 %s353, 7
          %s988 = smul.addr %s986, 4
          %s989 = scalar_lea.vmem [#allocation4], %s988
          %v990 = vld [vmem:[%s989] sm:$0xf]
          %v991 = vld [vmem:[%s989 + $0x4] sm:$0xf]
          %v992 = vld [vmem:[%s989 + $0x8] sm:$0xf]
          %v993 = vld [vmem:[%s989 + $0xc] sm:$0xf]
          %v994 = vld [vmem:[%s989 + $0x10] sm:$0xf]
          %v995 = vld [vmem:[%s989 + $0x14] sm:$0xf]
          %v996 = vld [vmem:[%s989 + $0x18] sm:$0xf]
          %v997 = vld [vmem:[%s989 + $0x1c] sm:$0xf]
          %v998 = vld [vmem:[%s989 + $0x20] sm:$0xf]
          %v999 = vld [vmem:[%s989 + $0x24] sm:$0xf]
          %v1000 = vld [vmem:[%s989 + $0x28] sm:$0xf]
          %v1001 = vld [vmem:[%s989 + $0x2c] sm:$0xf]
          %v1002 = vld [vmem:[%s989 + $0x30] sm:$0xf]
          %v1003 = vld [vmem:[%s989 + $0x34] sm:$0xf]
          %v1004 = vld [vmem:[%s989 + $0x38] sm:$0xf]
          %v1005 = vld [vmem:[%s989 + $0x3c] sm:$0xf]
          %v1006 = vld [vmem:[%s989 + $0x40] sm:$0xf]
          %v1007 = vld [vmem:[%s989 + $0x44] sm:$0xf]
          %v1008 = vld [vmem:[%s989 + $0x48] sm:$0xf]
          %v1009 = vld [vmem:[%s989 + $0x4c] sm:$0xf]
          %v1010 = vld [vmem:[%s989 + $0x50] sm:$0xf]
          %v1011 = vld [vmem:[%s989 + $0x54] sm:$0xf]
          %v1012 = vld [vmem:[%s989 + $0x58] sm:$0xf]
          %v1013 = vld [vmem:[%s989 + $0x5c] sm:$0xf]
          %v1014 = vld [vmem:[%s989 + $0x60] sm:$0xf]
          %v1015 = vld [vmem:[%s989 + $0x64] sm:$0xf]
          %v1016 = vld [vmem:[%s989 + $0x68] sm:$0xf]
          %v1017 = vld [vmem:[%s989 + $0x6c] sm:$0xf]
          %v1018 = vld [vmem:[%s989 + $0x70] sm:$0xf]
          %v1019 = vld [vmem:[%s989 + $0x74] sm:$0xf]
          %v1020 = vld [vmem:[%s989 + $0x78] sm:$0xf]
          %v1021 = vld [vmem:[%s989 + $0x7c] sm:$0xf]
          %v1022 = vld [vmem:[%s989 + $0x80] sm:$0xf]
          %v1023 = vld [vmem:[%s989 + $0x84] sm:$0xf]
          %v1024 = vld [vmem:[%s989 + $0x88] sm:$0xf]
          %v1025 = vld [vmem:[%s989 + $0x8c] sm:$0xf]
          %v1026 = vld [vmem:[%s989 + $0x90] sm:$0xf]
          %v1027 = vld [vmem:[%s989 + $0x94] sm:$0xf]
          %v1028 = vld [vmem:[%s989 + $0x98] sm:$0xf]
          %v1029 = vld [vmem:[%s989 + $0x9c] sm:$0xf]
          %v1030 = vld [vmem:[%s989 + $0xa0] sm:$0xf]
          %v1031 = vld [vmem:[%s989 + $0xa4] sm:$0xf]
          %v1032 = vld [vmem:[%s989 + $0xa8] sm:$0xf]
          %v1033 = vld [vmem:[%s989 + $0xac] sm:$0xf]
          %v1034 = vld [vmem:[%s989 + $0xb0] sm:$0xf]
          %v1035 = vld [vmem:[%s989 + $0xb4] sm:$0xf]
          %v1036 = vld [vmem:[%s989 + $0xb8] sm:$0xf]
          %v1037 = vld [vmem:[%s989 + $0xbc] sm:$0xf]
          %v1038 = vld [vmem:[%s989 + $0xc0] sm:$0xf]
          %v1039 = vld [vmem:[%s989 + $0xc4] sm:$0xf]
          %v1040 = vld [vmem:[%s989 + $0xc8] sm:$0xf]
          %v1041 = vld [vmem:[%s989 + $0xcc] sm:$0xf]
          %v1042 = vld [vmem:[%s989 + $0xd0] sm:$0xf]
          %v1043 = vld [vmem:[%s989 + $0xd4] sm:$0xf]
          %v1044 = vld [vmem:[%s989 + $0xd8] sm:$0xf]
          %v1045 = vld [vmem:[%s989 + $0xdc] sm:$0xf]
          %v1046 = vld [vmem:[%s989 + $0xe0] sm:$0xf]
          %v1047 = vld [vmem:[%s989 + $0xe4] sm:$0xf]
          %v1048 = vld [vmem:[%s989 + $0xe8] sm:$0xf]
          %v1049 = vld [vmem:[%s989 + $0xec] sm:$0xf]
          %v1050 = vld [vmem:[%s989 + $0xf0] sm:$0xf]
          %v1051 = vld [vmem:[%s989 + $0xf4] sm:$0xf]
          %v1052 = vld [vmem:[%s989 + $0xf8] sm:$0xf]
          %v1053 = vld [vmem:[%s989 + $0xfc] sm:$0xf]
          %v1054 = vld [vmem:[%s301] sm:$0xf]
          %v1055 = vld [vmem:[%s301 + $0x4] sm:$0xf]
          %v1056 = vld [vmem:[%s301 + $0x8] sm:$0xf]
          %v1057 = vld [vmem:[%s301 + $0xc] sm:$0xf]
          %v1058 = vld [vmem:[%s301 + $0x10] sm:$0xf]
          %v1059 = vld [vmem:[%s301 + $0x14] sm:$0xf]
          %v1060 = vld [vmem:[%s301 + $0x18] sm:$0xf]
          %v1061 = vld [vmem:[%s301 + $0x1c] sm:$0xf]
          %v1062 = vld [vmem:[%s301 + $0x20] sm:$0xf]
          %v1063 = vld [vmem:[%s301 + $0x24] sm:$0xf]
          %v1064 = vld [vmem:[%s301 + $0x28] sm:$0xf]
          %v1065 = vld [vmem:[%s301 + $0x2c] sm:$0xf]
          %v1066 = vld [vmem:[%s301 + $0x30] sm:$0xf]
          %v1067 = vld [vmem:[%s301 + $0x34] sm:$0xf]
          %v1068 = vld [vmem:[%s301 + $0x38] sm:$0xf]
          %v1069 = vld [vmem:[%s301 + $0x3c] sm:$0xf]
          %v1134 = vunpack.c.l.b16 %v990
          %v1135 = vunpack.c.l.b16 %v991
          %v1136 = vunpack.c.l.b16 %v992
          %v1137 = vunpack.c.l.b16 %v993
          %v1138 = vunpack.c.l.b16 %v994
          %v1139 = vunpack.c.l.b16 %v995
          %v1140 = vunpack.c.l.b16 %v996
          %v1141 = vunpack.c.l.b16 %v997
          %v1142 = vunpack.c.l.b16 %v998
          %v1143 = vunpack.c.l.b16 %v999
          %v1144 = vunpack.c.l.b16 %v1000
          %v1145 = vunpack.c.l.b16 %v1001
          %v1146 = vunpack.c.l.b16 %v1002
          %v1147 = vunpack.c.l.b16 %v1003
          %v1148 = vunpack.c.l.b16 %v1004
          %v1149 = vunpack.c.l.b16 %v1005
          %v1150 = vunpack.c.l.b16 %v1006
          %v1151 = vunpack.c.l.b16 %v1007
          %v1152 = vunpack.c.l.b16 %v1008
          %v1153 = vunpack.c.l.b16 %v1009
          %v1154 = vunpack.c.l.b16 %v1010
          %v1155 = vunpack.c.l.b16 %v1011
          %v1156 = vunpack.c.l.b16 %v1012
          %v1157 = vunpack.c.l.b16 %v1013
          %v1158 = vunpack.c.l.b16 %v1014
          %v1159 = vunpack.c.l.b16 %v1015
          %v1160 = vunpack.c.l.b16 %v1016
          %v1161 = vunpack.c.l.b16 %v1017
          %v1162 = vunpack.c.l.b16 %v1018
          %v1163 = vunpack.c.l.b16 %v1019
          %v1164 = vunpack.c.l.b16 %v1020
          %v1165 = vunpack.c.l.b16 %v1021
          %v1166 = vunpack.c.l.b16 %v1022
          %v1167 = vunpack.c.l.b16 %v1023
          %v1168 = vunpack.c.l.b16 %v1024
          %v1169 = vunpack.c.l.b16 %v1025
          %v1170 = vunpack.c.l.b16 %v1026
          %v1171 = vunpack.c.l.b16 %v1027
          %v1172 = vunpack.c.l.b16 %v1028
          %v1173 = vunpack.c.l.b16 %v1029
          %v1174 = vunpack.c.l.b16 %v1030
          %v1175 = vunpack.c.l.b16 %v1031
          %v1176 = vunpack.c.l.b16 %v1032
          %v1177 = vunpack.c.l.b16 %v1033
          %v1178 = vunpack.c.l.b16 %v1034
          %v1179 = vunpack.c.l.b16 %v1035
          %v1180 = vunpack.c.l.b16 %v1036
          %v1181 = vunpack.c.l.b16 %v1037
          %v1182 = vunpack.c.l.b16 %v1038
          %v1183 = vunpack.c.l.b16 %v1039
          %v1184 = vunpack.c.l.b16 %v1040
          %v1185 = vunpack.c.l.b16 %v1041
          %v1186 = vunpack.c.l.b16 %v1042
          %v1187 = vunpack.c.l.b16 %v1043
          %v1188 = vunpack.c.l.b16 %v1044
          %v1189 = vunpack.c.l.b16 %v1045
          %v1190 = vunpack.c.l.b16 %v1046
          %v1191 = vunpack.c.l.b16 %v1047
          %v1192 = vunpack.c.l.b16 %v1048
          %v1193 = vunpack.c.l.b16 %v1049
          %v1194 = vunpack.c.l.b16 %v1050
          %v1195 = vunpack.c.l.b16 %v1051
          %v1196 = vunpack.c.l.b16 %v1052
          %v1197 = vunpack.c.l.b16 %v1053
          %v1198 = vpack.c.b16 %v1135, %v1134
          %v1199 = vpack.c.b16 %v1137, %v1136
          %v1200 = vpack.c.b16 %v1139, %v1138
          %v1201 = vpack.c.b16 %v1141, %v1140
          %v1202 = vpack.c.b16 %v1143, %v1142
          %v1203 = vpack.c.b16 %v1145, %v1144
          %v1204 = vpack.c.b16 %v1147, %v1146
          %v1205 = vpack.c.b16 %v1149, %v1148
          %v1206 = vpack.c.b16 %v1151, %v1150
          %v1207 = vpack.c.b16 %v1153, %v1152
          %v1208 = vpack.c.b16 %v1155, %v1154
          %v1209 = vpack.c.b16 %v1157, %v1156
          %v1210 = vpack.c.b16 %v1159, %v1158
          %v1211 = vpack.c.b16 %v1161, %v1160
          %v1212 = vpack.c.b16 %v1163, %v1162
          %v1213 = vpack.c.b16 %v1165, %v1164
          %v1214 = vpack.c.b16 %v1167, %v1166
          %v1215 = vpack.c.b16 %v1169, %v1168
          %v1216 = vpack.c.b16 %v1171, %v1170
          %v1217 = vpack.c.b16 %v1173, %v1172
          %v1218 = vpack.c.b16 %v1175, %v1174
          %v1219 = vpack.c.b16 %v1177, %v1176
          %v1220 = vpack.c.b16 %v1179, %v1178
          %v1221 = vpack.c.b16 %v1181, %v1180
          %v1222 = vpack.c.b16 %v1183, %v1182
          %v1223 = vpack.c.b16 %v1185, %v1184
          %v1224 = vpack.c.b16 %v1187, %v1186
          %v1225 = vpack.c.b16 %v1189, %v1188
          %v1226 = vpack.c.b16 %v1191, %v1190
          %v1227 = vpack.c.b16 %v1193, %v1192
          %v1228 = vpack.c.b16 %v1195, %v1194
          %v1229 = vpack.c.b16 %v1197, %v1196
          %v1278 = vunpack.c.l.b16 %v1054
          %v1279 = vunpack.c.l.b16 %v1055
          %v1280 = vunpack.c.l.b16 %v1056
          %v1281 = vunpack.c.l.b16 %v1057
          %v1282 = vunpack.c.l.b16 %v1058
          %v1283 = vunpack.c.l.b16 %v1059
          %v1284 = vunpack.c.l.b16 %v1060
          %v1285 = vunpack.c.l.b16 %v1061
          %v1286 = vunpack.c.l.b16 %v1062
          %v1287 = vunpack.c.l.b16 %v1063
          %v1288 = vunpack.c.l.b16 %v1064
          %v1289 = vunpack.c.l.b16 %v1065
          %v1290 = vunpack.c.l.b16 %v1066
          %v1291 = vunpack.c.l.b16 %v1067
          %v1292 = vunpack.c.l.b16 %v1068
          %v1293 = vunpack.c.l.b16 %v1069
          %v1294 = vpack.c.b16 %v1279, %v1278
          %v1295 = vpack.c.b16 %v1281, %v1280
          %v1296 = vpack.c.b16 %v1283, %v1282
          %v1297 = vpack.c.b16 %v1285, %v1284
          %v1298 = vpack.c.b16 %v1287, %v1286
          %v1299 = vpack.c.b16 %v1289, %v1288
          %v1300 = vpack.c.b16 %v1291, %v1290
          %v1301 = vpack.c.b16 %v1293, %v1292
          %1310 = vmatpush.bf16.msra.mxu0 %v1301
          %1311 = vmatpush.bf16.msra.mxu0 %v1300
          %1312 = vmatpush.bf16.msra.mxu0 %v1299
          %1313 = vmatpush.bf16.msra.mxu0 %v1298
          %1314 = vmatpush.bf16.msra.mxu0 %v1297
          %1315 = vmatpush.bf16.msra.mxu0 %v1296
          %1316 = vmatpush.bf16.msra.mxu0 %v1295
          %1317 = vmatpush.bf16.msra.mxu0 %v1294
          %1318 = vmatmul.bf16.gmra.mxu0 %v1198
          %v1319 = vpop.f32.mrf.mxu0
          %v1320 = vadd.f32 0.0, %v1319
          %v1321 = vpop.f32.mrf.mxu0
          %v1322 = vadd.f32 0.0, %v1321
          %1323 = vmatmul.bf16.gmra.mxu0 %v1199
          %v1324 = vpop.f32.mrf.mxu0
          %v1325 = vadd.f32 0.0, %v1324
          %v1326 = vpop.f32.mrf.mxu0
          %v1327 = vadd.f32 0.0, %v1326
          %1328 = vmatmul.bf16.gmra.mxu0 %v1200
          %v1329 = vpop.f32.mrf.mxu0
          %v1330 = vadd.f32 0.0, %v1329
          %v1331 = vpop.f32.mrf.mxu0
          %v1332 = vadd.f32 0.0, %v1331
          %1333 = vmatmul.bf16.gmra.mxu0 %v1201
          %v1334 = vpop.f32.mrf.mxu0
          %v1335 = vadd.f32 0.0, %v1334
          %v1336 = vpop.f32.mrf.mxu0
          %v1337 = vadd.f32 0.0, %v1336
          %1338 = vmatmul.bf16.gmra.mxu0 %v1202
          %v1339 = vpop.f32.mrf.mxu0
          %v1340 = vadd.f32 0.0, %v1339
          %v1341 = vpop.f32.mrf.mxu0
          %v1342 = vadd.f32 0.0, %v1341
          %1343 = vmatmul.bf16.gmra.mxu0 %v1203
          %v1344 = vpop.f32.mrf.mxu0
          %v1345 = vadd.f32 0.0, %v1344
          %v1346 = vpop.f32.mrf.mxu0
          %v1347 = vadd.f32 0.0, %v1346
          %1348 = vmatmul.bf16.gmra.mxu0 %v1204
          %v1349 = vpop.f32.mrf.mxu0
          %v1350 = vadd.f32 0.0, %v1349
          %v1351 = vpop.f32.mrf.mxu0
          %v1352 = vadd.f32 0.0, %v1351
          %1353 = vmatmul.bf16.gmra.mxu0 %v1205
          %v1354 = vpop.f32.mrf.mxu0
          %v1355 = vadd.f32 0.0, %v1354
          %v1356 = vpop.f32.mrf.mxu0
          %v1357 = vadd.f32 0.0, %v1356
          %1358 = vmatmul.bf16.gmra.mxu0 %v1206
          %v1359 = vpop.f32.mrf.mxu0
          %v1360 = vadd.f32 0.0, %v1359
          %v1361 = vpop.f32.mrf.mxu0
          %v1362 = vadd.f32 0.0, %v1361
          %1363 = vmatmul.bf16.gmra.mxu0 %v1207
          %v1364 = vpop.f32.mrf.mxu0
          %v1365 = vadd.f32 0.0, %v1364
          %v1366 = vpop.f32.mrf.mxu0
          %v1367 = vadd.f32 0.0, %v1366
          %1368 = vmatmul.bf16.gmra.mxu0 %v1208
          %v1369 = vpop.f32.mrf.mxu0
          %v1370 = vadd.f32 0.0, %v1369
          %v1371 = vpop.f32.mrf.mxu0
          %v1372 = vadd.f32 0.0, %v1371
          %1373 = vmatmul.bf16.gmra.mxu0 %v1209
          %v1374 = vpop.f32.mrf.mxu0
          %v1375 = vadd.f32 0.0, %v1374
          %v1376 = vpop.f32.mrf.mxu0
          %v1377 = vadd.f32 0.0, %v1376
          %1378 = vmatmul.bf16.gmra.mxu0 %v1210
          %v1379 = vpop.f32.mrf.mxu0
          %v1380 = vadd.f32 0.0, %v1379
          %v1381 = vpop.f32.mrf.mxu0
          %v1382 = vadd.f32 0.0, %v1381
          %1383 = vmatmul.bf16.gmra.mxu0 %v1211
          %v1384 = vpop.f32.mrf.mxu0
          %v1385 = vadd.f32 0.0, %v1384
          %v1386 = vpop.f32.mrf.mxu0
          %v1387 = vadd.f32 0.0, %v1386
          %1388 = vmatmul.bf16.gmra.mxu0 %v1212
          %v1389 = vpop.f32.mrf.mxu0
          %v1390 = vadd.f32 0.0, %v1389
          %v1391 = vpop.f32.mrf.mxu0
          %v1392 = vadd.f32 0.0, %v1391
          %1393 = vmatmul.bf16.gmra.mxu0 %v1213
          %v1394 = vpop.f32.mrf.mxu0
          %v1395 = vadd.f32 0.0, %v1394
          %v1396 = vpop.f32.mrf.mxu0
          %v1397 = vadd.f32 0.0, %v1396
          %1398 = vmatmul.bf16.gmra.mxu0 %v1214
          %v1399 = vpop.f32.mrf.mxu0
          %v1400 = vadd.f32 0.0, %v1399
          %v1401 = vpop.f32.mrf.mxu0
          %v1402 = vadd.f32 0.0, %v1401
          %1403 = vmatmul.bf16.gmra.mxu0 %v1215
          %v1404 = vpop.f32.mrf.mxu0
          %v1405 = vadd.f32 0.0, %v1404
          %v1406 = vpop.f32.mrf.mxu0
          %v1407 = vadd.f32 0.0, %v1406
          %1408 = vmatmul.bf16.gmra.mxu0 %v1216
          %v1409 = vpop.f32.mrf.mxu0
          %v1410 = vadd.f32 0.0, %v1409
          %v1411 = vpop.f32.mrf.mxu0
          %v1412 = vadd.f32 0.0, %v1411
          %1413 = vmatmul.bf16.gmra.mxu0 %v1217
          %v1414 = vpop.f32.mrf.mxu0
          %v1415 = vadd.f32 0.0, %v1414
          %v1416 = vpop.f32.mrf.mxu0
          %v1417 = vadd.f32 0.0, %v1416
          %1418 = vmatmul.bf16.gmra.mxu0 %v1218
          %v1419 = vpop.f32.mrf.mxu0
          %v1420 = vadd.f32 0.0, %v1419
          %v1421 = vpop.f32.mrf.mxu0
          %v1422 = vadd.f32 0.0, %v1421
          %1423 = vmatmul.bf16.gmra.mxu0 %v1219
          %v1424 = vpop.f32.mrf.mxu0
          %v1425 = vadd.f32 0.0, %v1424
          %v1426 = vpop.f32.mrf.mxu0
          %v1427 = vadd.f32 0.0, %v1426
          %1428 = vmatmul.bf16.gmra.mxu0 %v1220
          %v1429 = vpop.f32.mrf.mxu0
          %v1430 = vadd.f32 0.0, %v1429
          %v1431 = vpop.f32.mrf.mxu0
          %v1432 = vadd.f32 0.0, %v1431
          %1433 = vmatmul.bf16.gmra.mxu0 %v1221
          %v1434 = vpop.f32.mrf.mxu0
          %v1435 = vadd.f32 0.0, %v1434
          %v1436 = vpop.f32.mrf.mxu0
          %v1437 = vadd.f32 0.0, %v1436
          %1438 = vmatmul.bf16.gmra.mxu0 %v1222
          %v1439 = vpop.f32.mrf.mxu0
          %v1440 = vadd.f32 0.0, %v1439
          %v1441 = vpop.f32.mrf.mxu0
          %v1442 = vadd.f32 0.0, %v1441
          %1443 = vmatmul.bf16.gmra.mxu0 %v1223
          %v1444 = vpop.f32.mrf.mxu0
          %v1445 = vadd.f32 0.0, %v1444
          %v1446 = vpop.f32.mrf.mxu0
          %v1447 = vadd.f32 0.0, %v1446
          %1448 = vmatmul.bf16.gmra.mxu0 %v1224
          %v1449 = vpop.f32.mrf.mxu0
          %v1450 = vadd.f32 0.0, %v1449
          %v1451 = vpop.f32.mrf.mxu0
          %v1452 = vadd.f32 0.0, %v1451
          %1453 = vmatmul.bf16.gmra.mxu0 %v1225
          %v1454 = vpop.f32.mrf.mxu0
          %v1455 = vadd.f32 0.0, %v1454
          %v1456 = vpop.f32.mrf.mxu0
          %v1457 = vadd.f32 0.0, %v1456
          %1458 = vmatmul.bf16.gmra.mxu0 %v1226
          %v1459 = vpop.f32.mrf.mxu0
          %v1460 = vadd.f32 0.0, %v1459
          %v1461 = vpop.f32.mrf.mxu0
          %v1462 = vadd.f32 0.0, %v1461
          %1463 = vmatmul.bf16.gmra.mxu0 %v1227
          %v1464 = vpop.f32.mrf.mxu0
          %v1465 = vadd.f32 0.0, %v1464
          %v1466 = vpop.f32.mrf.mxu0
          %v1467 = vadd.f32 0.0, %v1466
          %1468 = vmatmul.bf16.gmra.mxu0 %v1228
          %v1469 = vpop.f32.mrf.mxu0
          %v1470 = vadd.f32 0.0, %v1469
          %v1471 = vpop.f32.mrf.mxu0
          %v1472 = vadd.f32 0.0, %v1471
          %1473 = vmatmul.bf16.gmra.mxu0 %v1229
          %v1474 = vpop.f32.mrf.mxu0
          %v1475 = vadd.f32 0.0, %v1474
          %v1476 = vpop.f32.mrf.mxu0
          %v1477 = vadd.f32 0.0, %v1476
          %1478 = vdwg.mxu0
          %v1479 = vpack.c.bf16 %v1320, %v1320
          %v1480 = vpack.c.bf16 %v1322, %v1322
          %v1481 = vpack.c.bf16 %v1325, %v1325
          %v1482 = vpack.c.bf16 %v1327, %v1327
          %v1483 = vpack.c.bf16 %v1330, %v1330
          %v1484 = vpack.c.bf16 %v1332, %v1332
          %v1485 = vpack.c.bf16 %v1335, %v1335
          %v1486 = vpack.c.bf16 %v1337, %v1337
          %v1487 = vpack.c.bf16 %v1340, %v1340
          %v1488 = vpack.c.bf16 %v1342, %v1342
          %v1489 = vpack.c.bf16 %v1345, %v1345
          %v1490 = vpack.c.bf16 %v1347, %v1347
          %v1491 = vpack.c.bf16 %v1350, %v1350
          %v1492 = vpack.c.bf16 %v1352, %v1352
          %v1493 = vpack.c.bf16 %v1355, %v1355
          %v1494 = vpack.c.bf16 %v1357, %v1357
          %v1495 = vpack.c.bf16 %v1360, %v1360
          %v1496 = vpack.c.bf16 %v1362, %v1362
          %v1497 = vpack.c.bf16 %v1365, %v1365
          %v1498 = vpack.c.bf16 %v1367, %v1367
          %v1499 = vpack.c.bf16 %v1370, %v1370
          %v1500 = vpack.c.bf16 %v1372, %v1372
          %v1501 = vpack.c.bf16 %v1375, %v1375
          %v1502 = vpack.c.bf16 %v1377, %v1377
          %v1503 = vpack.c.bf16 %v1380, %v1380
          %v1504 = vpack.c.bf16 %v1382, %v1382
          %v1505 = vpack.c.bf16 %v1385, %v1385
          %v1506 = vpack.c.bf16 %v1387, %v1387
          %v1507 = vpack.c.bf16 %v1390, %v1390
          %v1508 = vpack.c.bf16 %v1392, %v1392
          %v1509 = vpack.c.bf16 %v1395, %v1395
          %v1510 = vpack.c.bf16 %v1397, %v1397
          %v1511 = vpack.c.bf16 %v1400, %v1400
          %v1512 = vpack.c.bf16 %v1402, %v1402
          %v1513 = vpack.c.bf16 %v1405, %v1405
          %v1514 = vpack.c.bf16 %v1407, %v1407
          %v1515 = vpack.c.bf16 %v1410, %v1410
          %v1516 = vpack.c.bf16 %v1412, %v1412
          %v1517 = vpack.c.bf16 %v1415, %v1415
          %v1518 = vpack.c.bf16 %v1417, %v1417
          %v1519 = vpack.c.bf16 %v1420, %v1420
          %v1520 = vpack.c.bf16 %v1422, %v1422
          %v1521 = vpack.c.bf16 %v1425, %v1425
          %v1522 = vpack.c.bf16 %v1427, %v1427
          %v1523 = vpack.c.bf16 %v1430, %v1430
          %v1524 = vpack.c.bf16 %v1432, %v1432
          %v1525 = vpack.c.bf16 %v1435, %v1435
          %v1526 = vpack.c.bf16 %v1437, %v1437
          %v1527 = vpack.c.bf16 %v1440, %v1440
          %v1528 = vpack.c.bf16 %v1442, %v1442
          %v1529 = vpack.c.bf16 %v1445, %v1445
          %v1530 = vpack.c.bf16 %v1447, %v1447
          %v1531 = vpack.c.bf16 %v1450, %v1450
          %v1532 = vpack.c.bf16 %v1452, %v1452
          %v1533 = vpack.c.bf16 %v1455, %v1455
          %v1534 = vpack.c.bf16 %v1457, %v1457
          %v1535 = vpack.c.bf16 %v1460, %v1460
          %v1536 = vpack.c.bf16 %v1462, %v1462
          %v1537 = vpack.c.bf16 %v1465, %v1465
          %v1538 = vpack.c.bf16 %v1467, %v1467
          %v1539 = vpack.c.bf16 %v1470, %v1470
          %v1540 = vpack.c.bf16 %v1472, %v1472
          %v1541 = vpack.c.bf16 %v1475, %v1475
          %v1542 = vpack.c.bf16 %v1477, %v1477
          %s1543 = smul.addr %s986, 4
          %s1544 = scalar_lea.vmem [#allocation3], %s1543
          %1545 = vst [vmem:[%s1544] sm:$0xf] %v1479
          %1546 = vst [vmem:[%s1544 + $0x4] sm:$0xf] %v1480
          %1547 = vst [vmem:[%s1544 + $0x8] sm:$0xf] %v1481
          %1548 = vst [vmem:[%s1544 + $0xc] sm:$0xf] %v1482
          %1549 = vst [vmem:[%s1544 + $0x10] sm:$0xf] %v1483
          %1550 = vst [vmem:[%s1544 + $0x14] sm:$0xf] %v1484
          %1551 = vst [vmem:[%s1544 + $0x18] sm:$0xf] %v1485
          %1552 = vst [vmem:[%s1544 + $0x1c] sm:$0xf] %v1486
          %1553 = vst [vmem:[%s1544 + $0x20] sm:$0xf] %v1487
          %1554 = vst [vmem:[%s1544 + $0x24] sm:$0xf] %v1488
          %1555 = vst [vmem:[%s1544 + $0x28] sm:$0xf] %v1489
          %1556 = vst [vmem:[%s1544 + $0x2c] sm:$0xf] %v1490
          %1557 = vst [vmem:[%s1544 + $0x30] sm:$0xf] %v1491
          %1558 = vst [vmem:[%s1544 + $0x34] sm:$0xf] %v1492
          %1559 = vst [vmem:[%s1544 + $0x38] sm:$0xf] %v1493
          %1560 = vst [vmem:[%s1544 + $0x3c] sm:$0xf] %v1494
          %1561 = vst [vmem:[%s1544 + $0x40] sm:$0xf] %v1495
          %1562 = vst [vmem:[%s1544 + $0x44] sm:$0xf] %v1496
          %1563 = vst [vmem:[%s1544 + $0x48] sm:$0xf] %v1497
          %1564 = vst [vmem:[%s1544 + $0x4c] sm:$0xf] %v1498
          %1565 = vst [vmem:[%s1544 + $0x50] sm:$0xf] %v1499
          %1566 = vst [vmem:[%s1544 + $0x54] sm:$0xf] %v1500
          %1567 = vst [vmem:[%s1544 + $0x58] sm:$0xf] %v1501
          %1568 = vst [vmem:[%s1544 + $0x5c] sm:$0xf] %v1502
          %1569 = vst [vmem:[%s1544 + $0x60] sm:$0xf] %v1503
          %1570 = vst [vmem:[%s1544 + $0x64] sm:$0xf] %v1504
          %1571 = vst [vmem:[%s1544 + $0x68] sm:$0xf] %v1505
          %1572 = vst [vmem:[%s1544 + $0x6c] sm:$0xf] %v1506
          %1573 = vst [vmem:[%s1544 + $0x70] sm:$0xf] %v1507
          %1574 = vst [vmem:[%s1544 + $0x74] sm:$0xf] %v1508
          %1575 = vst [vmem:[%s1544 + $0x78] sm:$0xf] %v1509
          %1576 = vst [vmem:[%s1544 + $0x7c] sm:$0xf] %v1510
          %1577 = vst [vmem:[%s1544 + $0x80] sm:$0xf] %v1511
          %1578 = vst [vmem:[%s1544 + $0x84] sm:$0xf] %v1512
          %1579 = vst [vmem:[%s1544 + $0x88] sm:$0xf] %v1513
          %1580 = vst [vmem:[%s1544 + $0x8c] sm:$0xf] %v1514
          %1581 = vst [vmem:[%s1544 + $0x90] sm:$0xf] %v1515
          %1582 = vst [vmem:[%s1544 + $0x94] sm:$0xf] %v1516
          %1583 = vst [vmem:[%s1544 + $0x98] sm:$0xf] %v1517
          %1584 = vst [vmem:[%s1544 + $0x9c] sm:$0xf] %v1518
          %1585 = vst [vmem:[%s1544 + $0xa0] sm:$0xf] %v1519
          %1586 = vst [vmem:[%s1544 + $0xa4] sm:$0xf] %v1520
          %1587 = vst [vmem:[%s1544 + $0xa8] sm:$0xf] %v1521
          %1588 = vst [vmem:[%s1544 + $0xac] sm:$0xf] %v1522
          %1589 = vst [vmem:[%s1544 + $0xb0] sm:$0xf] %v1523
          %1590 = vst [vmem:[%s1544 + $0xb4] sm:$0xf] %v1524
          %1591 = vst [vmem:[%s1544 + $0xb8] sm:$0xf] %v1525
          %1592 = vst [vmem:[%s1544 + $0xbc] sm:$0xf] %v1526
          %1593 = vst [vmem:[%s1544 + $0xc0] sm:$0xf] %v1527
          %1594 = vst [vmem:[%s1544 + $0xc4] sm:$0xf] %v1528
          %1595 = vst [vmem:[%s1544 + $0xc8] sm:$0xf] %v1529
          %1596 = vst [vmem:[%s1544 + $0xcc] sm:$0xf] %v1530
          %1597 = vst [vmem:[%s1544 + $0xd0] sm:$0xf] %v1531
          %1598 = vst [vmem:[%s1544 + $0xd4] sm:$0xf] %v1532
          %1599 = vst [vmem:[%s1544 + $0xd8] sm:$0xf] %v1533
          %1600 = vst [vmem:[%s1544 + $0xdc] sm:$0xf] %v1534
          %1601 = vst [vmem:[%s1544 + $0xe0] sm:$0xf] %v1535
          %1602 = vst [vmem:[%s1544 + $0xe4] sm:$0xf] %v1536
          %1603 = vst [vmem:[%s1544 + $0xe8] sm:$0xf] %v1537
          %1604 = vst [vmem:[%s1544 + $0xec] sm:$0xf] %v1538
          %1605 = vst [vmem:[%s1544 + $0xf0] sm:$0xf] %v1539
          %1606 = vst [vmem:[%s1544 + $0xf4] sm:$0xf] %v1540
          %1607 = vst [vmem:[%s1544 + $0xf8] sm:$0xf] %v1541
          %1608 = vst [vmem:[%s1544 + $0xfc] sm:$0xf] %v1542
        $region60: #{tpu_custom_call.1} parent=35 // pred_fallthru
          _
        %p1609 = scmp.eq.s32.totalorder %s32, 0
        // Predicated region
        $region61: #{tpu_custom_call.1} parent=35 // pred_check
          %p1610 = pneg %p1609
        $region62: #{tpu_custom_call.1} parent=35 // pred_check_branch
          %1612 = sbr.rel (%p1610) target = $region64
        $region63: #{tpu_custom_call.1} parent=35 // pred_region
          %1613 = vst [vmem:[#allocation2] sm:$0xff] 0.0
          %1614 = vst [vmem:[#allocation2 + $0x8] sm:$0xff] 0.0
          %1615 = vst [vmem:[#allocation2 + $0x10] sm:$0xff] 0.0
          %1616 = vst [vmem:[#allocation2 + $0x18] sm:$0xff] 0.0
          %1617 = vst [vmem:[#allocation2 + $0x20] sm:$0xff] 0.0
          %1618 = vst [vmem:[#allocation2 + $0x28] sm:$0xff] 0.0
          %1619 = vst [vmem:[#allocation2 + $0x30] sm:$0xff] 0.0
          %1620 = vst [vmem:[#allocation2 + $0x38] sm:$0xff] 0.0
          %1621 = vst [vmem:[#allocation2 + $0x40] sm:$0xff] 0.0
          %1622 = vst [vmem:[#allocation2 + $0x48] sm:$0xff] 0.0
          %1623 = vst [vmem:[#allocation2 + $0x50] sm:$0xff] 0.0
          %1624 = vst [vmem:[#allocation2 + $0x58] sm:$0xff] 0.0
          %1625 = vst [vmem:[#allocation2 + $0x60] sm:$0xff] 0.0
          %1626 = vst [vmem:[#allocation2 + $0x68] sm:$0xff] 0.0
          %1627 = vst [vmem:[#allocation2 + $0x70] sm:$0xff] 0.0
          %1628 = vst [vmem:[#allocation2 + $0x78] sm:$0xff] 0.0
          %1629 = vst [vmem:[#allocation2 + $0x80] sm:$0xff] 0.0
          %1630 = vst [vmem:[#allocation2 + $0x88] sm:$0xff] 0.0
          %1631 = vst [vmem:[#allocation2 + $0x90] sm:$0xff] 0.0
          %1632 = vst [vmem:[#allocation2 + $0x98] sm:$0xff] 0.0
          %1633 = vst [vmem:[#allocation2 + $0xa0] sm:$0xff] 0.0
          %1634 = vst [vmem:[#allocation2 + $0xa8] sm:$0xff] 0.0
          %1635 = vst [vmem:[#allocation2 + $0xb0] sm:$0xff] 0.0
          %1636 = vst [vmem:[#allocation2 + $0xb8] sm:$0xff] 0.0
          %1637 = vst [vmem:[#allocation2 + $0xc0] sm:$0xff] 0.0
          %1638 = vst [vmem:[#allocation2 + $0xc8] sm:$0xff] 0.0
          %1639 = vst [vmem:[#allocation2 + $0xd0] sm:$0xff] 0.0
          %1640 = vst [vmem:[#allocation2 + $0xd8] sm:$0xff] 0.0
          %1641 = vst [vmem:[#allocation2 + $0xe0] sm:$0xff] 0.0
          %1642 = vst [vmem:[#allocation2 + $0xe8] sm:$0xff] 0.0
          %1643 = vst [vmem:[#allocation2 + $0xf0] sm:$0xff] 0.0
          %1644 = vst [vmem:[#allocation2 + $0xf8] sm:$0xff] 0.0
          %1645 = vst [vmem:[#allocation2 + $0x100] sm:$0xff] 0.0
          %1646 = vst [vmem:[#allocation2 + $0x108] sm:$0xff] 0.0
          %1647 = vst [vmem:[#allocation2 + $0x110] sm:$0xff] 0.0
          %1648 = vst [vmem:[#allocation2 + $0x118] sm:$0xff] 0.0
          %1649 = vst [vmem:[#allocation2 + $0x120] sm:$0xff] 0.0
          %1650 = vst [vmem:[#allocation2 + $0x128] sm:$0xff] 0.0
          %1651 = vst [vmem:[#allocation2 + $0x130] sm:$0xff] 0.0
          %1652 = vst [vmem:[#allocation2 + $0x138] sm:$0xff] 0.0
          %1653 = vst [vmem:[#allocation2 + $0x140] sm:$0xff] 0.0
          %1654 = vst [vmem:[#allocation2 + $0x148] sm:$0xff] 0.0
          %1655 = vst [vmem:[#allocation2 + $0x150] sm:$0xff] 0.0
          %1656 = vst [vmem:[#allocation2 + $0x158] sm:$0xff] 0.0
          %1657 = vst [vmem:[#allocation2 + $0x160] sm:$0xff] 0.0
          %1658 = vst [vmem:[#allocation2 + $0x168] sm:$0xff] 0.0
          %1659 = vst [vmem:[#allocation2 + $0x170] sm:$0xff] 0.0
          %1660 = vst [vmem:[#allocation2 + $0x178] sm:$0xff] 0.0
          %1661 = vst [vmem:[#allocation2 + $0x180] sm:$0xff] 0.0
          %1662 = vst [vmem:[#allocation2 + $0x188] sm:$0xff] 0.0
          %1663 = vst [vmem:[#allocation2 + $0x190] sm:$0xff] 0.0
          %1664 = vst [vmem:[#allocation2 + $0x198] sm:$0xff] 0.0
          %1665 = vst [vmem:[#allocation2 + $0x1a0] sm:$0xff] 0.0
          %1666 = vst [vmem:[#allocation2 + $0x1a8] sm:$0xff] 0.0
          %1667 = vst [vmem:[#allocation2 + $0x1b0] sm:$0xff] 0.0
          %1668 = vst [vmem:[#allocation2 + $0x1b8] sm:$0xff] 0.0
          %1669 = vst [vmem:[#allocation2 + $0x1c0] sm:$0xff] 0.0
          %1670 = vst [vmem:[#allocation2 + $0x1c8] sm:$0xff] 0.0
          %1671 = vst [vmem:[#allocation2 + $0x1d0] sm:$0xff] 0.0
          %1672 = vst [vmem:[#allocation2 + $0x1d8] sm:$0xff] 0.0
          %1673 = vst [vmem:[#allocation2 + $0x1e0] sm:$0xff] 0.0
          %1674 = vst [vmem:[#allocation2 + $0x1e8] sm:$0xff] 0.0
          %1675 = vst [vmem:[#allocation2 + $0x1f0] sm:$0xff] 0.0
          %1676 = vst [vmem:[#allocation2 + $0x1f8] sm:$0xff] 0.0
        $region64: #{tpu_custom_call.1} parent=35 // pred_fallthru
          _
        %s1677 = sshra.s32 %s352, 3
        %s1678 = sand.u32 %s352, 7
        %s1679 = smul.u32 %s1677, 4
        %s1680 = smul.addr %s1679, 4
        %s1681 = scalar_lea.vmem [#allocation5], %s1680
        %v1682 = vld [vmem:[%s1681] sm:$0xff]
        %v1683 = vld [vmem:[%s1681 + $0x8] sm:$0xff]
        %v1684 = vld [vmem:[%s1681 + $0x10] sm:$0xff]
        %v1685 = vld [vmem:[%s1681 + $0x18] sm:$0xff]
        %v1686 = vld [vmem:[%s1681 + $0x20] sm:$0xff]
        %v1687 = vld [vmem:[%s1681 + $0x28] sm:$0xff]
        %v1688 = vld [vmem:[%s1681 + $0x30] sm:$0xff]
        %v1689 = vld [vmem:[%s1681 + $0x38] sm:$0xff]
        %v1690 = vld [vmem:[%s1681 + $0x40] sm:$0xff]
        %v1691 = vld [vmem:[%s1681 + $0x48] sm:$0xff]
        %v1692 = vld [vmem:[%s1681 + $0x50] sm:$0xff]
        %v1693 = vld [vmem:[%s1681 + $0x58] sm:$0xff]
        %v1694 = vld [vmem:[%s1681 + $0x60] sm:$0xff]
        %v1695 = vld [vmem:[%s1681 + $0x68] sm:$0xff]
        %v1696 = vld [vmem:[%s1681 + $0x70] sm:$0xff]
        %v1697 = vld [vmem:[%s1681 + $0x78] sm:$0xff]
        %v1698 = vld [vmem:[%s1681 + $0x80] sm:$0xff]
        %v1699 = vld [vmem:[%s1681 + $0x88] sm:$0xff]
        %v1700 = vld [vmem:[%s1681 + $0x90] sm:$0xff]
        %v1701 = vld [vmem:[%s1681 + $0x98] sm:$0xff]
        %v1702 = vld [vmem:[%s1681 + $0xa0] sm:$0xff]
        %v1703 = vld [vmem:[%s1681 + $0xa8] sm:$0xff]
        %v1704 = vld [vmem:[%s1681 + $0xb0] sm:$0xff]
        %v1705 = vld [vmem:[%s1681 + $0xb8] sm:$0xff]
        %v1706 = vld [vmem:[%s1681 + $0xc0] sm:$0xff]
        %v1707 = vld [vmem:[%s1681 + $0xc8] sm:$0xff]
        %v1708 = vld [vmem:[%s1681 + $0xd0] sm:$0xff]
        %v1709 = vld [vmem:[%s1681 + $0xd8] sm:$0xff]
        %v1710 = vld [vmem:[%s1681 + $0xe0] sm:$0xff]
        %v1711 = vld [vmem:[%s1681 + $0xe8] sm:$0xff]
        %v1712 = vld [vmem:[%s1681 + $0xf0] sm:$0xff]
        %v1713 = vld [vmem:[%s1681 + $0xf8] sm:$0xff]
        %v1714 = vld [vmem:[%s1681 + $0x100] sm:$0xff]
        %v1715 = vld [vmem:[%s1681 + $0x108] sm:$0xff]
        %v1716 = vld [vmem:[%s1681 + $0x110] sm:$0xff]
        %v1717 = vld [vmem:[%s1681 + $0x118] sm:$0xff]
        %v1718 = vld [vmem:[%s1681 + $0x120] sm:$0xff]
        %v1719 = vld [vmem:[%s1681 + $0x128] sm:$0xff]
        %v1720 = vld [vmem:[%s1681 + $0x130] sm:$0xff]
        %v1721 = vld [vmem:[%s1681 + $0x138] sm:$0xff]
        %v1722 = vld [vmem:[%s1681 + $0x140] sm:$0xff]
        %v1723 = vld [vmem:[%s1681 + $0x148] sm:$0xff]
        %v1724 = vld [vmem:[%s1681 + $0x150] sm:$0xff]
        %v1725 = vld [vmem:[%s1681 + $0x158] sm:$0xff]
        %v1726 = vld [vmem:[%s1681 + $0x160] sm:$0xff]
        %v1727 = vld [vmem:[%s1681 + $0x168] sm:$0xff]
        %v1728 = vld [vmem:[%s1681 + $0x170] sm:$0xff]
        %v1729 = vld [vmem:[%s1681 + $0x178] sm:$0xff]
        %v1730 = vld [vmem:[%s1681 + $0x180] sm:$0xff]
        %v1731 = vld [vmem:[%s1681 + $0x188] sm:$0xff]
        %v1732 = vld [vmem:[%s1681 + $0x190] sm:$0xff]
        %v1733 = vld [vmem:[%s1681 + $0x198] sm:$0xff]
        %v1734 = vld [vmem:[%s1681 + $0x1a0] sm:$0xff]
        %v1735 = vld [vmem:[%s1681 + $0x1a8] sm:$0xff]
        %v1736 = vld [vmem:[%s1681 + $0x1b0] sm:$0xff]
        %v1737 = vld [vmem:[%s1681 + $0x1b8] sm:$0xff]
        %v1738 = vld [vmem:[%s1681 + $0x1c0] sm:$0xff]
        %v1739 = vld [vmem:[%s1681 + $0x1c8] sm:$0xff]
        %v1740 = vld [vmem:[%s1681 + $0x1d0] sm:$0xff]
        %v1741 = vld [vmem:[%s1681 + $0x1d8] sm:$0xff]
        %v1742 = vld [vmem:[%s1681 + $0x1e0] sm:$0xff]
        %v1743 = vld [vmem:[%s1681 + $0x1e8] sm:$0xff]
        %v1744 = vld [vmem:[%s1681 + $0x1f0] sm:$0xff]
        %v1745 = vld [vmem:[%s1681 + $0x1f8] sm:$0xff]
        %v1746 = vld [vmem:[%s1681 + $0x200] sm:$0xff]
        %v1747 = vld [vmem:[%s1681 + $0x208] sm:$0xff]
        %v1748 = vld [vmem:[%s1681 + $0x210] sm:$0xff]
        %v1749 = vld [vmem:[%s1681 + $0x218] sm:$0xff]
        %v1750 = vld [vmem:[%s1681 + $0x220] sm:$0xff]
        %v1751 = vld [vmem:[%s1681 + $0x228] sm:$0xff]
        %v1752 = vld [vmem:[%s1681 + $0x230] sm:$0xff]
        %v1753 = vld [vmem:[%s1681 + $0x238] sm:$0xff]
        %v1754 = vld [vmem:[%s1681 + $0x240] sm:$0xff]
        %v1755 = vld [vmem:[%s1681 + $0x248] sm:$0xff]
        %v1756 = vld [vmem:[%s1681 + $0x250] sm:$0xff]
        %v1757 = vld [vmem:[%s1681 + $0x258] sm:$0xff]
        %v1758 = vld [vmem:[%s1681 + $0x260] sm:$0xff]
        %v1759 = vld [vmem:[%s1681 + $0x268] sm:$0xff]
        %v1760 = vld [vmem:[%s1681 + $0x270] sm:$0xff]
        %v1761 = vld [vmem:[%s1681 + $0x278] sm:$0xff]
        %v1762 = vld [vmem:[%s1681 + $0x280] sm:$0xff]
        %v1763 = vld [vmem:[%s1681 + $0x288] sm:$0xff]
        %v1764 = vld [vmem:[%s1681 + $0x290] sm:$0xff]
        %v1765 = vld [vmem:[%s1681 + $0x298] sm:$0xff]
        %v1766 = vld [vmem:[%s1681 + $0x2a0] sm:$0xff]
        %v1767 = vld [vmem:[%s1681 + $0x2a8] sm:$0xff]
        %v1768 = vld [vmem:[%s1681 + $0x2b0] sm:$0xff]
        %v1769 = vld [vmem:[%s1681 + $0x2b8] sm:$0xff]
        %v1770 = vld [vmem:[%s1681 + $0x2c0] sm:$0xff]
        %v1771 = vld [vmem:[%s1681 + $0x2c8] sm:$0xff]
        %v1772 = vld [vmem:[%s1681 + $0x2d0] sm:$0xff]
        %v1773 = vld [vmem:[%s1681 + $0x2d8] sm:$0xff]
        %v1774 = vld [vmem:[%s1681 + $0x2e0] sm:$0xff]
        %v1775 = vld [vmem:[%s1681 + $0x2e8] sm:$0xff]
        %v1776 = vld [vmem:[%s1681 + $0x2f0] sm:$0xff]
        %v1777 = vld [vmem:[%s1681 + $0x2f8] sm:$0xff]
        %v1778 = vld [vmem:[%s1681 + $0x300] sm:$0xff]
        %v1779 = vld [vmem:[%s1681 + $0x308] sm:$0xff]
        %v1780 = vld [vmem:[%s1681 + $0x310] sm:$0xff]
        %v1781 = vld [vmem:[%s1681 + $0x318] sm:$0xff]
        %v1782 = vld [vmem:[%s1681 + $0x320] sm:$0xff]
        %v1783 = vld [vmem:[%s1681 + $0x328] sm:$0xff]
        %v1784 = vld [vmem:[%s1681 + $0x330] sm:$0xff]
        %v1785 = vld [vmem:[%s1681 + $0x338] sm:$0xff]
        %v1786 = vld [vmem:[%s1681 + $0x340] sm:$0xff]
        %v1787 = vld [vmem:[%s1681 + $0x348] sm:$0xff]
        %v1788 = vld [vmem:[%s1681 + $0x350] sm:$0xff]
        %v1789 = vld [vmem:[%s1681 + $0x358] sm:$0xff]
        %v1790 = vld [vmem:[%s1681 + $0x360] sm:$0xff]
        %v1791 = vld [vmem:[%s1681 + $0x368] sm:$0xff]
        %v1792 = vld [vmem:[%s1681 + $0x370] sm:$0xff]
        %v1793 = vld [vmem:[%s1681 + $0x378] sm:$0xff]
        %v1794 = vld [vmem:[%s1681 + $0x380] sm:$0xff]
        %v1795 = vld [vmem:[%s1681 + $0x388] sm:$0xff]
        %v1796 = vld [vmem:[%s1681 + $0x390] sm:$0xff]
        %v1797 = vld [vmem:[%s1681 + $0x398] sm:$0xff]
        %v1798 = vld [vmem:[%s1681 + $0x3a0] sm:$0xff]
        %v1799 = vld [vmem:[%s1681 + $0x3a8] sm:$0xff]
        %v1800 = vld [vmem:[%s1681 + $0x3b0] sm:$0xff]
        %v1801 = vld [vmem:[%s1681 + $0x3b8] sm:$0xff]
        %v1802 = vld [vmem:[%s1681 + $0x3c0] sm:$0xff]
        %v1803 = vld [vmem:[%s1681 + $0x3c8] sm:$0xff]
        %v1804 = vld [vmem:[%s1681 + $0x3d0] sm:$0xff]
        %v1805 = vld [vmem:[%s1681 + $0x3d8] sm:$0xff]
        %v1806 = vld [vmem:[%s1681 + $0x3e0] sm:$0xff]
        %v1807 = vld [vmem:[%s1681 + $0x3e8] sm:$0xff]
        %v1808 = vld [vmem:[%s1681 + $0x3f0] sm:$0xff]
        %v1809 = vld [vmem:[%s1681 + $0x3f8] sm:$0xff]
        %v1810 = vld [vmem:[#allocation2] sm:$0xff]
        %v1811 = vld [vmem:[#allocation2 + $0x8] sm:$0xff]
        %v1812 = vld [vmem:[#allocation2 + $0x10] sm:$0xff]
        %v1813 = vld [vmem:[#allocation2 + $0x18] sm:$0xff]
        %v1814 = vld [vmem:[#allocation2 + $0x20] sm:$0xff]
        %v1815 = vld [vmem:[#allocation2 + $0x28] sm:$0xff]
        %v1816 = vld [vmem:[#allocation2 + $0x30] sm:$0xff]
        %v1817 = vld [vmem:[#allocation2 + $0x38] sm:$0xff]
        %v1818 = vld [vmem:[#allocation2 + $0x40] sm:$0xff]
        %v1819 = vld [vmem:[#allocation2 + $0x48] sm:$0xff]
        %v1820 = vld [vmem:[#allocation2 + $0x50] sm:$0xff]
        %v1821 = vld [vmem:[#allocation2 + $0x58] sm:$0xff]
        %v1822 = vld [vmem:[#allocation2 + $0x60] sm:$0xff]
        %v1823 = vld [vmem:[#allocation2 + $0x68] sm:$0xff]
        %v1824 = vld [vmem:[#allocation2 + $0x70] sm:$0xff]
        %v1825 = vld [vmem:[#allocation2 + $0x78] sm:$0xff]
        %v1826 = vld [vmem:[#allocation2 + $0x80] sm:$0xff]
        %v1827 = vld [vmem:[#allocation2 + $0x88] sm:$0xff]
        %v1828 = vld [vmem:[#allocation2 + $0x90] sm:$0xff]
        %v1829 = vld [vmem:[#allocation2 + $0x98] sm:$0xff]
        %v1830 = vld [vmem:[#allocation2 + $0xa0] sm:$0xff]
        %v1831 = vld [vmem:[#allocation2 + $0xa8] sm:$0xff]
        %v1832 = vld [vmem:[#allocation2 + $0xb0] sm:$0xff]
        %v1833 = vld [vmem:[#allocation2 + $0xb8] sm:$0xff]
        %v1834 = vld [vmem:[#allocation2 + $0xc0] sm:$0xff]
        %v1835 = vld [vmem:[#allocation2 + $0xc8] sm:$0xff]
        %v1836 = vld [vmem:[#allocation2 + $0xd0] sm:$0xff]
        %v1837 = vld [vmem:[#allocation2 + $0xd8] sm:$0xff]
        %v1838 = vld [vmem:[#allocation2 + $0xe0] sm:$0xff]
        %v1839 = vld [vmem:[#allocation2 + $0xe8] sm:$0xff]
        %v1840 = vld [vmem:[#allocation2 + $0xf0] sm:$0xff]
        %v1841 = vld [vmem:[#allocation2 + $0xf8] sm:$0xff]
        %v1842 = vld [vmem:[#allocation2 + $0x100] sm:$0xff]
        %v1843 = vld [vmem:[#allocation2 + $0x108] sm:$0xff]
        %v1844 = vld [vmem:[#allocation2 + $0x110] sm:$0xff]
        %v1845 = vld [vmem:[#allocation2 + $0x118] sm:$0xff]
        %v1846 = vld [vmem:[#allocation2 + $0x120] sm:$0xff]
        %v1847 = vld [vmem:[#allocation2 + $0x128] sm:$0xff]
        %v1848 = vld [vmem:[#allocation2 + $0x130] sm:$0xff]
        %v1849 = vld [vmem:[#allocation2 + $0x138] sm:$0xff]
        %v1850 = vld [vmem:[#allocation2 + $0x140] sm:$0xff]
        %v1851 = vld [vmem:[#allocation2 + $0x148] sm:$0xff]
        %v1852 = vld [vmem:[#allocation2 + $0x150] sm:$0xff]
        %v1853 = vld [vmem:[#allocation2 + $0x158] sm:$0xff]
        %v1854 = vld [vmem:[#allocation2 + $0x160] sm:$0xff]
        %v1855 = vld [vmem:[#allocation2 + $0x168] sm:$0xff]
        %v1856 = vld [vmem:[#allocation2 + $0x170] sm:$0xff]
        %v1857 = vld [vmem:[#allocation2 + $0x178] sm:$0xff]
        %v1858 = vld [vmem:[#allocation2 + $0x180] sm:$0xff]
        %v1859 = vld [vmem:[#allocation2 + $0x188] sm:$0xff]
        %v1860 = vld [vmem:[#allocation2 + $0x190] sm:$0xff]
        %v1861 = vld [vmem:[#allocation2 + $0x198] sm:$0xff]
        %v1862 = vld [vmem:[#allocation2 + $0x1a0] sm:$0xff]
        %v1863 = vld [vmem:[#allocation2 + $0x1a8] sm:$0xff]
        %v1864 = vld [vmem:[#allocation2 + $0x1b0] sm:$0xff]
        %v1865 = vld [vmem:[#allocation2 + $0x1b8] sm:$0xff]
        %v1866 = vld [vmem:[#allocation2 + $0x1c0] sm:$0xff]
        %v1867 = vld [vmem:[#allocation2 + $0x1c8] sm:$0xff]
        %v1868 = vld [vmem:[#allocation2 + $0x1d0] sm:$0xff]
        %v1869 = vld [vmem:[#allocation2 + $0x1d8] sm:$0xff]
        %v1870 = vld [vmem:[#allocation2 + $0x1e0] sm:$0xff]
        %v1871 = vld [vmem:[#allocation2 + $0x1e8] sm:$0xff]
        %v1872 = vld [vmem:[#allocation2 + $0x1f0] sm:$0xff]
        %v1873 = vld [vmem:[#allocation2 + $0x1f8] sm:$0xff]
        %s1874 = sshra.s32 %s353, 3
        %s1875 = sand.u32 %s353, 7
        %s1876 = smul.addr %s1874, 4
        %s1877 = scalar_lea.vmem [#allocation3], %s1876
        %v1878 = vld [vmem:[%s1877] sm:$0xf]
        %v1879 = vld [vmem:[%s1877 + $0x4] sm:$0xf]
        %v1880 = vld [vmem:[%s1877 + $0x8] sm:$0xf]
        %v1881 = vld [vmem:[%s1877 + $0xc] sm:$0xf]
        %v1882 = vld [vmem:[%s1877 + $0x10] sm:$0xf]
        %v1883 = vld [vmem:[%s1877 + $0x14] sm:$0xf]
        %v1884 = vld [vmem:[%s1877 + $0x18] sm:$0xf]
        %v1885 = vld [vmem:[%s1877 + $0x1c] sm:$0xf]
        %v1886 = vld [vmem:[%s1877 + $0x20] sm:$0xf]
        %v1887 = vld [vmem:[%s1877 + $0x24] sm:$0xf]
        %v1888 = vld [vmem:[%s1877 + $0x28] sm:$0xf]
        %v1889 = vld [vmem:[%s1877 + $0x2c] sm:$0xf]
        %v1890 = vld [vmem:[%s1877 + $0x30] sm:$0xf]
        %v1891 = vld [vmem:[%s1877 + $0x34] sm:$0xf]
        %v1892 = vld [vmem:[%s1877 + $0x38] sm:$0xf]
        %v1893 = vld [vmem:[%s1877 + $0x3c] sm:$0xf]
        %v1894 = vld [vmem:[%s1877 + $0x40] sm:$0xf]
        %v1895 = vld [vmem:[%s1877 + $0x44] sm:$0xf]
        %v1896 = vld [vmem:[%s1877 + $0x48] sm:$0xf]
        %v1897 = vld [vmem:[%s1877 + $0x4c] sm:$0xf]
        %v1898 = vld [vmem:[%s1877 + $0x50] sm:$0xf]
        %v1899 = vld [vmem:[%s1877 + $0x54] sm:$0xf]
        %v1900 = vld [vmem:[%s1877 + $0x58] sm:$0xf]
        %v1901 = vld [vmem:[%s1877 + $0x5c] sm:$0xf]
        %v1902 = vld [vmem:[%s1877 + $0x60] sm:$0xf]
        %v1903 = vld [vmem:[%s1877 + $0x64] sm:$0xf]
        %v1904 = vld [vmem:[%s1877 + $0x68] sm:$0xf]
        %v1905 = vld [vmem:[%s1877 + $0x6c] sm:$0xf]
        %v1906 = vld [vmem:[%s1877 + $0x70] sm:$0xf]
        %v1907 = vld [vmem:[%s1877 + $0x74] sm:$0xf]
        %v1908 = vld [vmem:[%s1877 + $0x78] sm:$0xf]
        %v1909 = vld [vmem:[%s1877 + $0x7c] sm:$0xf]
        %v1910 = vld [vmem:[%s1877 + $0x80] sm:$0xf]
        %v1911 = vld [vmem:[%s1877 + $0x84] sm:$0xf]
        %v1912 = vld [vmem:[%s1877 + $0x88] sm:$0xf]
        %v1913 = vld [vmem:[%s1877 + $0x8c] sm:$0xf]
        %v1914 = vld [vmem:[%s1877 + $0x90] sm:$0xf]
        %v1915 = vld [vmem:[%s1877 + $0x94] sm:$0xf]
        %v1916 = vld [vmem:[%s1877 + $0x98] sm:$0xf]
        %v1917 = vld [vmem:[%s1877 + $0x9c] sm:$0xf]
        %v1918 = vld [vmem:[%s1877 + $0xa0] sm:$0xf]
        %v1919 = vld [vmem:[%s1877 + $0xa4] sm:$0xf]
        %v1920 = vld [vmem:[%s1877 + $0xa8] sm:$0xf]
        %v1921 = vld [vmem:[%s1877 + $0xac] sm:$0xf]
        %v1922 = vld [vmem:[%s1877 + $0xb0] sm:$0xf]
        %v1923 = vld [vmem:[%s1877 + $0xb4] sm:$0xf]
        %v1924 = vld [vmem:[%s1877 + $0xb8] sm:$0xf]
        %v1925 = vld [vmem:[%s1877 + $0xbc] sm:$0xf]
        %v1926 = vld [vmem:[%s1877 + $0xc0] sm:$0xf]
        %v1927 = vld [vmem:[%s1877 + $0xc4] sm:$0xf]
        %v1928 = vld [vmem:[%s1877 + $0xc8] sm:$0xf]
        %v1929 = vld [vmem:[%s1877 + $0xcc] sm:$0xf]
        %v1930 = vld [vmem:[%s1877 + $0xd0] sm:$0xf]
        %v1931 = vld [vmem:[%s1877 + $0xd4] sm:$0xf]
        %v1932 = vld [vmem:[%s1877 + $0xd8] sm:$0xf]
        %v1933 = vld [vmem:[%s1877 + $0xdc] sm:$0xf]
        %v1934 = vld [vmem:[%s1877 + $0xe0] sm:$0xf]
        %v1935 = vld [vmem:[%s1877 + $0xe4] sm:$0xf]
        %v1936 = vld [vmem:[%s1877 + $0xe8] sm:$0xf]
        %v1937 = vld [vmem:[%s1877 + $0xec] sm:$0xf]
        %v1938 = vld [vmem:[%s1877 + $0xf0] sm:$0xf]
        %v1939 = vld [vmem:[%s1877 + $0xf4] sm:$0xf]
        %v1940 = vld [vmem:[%s1877 + $0xf8] sm:$0xf]
        %v1941 = vld [vmem:[%s1877 + $0xfc] sm:$0xf]
        %v2070 = vunpack.c.l.b16 %v1682
        %v2071 = vunpack.c.h.b16 %v1682
        %v2072 = vunpack.c.l.b16 %v1683
        %v2073 = vunpack.c.h.b16 %v1683
        %v2074 = vunpack.c.l.b16 %v1684
        %v2075 = vunpack.c.h.b16 %v1684
        %v2076 = vunpack.c.l.b16 %v1685
        %v2077 = vunpack.c.h.b16 %v1685
        %v2078 = vunpack.c.l.b16 %v1686
        %v2079 = vunpack.c.h.b16 %v1686
        %v2080 = vunpack.c.l.b16 %v1687
        %v2081 = vunpack.c.h.b16 %v1687
        %v2082 = vunpack.c.l.b16 %v1688
        %v2083 = vunpack.c.h.b16 %v1688
        %v2084 = vunpack.c.l.b16 %v1689
        %v2085 = vunpack.c.h.b16 %v1689
        %v2086 = vunpack.c.l.b16 %v1690
        %v2087 = vunpack.c.h.b16 %v1690
        %v2088 = vunpack.c.l.b16 %v1691
        %v2089 = vunpack.c.h.b16 %v1691
        %v2090 = vunpack.c.l.b16 %v1692
        %v2091 = vunpack.c.h.b16 %v1692
        %v2092 = vunpack.c.l.b16 %v1693
        %v2093 = vunpack.c.h.b16 %v1693
        %v2094 = vunpack.c.l.b16 %v1694
        %v2095 = vunpack.c.h.b16 %v1694
        %v2096 = vunpack.c.l.b16 %v1695
        %v2097 = vunpack.c.h.b16 %v1695
        %v2098 = vunpack.c.l.b16 %v1696
        %v2099 = vunpack.c.h.b16 %v1696
        %v2100 = vunpack.c.l.b16 %v1697
        %v2101 = vunpack.c.h.b16 %v1697
        %v2102 = vunpack.c.l.b16 %v1698
        %v2103 = vunpack.c.h.b16 %v1698
        %v2104 = vunpack.c.l.b16 %v1699
        %v2105 = vunpack.c.h.b16 %v1699
        %v2106 = vunpack.c.l.b16 %v1700
        %v2107 = vunpack.c.h.b16 %v1700
        %v2108 = vunpack.c.l.b16 %v1701
        %v2109 = vunpack.c.h.b16 %v1701
        %v2110 = vunpack.c.l.b16 %v1702
        %v2111 = vunpack.c.h.b16 %v1702
        %v2112 = vunpack.c.l.b16 %v1703
        %v2113 = vunpack.c.h.b16 %v1703
        %v2114 = vunpack.c.l.b16 %v1704
        %v2115 = vunpack.c.h.b16 %v1704
        %v2116 = vunpack.c.l.b16 %v1705
        %v2117 = vunpack.c.h.b16 %v1705
        %v2118 = vunpack.c.l.b16 %v1706
        %v2119 = vunpack.c.h.b16 %v1706
        %v2120 = vunpack.c.l.b16 %v1707
        %v2121 = vunpack.c.h.b16 %v1707
        %v2122 = vunpack.c.l.b16 %v1708
        %v2123 = vunpack.c.h.b16 %v1708
        %v2124 = vunpack.c.l.b16 %v1709
        %v2125 = vunpack.c.h.b16 %v1709
        %v2126 = vunpack.c.l.b16 %v1710
        %v2127 = vunpack.c.h.b16 %v1710
        %v2128 = vunpack.c.l.b16 %v1711
        %v2129 = vunpack.c.h.b16 %v1711
        %v2130 = vunpack.c.l.b16 %v1712
        %v2131 = vunpack.c.h.b16 %v1712
        %v2132 = vunpack.c.l.b16 %v1713
        %v2133 = vunpack.c.h.b16 %v1713
        %v2134 = vunpack.c.l.b16 %v1714
        %v2135 = vunpack.c.h.b16 %v1714
        %v2136 = vunpack.c.l.b16 %v1715
        %v2137 = vunpack.c.h.b16 %v1715
        %v2138 = vunpack.c.l.b16 %v1716
        %v2139 = vunpack.c.h.b16 %v1716
        %v2140 = vunpack.c.l.b16 %v1717
        %v2141 = vunpack.c.h.b16 %v1717
        %v2142 = vunpack.c.l.b16 %v1718
        %v2143 = vunpack.c.h.b16 %v1718
        %v2144 = vunpack.c.l.b16 %v1719
        %v2145 = vunpack.c.h.b16 %v1719
        %v2146 = vunpack.c.l.b16 %v1720
        %v2147 = vunpack.c.h.b16 %v1720
        %v2148 = vunpack.c.l.b16 %v1721
        %v2149 = vunpack.c.h.b16 %v1721
        %v2150 = vunpack.c.l.b16 %v1722
        %v2151 = vunpack.c.h.b16 %v1722
        %v2152 = vunpack.c.l.b16 %v1723
        %v2153 = vunpack.c.h.b16 %v1723
        %v2154 = vunpack.c.l.b16 %v1724
        %v2155 = vunpack.c.h.b16 %v1724
        %v2156 = vunpack.c.l.b16 %v1725
        %v2157 = vunpack.c.h.b16 %v1725
        %v2158 = vunpack.c.l.b16 %v1726
        %v2159 = vunpack.c.h.b16 %v1726
        %v2160 = vunpack.c.l.b16 %v1727
        %v2161 = vunpack.c.h.b16 %v1727
        %v2162 = vunpack.c.l.b16 %v1728
        %v2163 = vunpack.c.h.b16 %v1728
        %v2164 = vunpack.c.l.b16 %v1729
        %v2165 = vunpack.c.h.b16 %v1729
        %v2166 = vunpack.c.l.b16 %v1730
        %v2167 = vunpack.c.h.b16 %v1730
        %v2168 = vunpack.c.l.b16 %v1731
        %v2169 = vunpack.c.h.b16 %v1731
        %v2170 = vunpack.c.l.b16 %v1732
        %v2171 = vunpack.c.h.b16 %v1732
        %v2172 = vunpack.c.l.b16 %v1733
        %v2173 = vunpack.c.h.b16 %v1733
        %v2174 = vunpack.c.l.b16 %v1734
        %v2175 = vunpack.c.h.b16 %v1734
        %v2176 = vunpack.c.l.b16 %v1735
        %v2177 = vunpack.c.h.b16 %v1735
        %v2178 = vunpack.c.l.b16 %v1736
        %v2179 = vunpack.c.h.b16 %v1736
        %v2180 = vunpack.c.l.b16 %v1737
        %v2181 = vunpack.c.h.b16 %v1737
        %v2182 = vunpack.c.l.b16 %v1738
        %v2183 = vunpack.c.h.b16 %v1738
        %v2184 = vunpack.c.l.b16 %v1739
        %v2185 = vunpack.c.h.b16 %v1739
        %v2186 = vunpack.c.l.b16 %v1740
        %v2187 = vunpack.c.h.b16 %v1740
        %v2188 = vunpack.c.l.b16 %v1741
        %v2189 = vunpack.c.h.b16 %v1741
        %v2190 = vunpack.c.l.b16 %v1742
        %v2191 = vunpack.c.h.b16 %v1742
        %v2192 = vunpack.c.l.b16 %v1743
        %v2193 = vunpack.c.h.b16 %v1743
        %v2194 = vunpack.c.l.b16 %v1744
        %v2195 = vunpack.c.h.b16 %v1744
        %v2196 = vunpack.c.l.b16 %v1745
        %v2197 = vunpack.c.h.b16 %v1745
        %v2198 = vunpack.c.l.b16 %v1746
        %v2199 = vunpack.c.h.b16 %v1746
        %v2200 = vunpack.c.l.b16 %v1747
        %v2201 = vunpack.c.h.b16 %v1747
        %v2202 = vunpack.c.l.b16 %v1748
        %v2203 = vunpack.c.h.b16 %v1748
        %v2204 = vunpack.c.l.b16 %v1749
        %v2205 = vunpack.c.h.b16 %v1749
        %v2206 = vunpack.c.l.b16 %v1750
        %v2207 = vunpack.c.h.b16 %v1750
        %v2208 = vunpack.c.l.b16 %v1751
        %v2209 = vunpack.c.h.b16 %v1751
        %v2210 = vunpack.c.l.b16 %v1752
        %v2211 = vunpack.c.h.b16 %v1752
        %v2212 = vunpack.c.l.b16 %v1753
        %v2213 = vunpack.c.h.b16 %v1753
        %v2214 = vunpack.c.l.b16 %v1754
        %v2215 = vunpack.c.h.b16 %v1754
        %v2216 = vunpack.c.l.b16 %v1755
        %v2217 = vunpack.c.h.b16 %v1755
        %v2218 = vunpack.c.l.b16 %v1756
        %v2219 = vunpack.c.h.b16 %v1756
        %v2220 = vunpack.c.l.b16 %v1757
        %v2221 = vunpack.c.h.b16 %v1757
        %v2222 = vunpack.c.l.b16 %v1758
        %v2223 = vunpack.c.h.b16 %v1758
        %v2224 = vunpack.c.l.b16 %v1759
        %v2225 = vunpack.c.h.b16 %v1759
        %v2226 = vunpack.c.l.b16 %v1760
        %v2227 = vunpack.c.h.b16 %v1760
        %v2228 = vunpack.c.l.b16 %v1761
        %v2229 = vunpack.c.h.b16 %v1761
        %v2230 = vunpack.c.l.b16 %v1762
        %v2231 = vunpack.c.h.b16 %v1762
        %v2232 = vunpack.c.l.b16 %v1763
        %v2233 = vunpack.c.h.b16 %v1763
        %v2234 = vunpack.c.l.b16 %v1764
        %v2235 = vunpack.c.h.b16 %v1764
        %v2236 = vunpack.c.l.b16 %v1765
        %v2237 = vunpack.c.h.b16 %v1765
        %v2238 = vunpack.c.l.b16 %v1766
        %v2239 = vunpack.c.h.b16 %v1766
        %v2240 = vunpack.c.l.b16 %v1767
        %v2241 = vunpack.c.h.b16 %v1767
        %v2242 = vunpack.c.l.b16 %v1768
        %v2243 = vunpack.c.h.b16 %v1768
        %v2244 = vunpack.c.l.b16 %v1769
        %v2245 = vunpack.c.h.b16 %v1769
        %v2246 = vunpack.c.l.b16 %v1770
        %v2247 = vunpack.c.h.b16 %v1770
        %v2248 = vunpack.c.l.b16 %v1771
        %v2249 = vunpack.c.h.b16 %v1771
        %v2250 = vunpack.c.l.b16 %v1772
        %v2251 = vunpack.c.h.b16 %v1772
        %v2252 = vunpack.c.l.b16 %v1773
        %v2253 = vunpack.c.h.b16 %v1773
        %v2254 = vunpack.c.l.b16 %v1774
        %v2255 = vunpack.c.h.b16 %v1774
        %v2256 = vunpack.c.l.b16 %v1775
        %v2257 = vunpack.c.h.b16 %v1775
        %v2258 = vunpack.c.l.b16 %v1776
        %v2259 = vunpack.c.h.b16 %v1776
        %v2260 = vunpack.c.l.b16 %v1777
        %v2261 = vunpack.c.h.b16 %v1777
        %v2262 = vunpack.c.l.b16 %v1778
        %v2263 = vunpack.c.h.b16 %v1778
        %v2264 = vunpack.c.l.b16 %v1779
        %v2265 = vunpack.c.h.b16 %v1779
        %v2266 = vunpack.c.l.b16 %v1780
        %v2267 = vunpack.c.h.b16 %v1780
        %v2268 = vunpack.c.l.b16 %v1781
        %v2269 = vunpack.c.h.b16 %v1781
        %v2270 = vunpack.c.l.b16 %v1782
        %v2271 = vunpack.c.h.b16 %v1782
        %v2272 = vunpack.c.l.b16 %v1783
        %v2273 = vunpack.c.h.b16 %v1783
        %v2274 = vunpack.c.l.b16 %v1784
        %v2275 = vunpack.c.h.b16 %v1784
        %v2276 = vunpack.c.l.b16 %v1785
        %v2277 = vunpack.c.h.b16 %v1785
        %v2278 = vunpack.c.l.b16 %v1786
        %v2279 = vunpack.c.h.b16 %v1786
        %v2280 = vunpack.c.l.b16 %v1787
        %v2281 = vunpack.c.h.b16 %v1787
        %v2282 = vunpack.c.l.b16 %v1788
        %v2283 = vunpack.c.h.b16 %v1788
        %v2284 = vunpack.c.l.b16 %v1789
        %v2285 = vunpack.c.h.b16 %v1789
        %v2286 = vunpack.c.l.b16 %v1790
        %v2287 = vunpack.c.h.b16 %v1790
        %v2288 = vunpack.c.l.b16 %v1791
        %v2289 = vunpack.c.h.b16 %v1791
        %v2290 = vunpack.c.l.b16 %v1792
        %v2291 = vunpack.c.h.b16 %v1792
        %v2292 = vunpack.c.l.b16 %v1793
        %v2293 = vunpack.c.h.b16 %v1793
        %v2294 = vunpack.c.l.b16 %v1794
        %v2295 = vunpack.c.h.b16 %v1794
        %v2296 = vunpack.c.l.b16 %v1795
        %v2297 = vunpack.c.h.b16 %v1795
        %v2298 = vunpack.c.l.b16 %v1796
        %v2299 = vunpack.c.h.b16 %v1796
        %v2300 = vunpack.c.l.b16 %v1797
        %v2301 = vunpack.c.h.b16 %v1797
        %v2302 = vunpack.c.l.b16 %v1798
        %v2303 = vunpack.c.h.b16 %v1798
        %v2304 = vunpack.c.l.b16 %v1799
        %v2305 = vunpack.c.h.b16 %v1799
        %v2306 = vunpack.c.l.b16 %v1800
        %v2307 = vunpack.c.h.b16 %v1800
        %v2308 = vunpack.c.l.b16 %v1801
        %v2309 = vunpack.c.h.b16 %v1801
        %v2310 = vunpack.c.l.b16 %v1802
        %v2311 = vunpack.c.h.b16 %v1802
        %v2312 = vunpack.c.l.b16 %v1803
        %v2313 = vunpack.c.h.b16 %v1803
        %v2314 = vunpack.c.l.b16 %v1804
        %v2315 = vunpack.c.h.b16 %v1804
        %v2316 = vunpack.c.l.b16 %v1805
        %v2317 = vunpack.c.h.b16 %v1805
        %v2318 = vunpack.c.l.b16 %v1806
        %v2319 = vunpack.c.h.b16 %v1806
        %v2320 = vunpack.c.l.b16 %v1807
        %v2321 = vunpack.c.h.b16 %v1807
        %v2322 = vunpack.c.l.b16 %v1808
        %v2323 = vunpack.c.h.b16 %v1808
        %v2324 = vunpack.c.l.b16 %v1809
        %v2325 = vunpack.c.h.b16 %v1809
        %v2326 = vpack.c.b16 %v2074, %v2070
        %v2327 = vpack.c.b16 %v2075, %v2071
        %v2328 = vpack.c.b16 %v2076, %v2072
        %v2329 = vpack.c.b16 %v2077, %v2073
        %v2330 = vpack.c.b16 %v2082, %v2078
        %v2331 = vpack.c.b16 %v2083, %v2079
        %v2332 = vpack.c.b16 %v2084, %v2080
        %v2333 = vpack.c.b16 %v2085, %v2081
        %v2334 = vpack.c.b16 %v2090, %v2086
        %v2335 = vpack.c.b16 %v2091, %v2087
        %v2336 = vpack.c.b16 %v2092, %v2088
        %v2337 = vpack.c.b16 %v2093, %v2089
        %v2338 = vpack.c.b16 %v2098, %v2094
        %v2339 = vpack.c.b16 %v2099, %v2095
        %v2340 = vpack.c.b16 %v2100, %v2096
        %v2341 = vpack.c.b16 %v2101, %v2097
        %v2342 = vpack.c.b16 %v2106, %v2102
        %v2343 = vpack.c.b16 %v2107, %v2103
        %v2344 = vpack.c.b16 %v2108, %v2104
        %v2345 = vpack.c.b16 %v2109, %v2105
        %v2346 = vpack.c.b16 %v2114, %v2110
        %v2347 = vpack.c.b16 %v2115, %v2111
        %v2348 = vpack.c.b16 %v2116, %v2112
        %v2349 = vpack.c.b16 %v2117, %v2113
        %v2350 = vpack.c.b16 %v2122, %v2118
        %v2351 = vpack.c.b16 %v2123, %v2119
        %v2352 = vpack.c.b16 %v2124, %v2120
        %v2353 = vpack.c.b16 %v2125, %v2121
        %v2354 = vpack.c.b16 %v2130, %v2126
        %v2355 = vpack.c.b16 %v2131, %v2127
        %v2356 = vpack.c.b16 %v2132, %v2128
        %v2357 = vpack.c.b16 %v2133, %v2129
        %v2358 = vpack.c.b16 %v2138, %v2134
        %v2359 = vpack.c.b16 %v2139, %v2135
        %v2360 = vpack.c.b16 %v2140, %v2136
        %v2361 = vpack.c.b16 %v2141, %v2137
        %v2362 = vpack.c.b16 %v2146, %v2142
        %v2363 = vpack.c.b16 %v2147, %v2143
        %v2364 = vpack.c.b16 %v2148, %v2144
        %v2365 = vpack.c.b16 %v2149, %v2145
        %v2366 = vpack.c.b16 %v2154, %v2150
        %v2367 = vpack.c.b16 %v2155, %v2151
        %v2368 = vpack.c.b16 %v2156, %v2152
        %v2369 = vpack.c.b16 %v2157, %v2153
        %v2370 = vpack.c.b16 %v2162, %v2158
        %v2371 = vpack.c.b16 %v2163, %v2159
        %v2372 = vpack.c.b16 %v2164, %v2160
        %v2373 = vpack.c.b16 %v2165, %v2161
        %v2374 = vpack.c.b16 %v2170, %v2166
        %v2375 = vpack.c.b16 %v2171, %v2167
        %v2376 = vpack.c.b16 %v2172, %v2168
        %v2377 = vpack.c.b16 %v2173, %v2169
        %v2378 = vpack.c.b16 %v2178, %v2174
        %v2379 = vpack.c.b16 %v2179, %v2175
        %v2380 = vpack.c.b16 %v2180, %v2176
        %v2381 = vpack.c.b16 %v2181, %v2177
        %v2382 = vpack.c.b16 %v2186, %v2182
        %v2383 = vpack.c.b16 %v2187, %v2183
        %v2384 = vpack.c.b16 %v2188, %v2184
        %v2385 = vpack.c.b16 %v2189, %v2185
        %v2386 = vpack.c.b16 %v2194, %v2190
        %v2387 = vpack.c.b16 %v2195, %v2191
        %v2388 = vpack.c.b16 %v2196, %v2192
        %v2389 = vpack.c.b16 %v2197, %v2193
        %v2390 = vpack.c.b16 %v2202, %v2198
        %v2391 = vpack.c.b16 %v2203, %v2199
        %v2392 = vpack.c.b16 %v2204, %v2200
        %v2393 = vpack.c.b16 %v2205, %v2201
        %v2394 = vpack.c.b16 %v2210, %v2206
        %v2395 = vpack.c.b16 %v2211, %v2207
        %v2396 = vpack.c.b16 %v2212, %v2208
        %v2397 = vpack.c.b16 %v2213, %v2209
        %v2398 = vpack.c.b16 %v2218, %v2214
        %v2399 = vpack.c.b16 %v2219, %v2215
        %v2400 = vpack.c.b16 %v2220, %v2216
        %v2401 = vpack.c.b16 %v2221, %v2217
        %v2402 = vpack.c.b16 %v2226, %v2222
        %v2403 = vpack.c.b16 %v2227, %v2223
        %v2404 = vpack.c.b16 %v2228, %v2224
        %v2405 = vpack.c.b16 %v2229, %v2225
        %v2406 = vpack.c.b16 %v2234, %v2230
        %v2407 = vpack.c.b16 %v2235, %v2231
        %v2408 = vpack.c.b16 %v2236, %v2232
        %v2409 = vpack.c.b16 %v2237, %v2233
        %v2410 = vpack.c.b16 %v2242, %v2238
        %v2411 = vpack.c.b16 %v2243, %v2239
        %v2412 = vpack.c.b16 %v2244, %v2240
        %v2413 = vpack.c.b16 %v2245, %v2241
        %v2414 = vpack.c.b16 %v2250, %v2246
        %v2415 = vpack.c.b16 %v2251, %v2247
        %v2416 = vpack.c.b16 %v2252, %v2248
        %v2417 = vpack.c.b16 %v2253, %v2249
        %v2418 = vpack.c.b16 %v2258, %v2254
        %v2419 = vpack.c.b16 %v2259, %v2255
        %v2420 = vpack.c.b16 %v2260, %v2256
        %v2421 = vpack.c.b16 %v2261, %v2257
        %v2422 = vpack.c.b16 %v2266, %v2262
        %v2423 = vpack.c.b16 %v2267, %v2263
        %v2424 = vpack.c.b16 %v2268, %v2264
        %v2425 = vpack.c.b16 %v2269, %v2265
        %v2426 = vpack.c.b16 %v2274, %v2270
        %v2427 = vpack.c.b16 %v2275, %v2271
        %v2428 = vpack.c.b16 %v2276, %v2272
        %v2429 = vpack.c.b16 %v2277, %v2273
        %v2430 = vpack.c.b16 %v2282, %v2278
        %v2431 = vpack.c.b16 %v2283, %v2279
        %v2432 = vpack.c.b16 %v2284, %v2280
        %v2433 = vpack.c.b16 %v2285, %v2281
        %v2434 = vpack.c.b16 %v2290, %v2286
        %v2435 = vpack.c.b16 %v2291, %v2287
        %v2436 = vpack.c.b16 %v2292, %v2288
        %v2437 = vpack.c.b16 %v2293, %v2289
        %v2438 = vpack.c.b16 %v2298, %v2294
        %v2439 = vpack.c.b16 %v2299, %v2295
        %v2440 = vpack.c.b16 %v2300, %v2296
        %v2441 = vpack.c.b16 %v2301, %v2297
        %v2442 = vpack.c.b16 %v2306, %v2302
        %v2443 = vpack.c.b16 %v2307, %v2303
        %v2444 = vpack.c.b16 %v2308, %v2304
        %v2445 = vpack.c.b16 %v2309, %v2305
        %v2446 = vpack.c.b16 %v2314, %v2310
        %v2447 = vpack.c.b16 %v2315, %v2311
        %v2448 = vpack.c.b16 %v2316, %v2312
        %v2449 = vpack.c.b16 %v2317, %v2313
        %v2450 = vpack.c.b16 %v2322, %v2318
        %v2451 = vpack.c.b16 %v2323, %v2319
        %v2452 = vpack.c.b16 %v2324, %v2320
        %v2453 = vpack.c.b16 %v2325, %v2321
        %v2646 = vunpack.c.l.b16 %v1878
        %v2647 = vunpack.c.l.b16 %v1879
        %v2648 = vunpack.c.l.b16 %v1880
        %v2649 = vunpack.c.l.b16 %v1881
        %v2650 = vunpack.c.l.b16 %v1882
        %v2651 = vunpack.c.l.b16 %v1883
        %v2652 = vunpack.c.l.b16 %v1884
        %v2653 = vunpack.c.l.b16 %v1885
        %v2654 = vunpack.c.l.b16 %v1886
        %v2655 = vunpack.c.l.b16 %v1887
        %v2656 = vunpack.c.l.b16 %v1888
        %v2657 = vunpack.c.l.b16 %v1889
        %v2658 = vunpack.c.l.b16 %v1890
        %v2659 = vunpack.c.l.b16 %v1891
        %v2660 = vunpack.c.l.b16 %v1892
        %v2661 = vunpack.c.l.b16 %v1893
        %v2662 = vunpack.c.l.b16 %v1894
        %v2663 = vunpack.c.l.b16 %v1895
        %v2664 = vunpack.c.l.b16 %v1896
        %v2665 = vunpack.c.l.b16 %v1897
        %v2666 = vunpack.c.l.b16 %v1898
        %v2667 = vunpack.c.l.b16 %v1899
        %v2668 = vunpack.c.l.b16 %v1900
        %v2669 = vunpack.c.l.b16 %v1901
        %v2670 = vunpack.c.l.b16 %v1902
        %v2671 = vunpack.c.l.b16 %v1903
        %v2672 = vunpack.c.l.b16 %v1904
        %v2673 = vunpack.c.l.b16 %v1905
        %v2674 = vunpack.c.l.b16 %v1906
        %v2675 = vunpack.c.l.b16 %v1907
        %v2676 = vunpack.c.l.b16 %v1908
        %v2677 = vunpack.c.l.b16 %v1909
        %v2678 = vunpack.c.l.b16 %v1910
        %v2679 = vunpack.c.l.b16 %v1911
        %v2680 = vunpack.c.l.b16 %v1912
        %v2681 = vunpack.c.l.b16 %v1913
        %v2682 = vunpack.c.l.b16 %v1914
        %v2683 = vunpack.c.l.b16 %v1915
        %v2684 = vunpack.c.l.b16 %v1916
        %v2685 = vunpack.c.l.b16 %v1917
        %v2686 = vunpack.c.l.b16 %v1918
        %v2687 = vunpack.c.l.b16 %v1919
        %v2688 = vunpack.c.l.b16 %v1920
        %v2689 = vunpack.c.l.b16 %v1921
        %v2690 = vunpack.c.l.b16 %v1922
        %v2691 = vunpack.c.l.b16 %v1923
        %v2692 = vunpack.c.l.b16 %v1924
        %v2693 = vunpack.c.l.b16 %v1925
        %v2694 = vunpack.c.l.b16 %v1926
        %v2695 = vunpack.c.l.b16 %v1927
        %v2696 = vunpack.c.l.b16 %v1928
        %v2697 = vunpack.c.l.b16 %v1929
        %v2698 = vunpack.c.l.b16 %v1930
        %v2699 = vunpack.c.l.b16 %v1931
        %v2700 = vunpack.c.l.b16 %v1932
        %v2701 = vunpack.c.l.b16 %v1933
        %v2702 = vunpack.c.l.b16 %v1934
        %v2703 = vunpack.c.l.b16 %v1935
        %v2704 = vunpack.c.l.b16 %v1936
        %v2705 = vunpack.c.l.b16 %v1937
        %v2706 = vunpack.c.l.b16 %v1938
        %v2707 = vunpack.c.l.b16 %v1939
        %v2708 = vunpack.c.l.b16 %v1940
        %v2709 = vunpack.c.l.b16 %v1941
        %v2710 = vpack.c.b16 %v2647, %v2646
        %v2711 = vpack.c.b16 %v2649, %v2648
        %v2712 = vpack.c.b16 %v2651, %v2650
        %v2713 = vpack.c.b16 %v2653, %v2652
        %v2714 = vpack.c.b16 %v2655, %v2654
        %v2715 = vpack.c.b16 %v2657, %v2656
        %v2716 = vpack.c.b16 %v2659, %v2658
        %v2717 = vpack.c.b16 %v2661, %v2660
        %v2718 = vpack.c.b16 %v2663, %v2662
        %v2719 = vpack.c.b16 %v2665, %v2664
        %v2720 = vpack.c.b16 %v2667, %v2666
        %v2721 = vpack.c.b16 %v2669, %v2668
        %v2722 = vpack.c.b16 %v2671, %v2670
        %v2723 = vpack.c.b16 %v2673, %v2672
        %v2724 = vpack.c.b16 %v2675, %v2674
        %v2725 = vpack.c.b16 %v2677, %v2676
        %v2726 = vpack.c.b16 %v2679, %v2678
        %v2727 = vpack.c.b16 %v2681, %v2680
        %v2728 = vpack.c.b16 %v2683, %v2682
        %v2729 = vpack.c.b16 %v2685, %v2684
        %v2730 = vpack.c.b16 %v2687, %v2686
        %v2731 = vpack.c.b16 %v2689, %v2688
        %v2732 = vpack.c.b16 %v2691, %v2690
        %v2733 = vpack.c.b16 %v2693, %v2692
        %v2734 = vpack.c.b16 %v2695, %v2694
        %v2735 = vpack.c.b16 %v2697, %v2696
        %v2736 = vpack.c.b16 %v2699, %v2698
        %v2737 = vpack.c.b16 %v2701, %v2700
        %v2738 = vpack.c.b16 %v2703, %v2702
        %v2739 = vpack.c.b16 %v2705, %v2704
        %v2740 = vpack.c.b16 %v2707, %v2706
        %v2741 = vpack.c.b16 %v2709, %v2708
        %2774 = vmatpush.bf16.msra.mxu0 %v2717
        %2775 = vmatpush.bf16.msra.mxu0 %v2716
        %2776 = vmatpush.bf16.msra.mxu0 %v2715
        %2777 = vmatpush.bf16.msra.mxu0 %v2714
        %2778 = vmatpush.bf16.msra.mxu0 %v2713
        %2779 = vmatpush.bf16.msra.mxu0 %v2712
        %2780 = vmatpush.bf16.msra.mxu0 %v2711
        %2781 = vmatpush.bf16.msra.mxu0 %v2710
        %2782 = vmatmul.bf16.gmra.mxu0 %v2326
        %v2783 = vpop.f32.mrf.mxu0
        %v2784 = vadd.f32 0.0, %v2783
        %v2785 = vpop.f32.mrf.mxu0
        %v2786 = vadd.f32 0.0, %v2785
        %2787 = vmatmul.bf16.gmra.mxu0 %v2330
        %v2788 = vpop.f32.mrf.mxu0
        %v2789 = vadd.f32 0.0, %v2788
        %v2790 = vpop.f32.mrf.mxu0
        %v2791 = vadd.f32 0.0, %v2790
        %2792 = vmatmul.bf16.gmra.mxu0 %v2334
        %v2793 = vpop.f32.mrf.mxu0
        %v2794 = vadd.f32 0.0, %v2793
        %v2795 = vpop.f32.mrf.mxu0
        %v2796 = vadd.f32 0.0, %v2795
        %2797 = vmatmul.bf16.gmra.mxu0 %v2338
        %v2798 = vpop.f32.mrf.mxu0
        %v2799 = vadd.f32 0.0, %v2798
        %v2800 = vpop.f32.mrf.mxu0
        %v2801 = vadd.f32 0.0, %v2800
        %2802 = vmatmul.bf16.gmra.mxu0 %v2342
        %v2803 = vpop.f32.mrf.mxu0
        %v2804 = vadd.f32 0.0, %v2803
        %v2805 = vpop.f32.mrf.mxu0
        %v2806 = vadd.f32 0.0, %v2805
        %2807 = vmatmul.bf16.gmra.mxu0 %v2346
        %v2808 = vpop.f32.mrf.mxu0
        %v2809 = vadd.f32 0.0, %v2808
        %v2810 = vpop.f32.mrf.mxu0
        %v2811 = vadd.f32 0.0, %v2810
        %2812 = vmatmul.bf16.gmra.mxu0 %v2350
        %v2813 = vpop.f32.mrf.mxu0
        %v2814 = vadd.f32 0.0, %v2813
        %v2815 = vpop.f32.mrf.mxu0
        %v2816 = vadd.f32 0.0, %v2815
        %2817 = vmatmul.bf16.gmra.mxu0 %v2354
        %v2818 = vpop.f32.mrf.mxu0
        %v2819 = vadd.f32 0.0, %v2818
        %v2820 = vpop.f32.mrf.mxu0
        %v2821 = vadd.f32 0.0, %v2820
        %2822 = vmatmul.bf16.gmra.mxu0 %v2358
        %v2823 = vpop.f32.mrf.mxu0
        %v2824 = vadd.f32 0.0, %v2823
        %v2825 = vpop.f32.mrf.mxu0
        %v2826 = vadd.f32 0.0, %v2825
        %2827 = vmatmul.bf16.gmra.mxu0 %v2362
        %v2828 = vpop.f32.mrf.mxu0
        %v2829 = vadd.f32 0.0, %v2828
        %v2830 = vpop.f32.mrf.mxu0
        %v2831 = vadd.f32 0.0, %v2830
        %2832 = vmatmul.bf16.gmra.mxu0 %v2366
        %v2833 = vpop.f32.mrf.mxu0
        %v2834 = vadd.f32 0.0, %v2833
        %v2835 = vpop.f32.mrf.mxu0
        %v2836 = vadd.f32 0.0, %v2835
        %2837 = vmatmul.bf16.gmra.mxu0 %v2370
        %v2838 = vpop.f32.mrf.mxu0
        %v2839 = vadd.f32 0.0, %v2838
        %v2840 = vpop.f32.mrf.mxu0
        %v2841 = vadd.f32 0.0, %v2840
        %2842 = vmatmul.bf16.gmra.mxu0 %v2374
        %v2843 = vpop.f32.mrf.mxu0
        %v2844 = vadd.f32 0.0, %v2843
        %v2845 = vpop.f32.mrf.mxu0
        %v2846 = vadd.f32 0.0, %v2845
        %2847 = vmatmul.bf16.gmra.mxu0 %v2378
        %v2848 = vpop.f32.mrf.mxu0
        %v2849 = vadd.f32 0.0, %v2848
        %v2850 = vpop.f32.mrf.mxu0
        %v2851 = vadd.f32 0.0, %v2850
        %2852 = vmatmul.bf16.gmra.mxu0 %v2382
        %v2853 = vpop.f32.mrf.mxu0
        %v2854 = vadd.f32 0.0, %v2853
        %v2855 = vpop.f32.mrf.mxu0
        %v2856 = vadd.f32 0.0, %v2855
        %2857 = vmatmul.bf16.gmra.mxu0 %v2386
        %v2858 = vpop.f32.mrf.mxu0
        %v2859 = vadd.f32 0.0, %v2858
        %v2860 = vpop.f32.mrf.mxu0
        %v2861 = vadd.f32 0.0, %v2860
        %2862 = vmatmul.bf16.gmra.mxu0 %v2390
        %v2863 = vpop.f32.mrf.mxu0
        %v2864 = vadd.f32 0.0, %v2863
        %v2865 = vpop.f32.mrf.mxu0
        %v2866 = vadd.f32 0.0, %v2865
        %2867 = vmatmul.bf16.gmra.mxu0 %v2394
        %v2868 = vpop.f32.mrf.mxu0
        %v2869 = vadd.f32 0.0, %v2868
        %v2870 = vpop.f32.mrf.mxu0
        %v2871 = vadd.f32 0.0, %v2870
        %2872 = vmatmul.bf16.gmra.mxu0 %v2398
        %v2873 = vpop.f32.mrf.mxu0
        %v2874 = vadd.f32 0.0, %v2873
        %v2875 = vpop.f32.mrf.mxu0
        %v2876 = vadd.f32 0.0, %v2875
        %2877 = vmatmul.bf16.gmra.mxu0 %v2402
        %v2878 = vpop.f32.mrf.mxu0
        %v2879 = vadd.f32 0.0, %v2878
        %v2880 = vpop.f32.mrf.mxu0
        %v2881 = vadd.f32 0.0, %v2880
        %2882 = vmatmul.bf16.gmra.mxu0 %v2406
        %v2883 = vpop.f32.mrf.mxu0
        %v2884 = vadd.f32 0.0, %v2883
        %v2885 = vpop.f32.mrf.mxu0
        %v2886 = vadd.f32 0.0, %v2885
        %2887 = vmatmul.bf16.gmra.mxu0 %v2410
        %v2888 = vpop.f32.mrf.mxu0
        %v2889 = vadd.f32 0.0, %v2888
        %v2890 = vpop.f32.mrf.mxu0
        %v2891 = vadd.f32 0.0, %v2890
        %2892 = vmatmul.bf16.gmra.mxu0 %v2414
        %v2893 = vpop.f32.mrf.mxu0
        %v2894 = vadd.f32 0.0, %v2893
        %v2895 = vpop.f32.mrf.mxu0
        %v2896 = vadd.f32 0.0, %v2895
        %2897 = vmatmul.bf16.gmra.mxu0 %v2418
        %v2898 = vpop.f32.mrf.mxu0
        %v2899 = vadd.f32 0.0, %v2898
        %v2900 = vpop.f32.mrf.mxu0
        %v2901 = vadd.f32 0.0, %v2900
        %2902 = vmatmul.bf16.gmra.mxu0 %v2422
        %v2903 = vpop.f32.mrf.mxu0
        %v2904 = vadd.f32 0.0, %v2903
        %v2905 = vpop.f32.mrf.mxu0
        %v2906 = vadd.f32 0.0, %v2905
        %2907 = vmatmul.bf16.gmra.mxu0 %v2426
        %v2908 = vpop.f32.mrf.mxu0
        %v2909 = vadd.f32 0.0, %v2908
        %v2910 = vpop.f32.mrf.mxu0
        %v2911 = vadd.f32 0.0, %v2910
        %2912 = vmatmul.bf16.gmra.mxu0 %v2430
        %v2913 = vpop.f32.mrf.mxu0
        %v2914 = vadd.f32 0.0, %v2913
        %v2915 = vpop.f32.mrf.mxu0
        %v2916 = vadd.f32 0.0, %v2915
        %2917 = vmatmul.bf16.gmra.mxu0 %v2434
        %v2918 = vpop.f32.mrf.mxu0
        %v2919 = vadd.f32 0.0, %v2918
        %v2920 = vpop.f32.mrf.mxu0
        %v2921 = vadd.f32 0.0, %v2920
        %2922 = vmatmul.bf16.gmra.mxu0 %v2438
        %v2923 = vpop.f32.mrf.mxu0
        %v2924 = vadd.f32 0.0, %v2923
        %v2925 = vpop.f32.mrf.mxu0
        %v2926 = vadd.f32 0.0, %v2925
        %2927 = vmatmul.bf16.gmra.mxu0 %v2442
        %v2928 = vpop.f32.mrf.mxu0
        %v2929 = vadd.f32 0.0, %v2928
        %v2930 = vpop.f32.mrf.mxu0
        %v2931 = vadd.f32 0.0, %v2930
        %2932 = vmatmul.bf16.gmra.mxu0 %v2446
        %v2933 = vpop.f32.mrf.mxu0
        %v2934 = vadd.f32 0.0, %v2933
        %v2935 = vpop.f32.mrf.mxu0
        %v2936 = vadd.f32 0.0, %v2935
        %2937 = vmatmul.bf16.gmra.mxu0 %v2450
        %v2938 = vpop.f32.mrf.mxu0
        %v2939 = vadd.f32 0.0, %v2938
        %v2940 = vpop.f32.mrf.mxu0
        %v2941 = vadd.f32 0.0, %v2940
        %2942 = vdwg.mxu0
        %2943 = vmatpush.bf16.msra.mxu0 %v2725
        %2944 = vmatpush.bf16.msra.mxu0 %v2724
        %2945 = vmatpush.bf16.msra.mxu0 %v2723
        %2946 = vmatpush.bf16.msra.mxu0 %v2722
        %2947 = vmatpush.bf16.msra.mxu0 %v2721
        %2948 = vmatpush.bf16.msra.mxu0 %v2720
        %2949 = vmatpush.bf16.msra.mxu0 %v2719
        %2950 = vmatpush.bf16.msra.mxu0 %v2718
        %2951 = vmatmul.bf16.gmra.mxu0 %v2327
        %v2952 = vpop.f32.mrf.mxu0
        %v2953 = vadd.f32 %v2784, %v2952
        %v2954 = vpop.f32.mrf.mxu0
        %v2955 = vadd.f32 %v2786, %v2954
        %2956 = vmatmul.bf16.gmra.mxu0 %v2331
        %v2957 = vpop.f32.mrf.mxu0
        %v2958 = vadd.f32 %v2789, %v2957
        %v2959 = vpop.f32.mrf.mxu0
        %v2960 = vadd.f32 %v2791, %v2959
        %2961 = vmatmul.bf16.gmra.mxu0 %v2335
        %v2962 = vpop.f32.mrf.mxu0
        %v2963 = vadd.f32 %v2794, %v2962
        %v2964 = vpop.f32.mrf.mxu0
        %v2965 = vadd.f32 %v2796, %v2964
        %2966 = vmatmul.bf16.gmra.mxu0 %v2339
        %v2967 = vpop.f32.mrf.mxu0
        %v2968 = vadd.f32 %v2799, %v2967
        %v2969 = vpop.f32.mrf.mxu0
        %v2970 = vadd.f32 %v2801, %v2969
        %2971 = vmatmul.bf16.gmra.mxu0 %v2343
        %v2972 = vpop.f32.mrf.mxu0
        %v2973 = vadd.f32 %v2804, %v2972
        %v2974 = vpop.f32.mrf.mxu0
        %v2975 = vadd.f32 %v2806, %v2974
        %2976 = vmatmul.bf16.gmra.mxu0 %v2347
        %v2977 = vpop.f32.mrf.mxu0
        %v2978 = vadd.f32 %v2809, %v2977
        %v2979 = vpop.f32.mrf.mxu0
        %v2980 = vadd.f32 %v2811, %v2979
        %2981 = vmatmul.bf16.gmra.mxu0 %v2351
        %v2982 = vpop.f32.mrf.mxu0
        %v2983 = vadd.f32 %v2814, %v2982
        %v2984 = vpop.f32.mrf.mxu0
        %v2985 = vadd.f32 %v2816, %v2984
        %2986 = vmatmul.bf16.gmra.mxu0 %v2355
        %v2987 = vpop.f32.mrf.mxu0
        %v2988 = vadd.f32 %v2819, %v2987
        %v2989 = vpop.f32.mrf.mxu0
        %v2990 = vadd.f32 %v2821, %v2989
        %2991 = vmatmul.bf16.gmra.mxu0 %v2359
        %v2992 = vpop.f32.mrf.mxu0
        %v2993 = vadd.f32 %v2824, %v2992
        %v2994 = vpop.f32.mrf.mxu0
        %v2995 = vadd.f32 %v2826, %v2994
        %2996 = vmatmul.bf16.gmra.mxu0 %v2363
        %v2997 = vpop.f32.mrf.mxu0
        %v2998 = vadd.f32 %v2829, %v2997
        %v2999 = vpop.f32.mrf.mxu0
        %v3000 = vadd.f32 %v2831, %v2999
        %3001 = vmatmul.bf16.gmra.mxu0 %v2367
        %v3002 = vpop.f32.mrf.mxu0
        %v3003 = vadd.f32 %v2834, %v3002
        %v3004 = vpop.f32.mrf.mxu0
        %v3005 = vadd.f32 %v2836, %v3004
        %3006 = vmatmul.bf16.gmra.mxu0 %v2371
        %v3007 = vpop.f32.mrf.mxu0
        %v3008 = vadd.f32 %v2839, %v3007
        %v3009 = vpop.f32.mrf.mxu0
        %v3010 = vadd.f32 %v2841, %v3009
        %3011 = vmatmul.bf16.gmra.mxu0 %v2375
        %v3012 = vpop.f32.mrf.mxu0
        %v3013 = vadd.f32 %v2844, %v3012
        %v3014 = vpop.f32.mrf.mxu0
        %v3015 = vadd.f32 %v2846, %v3014
        %3016 = vmatmul.bf16.gmra.mxu0 %v2379
        %v3017 = vpop.f32.mrf.mxu0
        %v3018 = vadd.f32 %v2849, %v3017
        %v3019 = vpop.f32.mrf.mxu0
        %v3020 = vadd.f32 %v2851, %v3019
        %3021 = vmatmul.bf16.gmra.mxu0 %v2383
        %v3022 = vpop.f32.mrf.mxu0
        %v3023 = vadd.f32 %v2854, %v3022
        %v3024 = vpop.f32.mrf.mxu0
        %v3025 = vadd.f32 %v2856, %v3024
        %3026 = vmatmul.bf16.gmra.mxu0 %v2387
        %v3027 = vpop.f32.mrf.mxu0
        %v3028 = vadd.f32 %v2859, %v3027
        %v3029 = vpop.f32.mrf.mxu0
        %v3030 = vadd.f32 %v2861, %v3029
        %3031 = vmatmul.bf16.gmra.mxu0 %v2391
        %v3032 = vpop.f32.mrf.mxu0
        %v3033 = vadd.f32 %v2864, %v3032
        %v3034 = vpop.f32.mrf.mxu0
        %v3035 = vadd.f32 %v2866, %v3034
        %3036 = vmatmul.bf16.gmra.mxu0 %v2395
        %v3037 = vpop.f32.mrf.mxu0
        %v3038 = vadd.f32 %v2869, %v3037
        %v3039 = vpop.f32.mrf.mxu0
        %v3040 = vadd.f32 %v2871, %v3039
        %3041 = vmatmul.bf16.gmra.mxu0 %v2399
        %v3042 = vpop.f32.mrf.mxu0
        %v3043 = vadd.f32 %v2874, %v3042
        %v3044 = vpop.f32.mrf.mxu0
        %v3045 = vadd.f32 %v2876, %v3044
        %3046 = vmatmul.bf16.gmra.mxu0 %v2403
        %v3047 = vpop.f32.mrf.mxu0
        %v3048 = vadd.f32 %v2879, %v3047
        %v3049 = vpop.f32.mrf.mxu0
        %v3050 = vadd.f32 %v2881, %v3049
        %3051 = vmatmul.bf16.gmra.mxu0 %v2407
        %v3052 = vpop.f32.mrf.mxu0
        %v3053 = vadd.f32 %v2884, %v3052
        %v3054 = vpop.f32.mrf.mxu0
        %v3055 = vadd.f32 %v2886, %v3054
        %3056 = vmatmul.bf16.gmra.mxu0 %v2411
        %v3057 = vpop.f32.mrf.mxu0
        %v3058 = vadd.f32 %v2889, %v3057
        %v3059 = vpop.f32.mrf.mxu0
        %v3060 = vadd.f32 %v2891, %v3059
        %3061 = vmatmul.bf16.gmra.mxu0 %v2415
        %v3062 = vpop.f32.mrf.mxu0
        %v3063 = vadd.f32 %v2894, %v3062
        %v3064 = vpop.f32.mrf.mxu0
        %v3065 = vadd.f32 %v2896, %v3064
        %3066 = vmatmul.bf16.gmra.mxu0 %v2419
        %v3067 = vpop.f32.mrf.mxu0
        %v3068 = vadd.f32 %v2899, %v3067
        %v3069 = vpop.f32.mrf.mxu0
        %v3070 = vadd.f32 %v2901, %v3069
        %3071 = vmatmul.bf16.gmra.mxu0 %v2423
        %v3072 = vpop.f32.mrf.mxu0
        %v3073 = vadd.f32 %v2904, %v3072
        %v3074 = vpop.f32.mrf.mxu0
        %v3075 = vadd.f32 %v2906, %v3074
        %3076 = vmatmul.bf16.gmra.mxu0 %v2427
        %v3077 = vpop.f32.mrf.mxu0
        %v3078 = vadd.f32 %v2909, %v3077
        %v3079 = vpop.f32.mrf.mxu0
        %v3080 = vadd.f32 %v2911, %v3079
        %3081 = vmatmul.bf16.gmra.mxu0 %v2431
        %v3082 = vpop.f32.mrf.mxu0
        %v3083 = vadd.f32 %v2914, %v3082
        %v3084 = vpop.f32.mrf.mxu0
        %v3085 = vadd.f32 %v2916, %v3084
        %3086 = vmatmul.bf16.gmra.mxu0 %v2435
        %v3087 = vpop.f32.mrf.mxu0
        %v3088 = vadd.f32 %v2919, %v3087
        %v3089 = vpop.f32.mrf.mxu0
        %v3090 = vadd.f32 %v2921, %v3089
        %3091 = vmatmul.bf16.gmra.mxu0 %v2439
        %v3092 = vpop.f32.mrf.mxu0
        %v3093 = vadd.f32 %v2924, %v3092
        %v3094 = vpop.f32.mrf.mxu0
        %v3095 = vadd.f32 %v2926, %v3094
        %3096 = vmatmul.bf16.gmra.mxu0 %v2443
        %v3097 = vpop.f32.mrf.mxu0
        %v3098 = vadd.f32 %v2929, %v3097
        %v3099 = vpop.f32.mrf.mxu0
        %v3100 = vadd.f32 %v2931, %v3099
        %3101 = vmatmul.bf16.gmra.mxu0 %v2447
        %v3102 = vpop.f32.mrf.mxu0
        %v3103 = vadd.f32 %v2934, %v3102
        %v3104 = vpop.f32.mrf.mxu0
        %v3105 = vadd.f32 %v2936, %v3104
        %3106 = vmatmul.bf16.gmra.mxu0 %v2451
        %v3107 = vpop.f32.mrf.mxu0
        %v3108 = vadd.f32 %v2939, %v3107
        %v3109 = vpop.f32.mrf.mxu0
        %v3110 = vadd.f32 %v2941, %v3109
        %3111 = vdwg.mxu0
        %3112 = vmatpush.bf16.msra.mxu0 %v2733
        %3113 = vmatpush.bf16.msra.mxu0 %v2732
        %3114 = vmatpush.bf16.msra.mxu0 %v2731
        %3115 = vmatpush.bf16.msra.mxu0 %v2730
        %3116 = vmatpush.bf16.msra.mxu0 %v2729
        %3117 = vmatpush.bf16.msra.mxu0 %v2728
        %3118 = vmatpush.bf16.msra.mxu0 %v2727
        %3119 = vmatpush.bf16.msra.mxu0 %v2726
        %3120 = vmatmul.bf16.gmra.mxu0 %v2328
        %v3121 = vpop.f32.mrf.mxu0
        %v3122 = vadd.f32 %v2953, %v3121
        %v3123 = vpop.f32.mrf.mxu0
        %v3124 = vadd.f32 %v2955, %v3123
        %3125 = vmatmul.bf16.gmra.mxu0 %v2332
        %v3126 = vpop.f32.mrf.mxu0
        %v3127 = vadd.f32 %v2958, %v3126
        %v3128 = vpop.f32.mrf.mxu0
        %v3129 = vadd.f32 %v2960, %v3128
        %3130 = vmatmul.bf16.gmra.mxu0 %v2336
        %v3131 = vpop.f32.mrf.mxu0
        %v3132 = vadd.f32 %v2963, %v3131
        %v3133 = vpop.f32.mrf.mxu0
        %v3134 = vadd.f32 %v2965, %v3133
        %3135 = vmatmul.bf16.gmra.mxu0 %v2340
        %v3136 = vpop.f32.mrf.mxu0
        %v3137 = vadd.f32 %v2968, %v3136
        %v3138 = vpop.f32.mrf.mxu0
        %v3139 = vadd.f32 %v2970, %v3138
        %3140 = vmatmul.bf16.gmra.mxu0 %v2344
        %v3141 = vpop.f32.mrf.mxu0
        %v3142 = vadd.f32 %v2973, %v3141
        %v3143 = vpop.f32.mrf.mxu0
        %v3144 = vadd.f32 %v2975, %v3143
        %3145 = vmatmul.bf16.gmra.mxu0 %v2348
        %v3146 = vpop.f32.mrf.mxu0
        %v3147 = vadd.f32 %v2978, %v3146
        %v3148 = vpop.f32.mrf.mxu0
        %v3149 = vadd.f32 %v2980, %v3148
        %3150 = vmatmul.bf16.gmra.mxu0 %v2352
        %v3151 = vpop.f32.mrf.mxu0
        %v3152 = vadd.f32 %v2983, %v3151
        %v3153 = vpop.f32.mrf.mxu0
        %v3154 = vadd.f32 %v2985, %v3153
        %3155 = vmatmul.bf16.gmra.mxu0 %v2356
        %v3156 = vpop.f32.mrf.mxu0
        %v3157 = vadd.f32 %v2988, %v3156
        %v3158 = vpop.f32.mrf.mxu0
        %v3159 = vadd.f32 %v2990, %v3158
        %3160 = vmatmul.bf16.gmra.mxu0 %v2360
        %v3161 = vpop.f32.mrf.mxu0
        %v3162 = vadd.f32 %v2993, %v3161
        %v3163 = vpop.f32.mrf.mxu0
        %v3164 = vadd.f32 %v2995, %v3163
        %3165 = vmatmul.bf16.gmra.mxu0 %v2364
        %v3166 = vpop.f32.mrf.mxu0
        %v3167 = vadd.f32 %v2998, %v3166
        %v3168 = vpop.f32.mrf.mxu0
        %v3169 = vadd.f32 %v3000, %v3168
        %3170 = vmatmul.bf16.gmra.mxu0 %v2368
        %v3171 = vpop.f32.mrf.mxu0
        %v3172 = vadd.f32 %v3003, %v3171
        %v3173 = vpop.f32.mrf.mxu0
        %v3174 = vadd.f32 %v3005, %v3173
        %3175 = vmatmul.bf16.gmra.mxu0 %v2372
        %v3176 = vpop.f32.mrf.mxu0
        %v3177 = vadd.f32 %v3008, %v3176
        %v3178 = vpop.f32.mrf.mxu0
        %v3179 = vadd.f32 %v3010, %v3178
        %3180 = vmatmul.bf16.gmra.mxu0 %v2376
        %v3181 = vpop.f32.mrf.mxu0
        %v3182 = vadd.f32 %v3013, %v3181
        %v3183 = vpop.f32.mrf.mxu0
        %v3184 = vadd.f32 %v3015, %v3183
        %3185 = vmatmul.bf16.gmra.mxu0 %v2380
        %v3186 = vpop.f32.mrf.mxu0
        %v3187 = vadd.f32 %v3018, %v3186
        %v3188 = vpop.f32.mrf.mxu0
        %v3189 = vadd.f32 %v3020, %v3188
        %3190 = vmatmul.bf16.gmra.mxu0 %v2384
        %v3191 = vpop.f32.mrf.mxu0
        %v3192 = vadd.f32 %v3023, %v3191
        %v3193 = vpop.f32.mrf.mxu0
        %v3194 = vadd.f32 %v3025, %v3193
        %3195 = vmatmul.bf16.gmra.mxu0 %v2388
        %v3196 = vpop.f32.mrf.mxu0
        %v3197 = vadd.f32 %v3028, %v3196
        %v3198 = vpop.f32.mrf.mxu0
        %v3199 = vadd.f32 %v3030, %v3198
        %3200 = vmatmul.bf16.gmra.mxu0 %v2392
        %v3201 = vpop.f32.mrf.mxu0
        %v3202 = vadd.f32 %v3033, %v3201
        %v3203 = vpop.f32.mrf.mxu0
        %v3204 = vadd.f32 %v3035, %v3203
        %3205 = vmatmul.bf16.gmra.mxu0 %v2396
        %v3206 = vpop.f32.mrf.mxu0
        %v3207 = vadd.f32 %v3038, %v3206
        %v3208 = vpop.f32.mrf.mxu0
        %v3209 = vadd.f32 %v3040, %v3208
        %3210 = vmatmul.bf16.gmra.mxu0 %v2400
        %v3211 = vpop.f32.mrf.mxu0
        %v3212 = vadd.f32 %v3043, %v3211
        %v3213 = vpop.f32.mrf.mxu0
        %v3214 = vadd.f32 %v3045, %v3213
        %3215 = vmatmul.bf16.gmra.mxu0 %v2404
        %v3216 = vpop.f32.mrf.mxu0
        %v3217 = vadd.f32 %v3048, %v3216
        %v3218 = vpop.f32.mrf.mxu0
        %v3219 = vadd.f32 %v3050, %v3218
        %3220 = vmatmul.bf16.gmra.mxu0 %v2408
        %v3221 = vpop.f32.mrf.mxu0
        %v3222 = vadd.f32 %v3053, %v3221
        %v3223 = vpop.f32.mrf.mxu0
        %v3224 = vadd.f32 %v3055, %v3223
        %3225 = vmatmul.bf16.gmra.mxu0 %v2412
        %v3226 = vpop.f32.mrf.mxu0
        %v3227 = vadd.f32 %v3058, %v3226
        %v3228 = vpop.f32.mrf.mxu0
        %v3229 = vadd.f32 %v3060, %v3228
        %3230 = vmatmul.bf16.gmra.mxu0 %v2416
        %v3231 = vpop.f32.mrf.mxu0
        %v3232 = vadd.f32 %v3063, %v3231
        %v3233 = vpop.f32.mrf.mxu0
        %v3234 = vadd.f32 %v3065, %v3233
        %3235 = vmatmul.bf16.gmra.mxu0 %v2420
        %v3236 = vpop.f32.mrf.mxu0
        %v3237 = vadd.f32 %v3068, %v3236
        %v3238 = vpop.f32.mrf.mxu0
        %v3239 = vadd.f32 %v3070, %v3238
        %3240 = vmatmul.bf16.gmra.mxu0 %v2424
        %v3241 = vpop.f32.mrf.mxu0
        %v3242 = vadd.f32 %v3073, %v3241
        %v3243 = vpop.f32.mrf.mxu0
        %v3244 = vadd.f32 %v3075, %v3243
        %3245 = vmatmul.bf16.gmra.mxu0 %v2428
        %v3246 = vpop.f32.mrf.mxu0
        %v3247 = vadd.f32 %v3078, %v3246
        %v3248 = vpop.f32.mrf.mxu0
        %v3249 = vadd.f32 %v3080, %v3248
        %3250 = vmatmul.bf16.gmra.mxu0 %v2432
        %v3251 = vpop.f32.mrf.mxu0
        %v3252 = vadd.f32 %v3083, %v3251
        %v3253 = vpop.f32.mrf.mxu0
        %v3254 = vadd.f32 %v3085, %v3253
        %3255 = vmatmul.bf16.gmra.mxu0 %v2436
        %v3256 = vpop.f32.mrf.mxu0
        %v3257 = vadd.f32 %v3088, %v3256
        %v3258 = vpop.f32.mrf.mxu0
        %v3259 = vadd.f32 %v3090, %v3258
        %3260 = vmatmul.bf16.gmra.mxu0 %v2440
        %v3261 = vpop.f32.mrf.mxu0
        %v3262 = vadd.f32 %v3093, %v3261
        %v3263 = vpop.f32.mrf.mxu0
        %v3264 = vadd.f32 %v3095, %v3263
        %3265 = vmatmul.bf16.gmra.mxu0 %v2444
        %v3266 = vpop.f32.mrf.mxu0
        %v3267 = vadd.f32 %v3098, %v3266
        %v3268 = vpop.f32.mrf.mxu0
        %v3269 = vadd.f32 %v3100, %v3268
        %3270 = vmatmul.bf16.gmra.mxu0 %v2448
        %v3271 = vpop.f32.mrf.mxu0
        %v3272 = vadd.f32 %v3103, %v3271
        %v3273 = vpop.f32.mrf.mxu0
        %v3274 = vadd.f32 %v3105, %v3273
        %3275 = vmatmul.bf16.gmra.mxu0 %v2452
        %v3276 = vpop.f32.mrf.mxu0
        %v3277 = vadd.f32 %v3108, %v3276
        %v3278 = vpop.f32.mrf.mxu0
        %v3279 = vadd.f32 %v3110, %v3278
        %3280 = vdwg.mxu0
        %3281 = vmatpush.bf16.msra.mxu0 %v2741
        %3282 = vmatpush.bf16.msra.mxu0 %v2740
        %3283 = vmatpush.bf16.msra.mxu0 %v2739
        %3284 = vmatpush.bf16.msra.mxu0 %v2738
        %3285 = vmatpush.bf16.msra.mxu0 %v2737
        %3286 = vmatpush.bf16.msra.mxu0 %v2736
        %3287 = vmatpush.bf16.msra.mxu0 %v2735
        %3288 = vmatpush.bf16.msra.mxu0 %v2734
        %3289 = vmatmul.bf16.gmra.mxu0 %v2329
        %v3290 = vpop.f32.mrf.mxu0
        %v3291 = vadd.f32 %v3122, %v3290
        %v3292 = vpop.f32.mrf.mxu0
        %v3293 = vadd.f32 %v3124, %v3292
        %3294 = vmatmul.bf16.gmra.mxu0 %v2333
        %v3295 = vpop.f32.mrf.mxu0
        %v3296 = vadd.f32 %v3127, %v3295
        %v3297 = vpop.f32.mrf.mxu0
        %v3298 = vadd.f32 %v3129, %v3297
        %3299 = vmatmul.bf16.gmra.mxu0 %v2337
        %v3300 = vpop.f32.mrf.mxu0
        %v3301 = vadd.f32 %v3132, %v3300
        %v3302 = vpop.f32.mrf.mxu0
        %v3303 = vadd.f32 %v3134, %v3302
        %3304 = vmatmul.bf16.gmra.mxu0 %v2341
        %v3305 = vpop.f32.mrf.mxu0
        %v3306 = vadd.f32 %v3137, %v3305
        %v3307 = vpop.f32.mrf.mxu0
        %v3308 = vadd.f32 %v3139, %v3307
        %3309 = vmatmul.bf16.gmra.mxu0 %v2345
        %v3310 = vpop.f32.mrf.mxu0
        %v3311 = vadd.f32 %v3142, %v3310
        %v3312 = vpop.f32.mrf.mxu0
        %v3313 = vadd.f32 %v3144, %v3312
        %3314 = vmatmul.bf16.gmra.mxu0 %v2349
        %v3315 = vpop.f32.mrf.mxu0
        %v3316 = vadd.f32 %v3147, %v3315
        %v3317 = vpop.f32.mrf.mxu0
        %v3318 = vadd.f32 %v3149, %v3317
        %3319 = vmatmul.bf16.gmra.mxu0 %v2353
        %v3320 = vpop.f32.mrf.mxu0
        %v3321 = vadd.f32 %v3152, %v3320
        %v3322 = vpop.f32.mrf.mxu0
        %v3323 = vadd.f32 %v3154, %v3322
        %3324 = vmatmul.bf16.gmra.mxu0 %v2357
        %v3325 = vpop.f32.mrf.mxu0
        %v3326 = vadd.f32 %v3157, %v3325
        %v3327 = vpop.f32.mrf.mxu0
        %v3328 = vadd.f32 %v3159, %v3327
        %3329 = vmatmul.bf16.gmra.mxu0 %v2361
        %v3330 = vpop.f32.mrf.mxu0
        %v3331 = vadd.f32 %v3162, %v3330
        %v3332 = vpop.f32.mrf.mxu0
        %v3333 = vadd.f32 %v3164, %v3332
        %3334 = vmatmul.bf16.gmra.mxu0 %v2365
        %v3335 = vpop.f32.mrf.mxu0
        %v3336 = vadd.f32 %v3167, %v3335
        %v3337 = vpop.f32.mrf.mxu0
        %v3338 = vadd.f32 %v3169, %v3337
        %3339 = vmatmul.bf16.gmra.mxu0 %v2369
        %v3340 = vpop.f32.mrf.mxu0
        %v3341 = vadd.f32 %v3172, %v3340
        %v3342 = vpop.f32.mrf.mxu0
        %v3343 = vadd.f32 %v3174, %v3342
        %3344 = vmatmul.bf16.gmra.mxu0 %v2373
        %v3345 = vpop.f32.mrf.mxu0
        %v3346 = vadd.f32 %v3177, %v3345
        %v3347 = vpop.f32.mrf.mxu0
        %v3348 = vadd.f32 %v3179, %v3347
        %3349 = vmatmul.bf16.gmra.mxu0 %v2377
        %v3350 = vpop.f32.mrf.mxu0
        %v3351 = vadd.f32 %v3182, %v3350
        %v3352 = vpop.f32.mrf.mxu0
        %v3353 = vadd.f32 %v3184, %v3352
        %3354 = vmatmul.bf16.gmra.mxu0 %v2381
        %v3355 = vpop.f32.mrf.mxu0
        %v3356 = vadd.f32 %v3187, %v3355
        %v3357 = vpop.f32.mrf.mxu0
        %v3358 = vadd.f32 %v3189, %v3357
        %3359 = vmatmul.bf16.gmra.mxu0 %v2385
        %v3360 = vpop.f32.mrf.mxu0
        %v3361 = vadd.f32 %v3192, %v3360
        %v3362 = vpop.f32.mrf.mxu0
        %v3363 = vadd.f32 %v3194, %v3362
        %3364 = vmatmul.bf16.gmra.mxu0 %v2389
        %v3365 = vpop.f32.mrf.mxu0
        %v3366 = vadd.f32 %v3197, %v3365
        %v3367 = vpop.f32.mrf.mxu0
        %v3368 = vadd.f32 %v3199, %v3367
        %3369 = vmatmul.bf16.gmra.mxu0 %v2393
        %v3370 = vpop.f32.mrf.mxu0
        %v3371 = vadd.f32 %v3202, %v3370
        %v3372 = vpop.f32.mrf.mxu0
        %v3373 = vadd.f32 %v3204, %v3372
        %3374 = vmatmul.bf16.gmra.mxu0 %v2397
        %v3375 = vpop.f32.mrf.mxu0
        %v3376 = vadd.f32 %v3207, %v3375
        %v3377 = vpop.f32.mrf.mxu0
        %v3378 = vadd.f32 %v3209, %v3377
        %3379 = vmatmul.bf16.gmra.mxu0 %v2401
        %v3380 = vpop.f32.mrf.mxu0
        %v3381 = vadd.f32 %v3212, %v3380
        %v3382 = vpop.f32.mrf.mxu0
        %v3383 = vadd.f32 %v3214, %v3382
        %3384 = vmatmul.bf16.gmra.mxu0 %v2405
        %v3385 = vpop.f32.mrf.mxu0
        %v3386 = vadd.f32 %v3217, %v3385
        %v3387 = vpop.f32.mrf.mxu0
        %v3388 = vadd.f32 %v3219, %v3387
        %3389 = vmatmul.bf16.gmra.mxu0 %v2409
        %v3390 = vpop.f32.mrf.mxu0
        %v3391 = vadd.f32 %v3222, %v3390
        %v3392 = vpop.f32.mrf.mxu0
        %v3393 = vadd.f32 %v3224, %v3392
        %3394 = vmatmul.bf16.gmra.mxu0 %v2413
        %v3395 = vpop.f32.mrf.mxu0
        %v3396 = vadd.f32 %v3227, %v3395
        %v3397 = vpop.f32.mrf.mxu0
        %v3398 = vadd.f32 %v3229, %v3397
        %3399 = vmatmul.bf16.gmra.mxu0 %v2417
        %v3400 = vpop.f32.mrf.mxu0
        %v3401 = vadd.f32 %v3232, %v3400
        %v3402 = vpop.f32.mrf.mxu0
        %v3403 = vadd.f32 %v3234, %v3402
        %3404 = vmatmul.bf16.gmra.mxu0 %v2421
        %v3405 = vpop.f32.mrf.mxu0
        %v3406 = vadd.f32 %v3237, %v3405
        %v3407 = vpop.f32.mrf.mxu0
        %v3408 = vadd.f32 %v3239, %v3407
        %3409 = vmatmul.bf16.gmra.mxu0 %v2425
        %v3410 = vpop.f32.mrf.mxu0
        %v3411 = vadd.f32 %v3242, %v3410
        %v3412 = vpop.f32.mrf.mxu0
        %v3413 = vadd.f32 %v3244, %v3412
        %3414 = vmatmul.bf16.gmra.mxu0 %v2429
        %v3415 = vpop.f32.mrf.mxu0
        %v3416 = vadd.f32 %v3247, %v3415
        %v3417 = vpop.f32.mrf.mxu0
        %v3418 = vadd.f32 %v3249, %v3417
        %3419 = vmatmul.bf16.gmra.mxu0 %v2433
        %v3420 = vpop.f32.mrf.mxu0
        %v3421 = vadd.f32 %v3252, %v3420
        %v3422 = vpop.f32.mrf.mxu0
        %v3423 = vadd.f32 %v3254, %v3422
        %3424 = vmatmul.bf16.gmra.mxu0 %v2437
        %v3425 = vpop.f32.mrf.mxu0
        %v3426 = vadd.f32 %v3257, %v3425
        %v3427 = vpop.f32.mrf.mxu0
        %v3428 = vadd.f32 %v3259, %v3427
        %3429 = vmatmul.bf16.gmra.mxu0 %v2441
        %v3430 = vpop.f32.mrf.mxu0
        %v3431 = vadd.f32 %v3262, %v3430
        %v3432 = vpop.f32.mrf.mxu0
        %v3433 = vadd.f32 %v3264, %v3432
        %3434 = vmatmul.bf16.gmra.mxu0 %v2445
        %v3435 = vpop.f32.mrf.mxu0
        %v3436 = vadd.f32 %v3267, %v3435
        %v3437 = vpop.f32.mrf.mxu0
        %v3438 = vadd.f32 %v3269, %v3437
        %3439 = vmatmul.bf16.gmra.mxu0 %v2449
        %v3440 = vpop.f32.mrf.mxu0
        %v3441 = vadd.f32 %v3272, %v3440
        %v3442 = vpop.f32.mrf.mxu0
        %v3443 = vadd.f32 %v3274, %v3442
        %3444 = vmatmul.bf16.gmra.mxu0 %v2453
        %v3445 = vpop.f32.mrf.mxu0
        %v3446 = vadd.f32 %v3277, %v3445
        %v3447 = vpop.f32.mrf.mxu0
        %v3448 = vadd.f32 %v3279, %v3447
        %3449 = vdwg.mxu0
        %v3450 = vadd.f32 %v1810, %v3291
        %v3451 = vadd.f32 %v1811, %v3293
        %v3452 = vadd.f32 %v1812, %v3296
        %v3453 = vadd.f32 %v1813, %v3298
        %v3454 = vadd.f32 %v1814, %v3301
        %v3455 = vadd.f32 %v1815, %v3303
        %v3456 = vadd.f32 %v1816, %v3306
        %v3457 = vadd.f32 %v1817, %v3308
        %v3458 = vadd.f32 %v1818, %v3311
        %v3459 = vadd.f32 %v1819, %v3313
        %v3460 = vadd.f32 %v1820, %v3316
        %v3461 = vadd.f32 %v1821, %v3318
        %v3462 = vadd.f32 %v1822, %v3321
        %v3463 = vadd.f32 %v1823, %v3323
        %v3464 = vadd.f32 %v1824, %v3326
        %v3465 = vadd.f32 %v1825, %v3328
        %v3466 = vadd.f32 %v1826, %v3331
        %v3467 = vadd.f32 %v1827, %v3333
        %v3468 = vadd.f32 %v1828, %v3336
        %v3469 = vadd.f32 %v1829, %v3338
        %v3470 = vadd.f32 %v1830, %v3341
        %v3471 = vadd.f32 %v1831, %v3343
        %v3472 = vadd.f32 %v1832, %v3346
        %v3473 = vadd.f32 %v1833, %v3348
        %v3474 = vadd.f32 %v1834, %v3351
        %v3475 = vadd.f32 %v1835, %v3353
        %v3476 = vadd.f32 %v1836, %v3356
        %v3477 = vadd.f32 %v1837, %v3358
        %v3478 = vadd.f32 %v1838, %v3361
        %v3479 = vadd.f32 %v1839, %v3363
        %v3480 = vadd.f32 %v1840, %v3366
        %v3481 = vadd.f32 %v1841, %v3368
        %v3482 = vadd.f32 %v1842, %v3371
        %v3483 = vadd.f32 %v1843, %v3373
        %v3484 = vadd.f32 %v1844, %v3376
        %v3485 = vadd.f32 %v1845, %v3378
        %v3486 = vadd.f32 %v1846, %v3381
        %v3487 = vadd.f32 %v1847, %v3383
        %v3488 = vadd.f32 %v1848, %v3386
        %v3489 = vadd.f32 %v1849, %v3388
        %v3490 = vadd.f32 %v1850, %v3391
        %v3491 = vadd.f32 %v1851, %v3393
        %v3492 = vadd.f32 %v1852, %v3396
        %v3493 = vadd.f32 %v1853, %v3398
        %v3494 = vadd.f32 %v1854, %v3401
        %v3495 = vadd.f32 %v1855, %v3403
        %v3496 = vadd.f32 %v1856, %v3406
        %v3497 = vadd.f32 %v1857, %v3408
        %v3498 = vadd.f32 %v1858, %v3411
        %v3499 = vadd.f32 %v1859, %v3413
        %v3500 = vadd.f32 %v1860, %v3416
        %v3501 = vadd.f32 %v1861, %v3418
        %v3502 = vadd.f32 %v1862, %v3421
        %v3503 = vadd.f32 %v1863, %v3423
        %v3504 = vadd.f32 %v1864, %v3426
        %v3505 = vadd.f32 %v1865, %v3428
        %v3506 = vadd.f32 %v1866, %v3431
        %v3507 = vadd.f32 %v1867, %v3433
        %v3508 = vadd.f32 %v1868, %v3436
        %v3509 = vadd.f32 %v1869, %v3438
        %v3510 = vadd.f32 %v1870, %v3441
        %v3511 = vadd.f32 %v1871, %v3443
        %v3512 = vadd.f32 %v1872, %v3446
        %v3513 = vadd.f32 %v1873, %v3448
        %3514 = vst [vmem:[#allocation2] sm:$0xff] %v3450
        %3515 = vst [vmem:[#allocation2 + $0x8] sm:$0xff] %v3451
        %3516 = vst [vmem:[#allocation2 + $0x10] sm:$0xff] %v3452
        %3517 = vst [vmem:[#allocation2 + $0x18] sm:$0xff] %v3453
        %3518 = vst [vmem:[#allocation2 + $0x20] sm:$0xff] %v3454
        %3519 = vst [vmem:[#allocation2 + $0x28] sm:$0xff] %v3455
        %3520 = vst [vmem:[#allocation2 + $0x30] sm:$0xff] %v3456
        %3521 = vst [vmem:[#allocation2 + $0x38] sm:$0xff] %v3457
        %3522 = vst [vmem:[#allocation2 + $0x40] sm:$0xff] %v3458
        %3523 = vst [vmem:[#allocation2 + $0x48] sm:$0xff] %v3459
        %3524 = vst [vmem:[#allocation2 + $0x50] sm:$0xff] %v3460
        %3525 = vst [vmem:[#allocation2 + $0x58] sm:$0xff] %v3461
        %3526 = vst [vmem:[#allocation2 + $0x60] sm:$0xff] %v3462
        %3527 = vst [vmem:[#allocation2 + $0x68] sm:$0xff] %v3463
        %3528 = vst [vmem:[#allocation2 + $0x70] sm:$0xff] %v3464
        %3529 = vst [vmem:[#allocation2 + $0x78] sm:$0xff] %v3465
        %3530 = vst [vmem:[#allocation2 + $0x80] sm:$0xff] %v3466
        %3531 = vst [vmem:[#allocation2 + $0x88] sm:$0xff] %v3467
        %3532 = vst [vmem:[#allocation2 + $0x90] sm:$0xff] %v3468
        %3533 = vst [vmem:[#allocation2 + $0x98] sm:$0xff] %v3469
        %3534 = vst [vmem:[#allocation2 + $0xa0] sm:$0xff] %v3470
        %3535 = vst [vmem:[#allocation2 + $0xa8] sm:$0xff] %v3471
        %3536 = vst [vmem:[#allocation2 + $0xb0] sm:$0xff] %v3472
        %3537 = vst [vmem:[#allocation2 + $0xb8] sm:$0xff] %v3473
        %3538 = vst [vmem:[#allocation2 + $0xc0] sm:$0xff] %v3474
        %3539 = vst [vmem:[#allocation2 + $0xc8] sm:$0xff] %v3475
        %3540 = vst [vmem:[#allocation2 + $0xd0] sm:$0xff] %v3476
        %3541 = vst [vmem:[#allocation2 + $0xd8] sm:$0xff] %v3477
        %3542 = vst [vmem:[#allocation2 + $0xe0] sm:$0xff] %v3478
        %3543 = vst [vmem:[#allocation2 + $0xe8] sm:$0xff] %v3479
        %3544 = vst [vmem:[#allocation2 + $0xf0] sm:$0xff] %v3480
        %3545 = vst [vmem:[#allocation2 + $0xf8] sm:$0xff] %v3481
        %3546 = vst [vmem:[#allocation2 + $0x100] sm:$0xff] %v3482
        %3547 = vst [vmem:[#allocation2 + $0x108] sm:$0xff] %v3483
        %3548 = vst [vmem:[#allocation2 + $0x110] sm:$0xff] %v3484
        %3549 = vst [vmem:[#allocation2 + $0x118] sm:$0xff] %v3485
        %3550 = vst [vmem:[#allocation2 + $0x120] sm:$0xff] %v3486
        %3551 = vst [vmem:[#allocation2 + $0x128] sm:$0xff] %v3487
        %3552 = vst [vmem:[#allocation2 + $0x130] sm:$0xff] %v3488
        %3553 = vst [vmem:[#allocation2 + $0x138] sm:$0xff] %v3489
        %3554 = vst [vmem:[#allocation2 + $0x140] sm:$0xff] %v3490
        %3555 = vst [vmem:[#allocation2 + $0x148] sm:$0xff] %v3491
        %3556 = vst [vmem:[#allocation2 + $0x150] sm:$0xff] %v3492
        %3557 = vst [vmem:[#allocation2 + $0x158] sm:$0xff] %v3493
        %3558 = vst [vmem:[#allocation2 + $0x160] sm:$0xff] %v3494
        %3559 = vst [vmem:[#allocation2 + $0x168] sm:$0xff] %v3495
        %3560 = vst [vmem:[#allocation2 + $0x170] sm:$0xff] %v3496
        %3561 = vst [vmem:[#allocation2 + $0x178] sm:$0xff] %v3497
        %3562 = vst [vmem:[#allocation2 + $0x180] sm:$0xff] %v3498
        %3563 = vst [vmem:[#allocation2 + $0x188] sm:$0xff] %v3499
        %3564 = vst [vmem:[#allocation2 + $0x190] sm:$0xff] %v3500
        %3565 = vst [vmem:[#allocation2 + $0x198] sm:$0xff] %v3501
        %3566 = vst [vmem:[#allocation2 + $0x1a0] sm:$0xff] %v3502
        %3567 = vst [vmem:[#allocation2 + $0x1a8] sm:$0xff] %v3503
        %3568 = vst [vmem:[#allocation2 + $0x1b0] sm:$0xff] %v3504
        %3569 = vst [vmem:[#allocation2 + $0x1b8] sm:$0xff] %v3505
        %3570 = vst [vmem:[#allocation2 + $0x1c0] sm:$0xff] %v3506
        %3571 = vst [vmem:[#allocation2 + $0x1c8] sm:$0xff] %v3507
        %3572 = vst [vmem:[#allocation2 + $0x1d0] sm:$0xff] %v3508
        %3573 = vst [vmem:[#allocation2 + $0x1d8] sm:$0xff] %v3509
        %3574 = vst [vmem:[#allocation2 + $0x1e0] sm:$0xff] %v3510
        %3575 = vst [vmem:[#allocation2 + $0x1e8] sm:$0xff] %v3511
        %3576 = vst [vmem:[#allocation2 + $0x1f0] sm:$0xff] %v3512
        %3577 = vst [vmem:[#allocation2 + $0x1f8] sm:$0xff] %v3513
        // Predicated region
        $region65: #{tpu_custom_call.1} parent=35 // pred_check
          %p3578 = pneg %p1609
        $region66: #{tpu_custom_call.1} parent=35 // pred_check_branch
          %3580 = sbr.rel (%p3578) target = $region68
        $region67: #{tpu_custom_call.1} parent=35 // pred_region
          %v3581 = vld [vmem:[#allocation2] sm:$0xff]
          %v3582 = vld [vmem:[#allocation2 + $0x8] sm:$0xff]
          %v3583 = vld [vmem:[#allocation2 + $0x10] sm:$0xff]
          %v3584 = vld [vmem:[#allocation2 + $0x18] sm:$0xff]
          %v3585 = vld [vmem:[#allocation2 + $0x20] sm:$0xff]
          %v3586 = vld [vmem:[#allocation2 + $0x28] sm:$0xff]
          %v3587 = vld [vmem:[#allocation2 + $0x30] sm:$0xff]
          %v3588 = vld [vmem:[#allocation2 + $0x38] sm:$0xff]
          %v3589 = vld [vmem:[#allocation2 + $0x40] sm:$0xff]
          %v3590 = vld [vmem:[#allocation2 + $0x48] sm:$0xff]
          %v3591 = vld [vmem:[#allocation2 + $0x50] sm:$0xff]
          %v3592 = vld [vmem:[#allocation2 + $0x58] sm:$0xff]
          %v3593 = vld [vmem:[#allocation2 + $0x60] sm:$0xff]
          %v3594 = vld [vmem:[#allocation2 + $0x68] sm:$0xff]
          %v3595 = vld [vmem:[#allocation2 + $0x70] sm:$0xff]
          %v3596 = vld [vmem:[#allocation2 + $0x78] sm:$0xff]
          %v3597 = vld [vmem:[#allocation2 + $0x80] sm:$0xff]
          %v3598 = vld [vmem:[#allocation2 + $0x88] sm:$0xff]
          %v3599 = vld [vmem:[#allocation2 + $0x90] sm:$0xff]
          %v3600 = vld [vmem:[#allocation2 + $0x98] sm:$0xff]
          %v3601 = vld [vmem:[#allocation2 + $0xa0] sm:$0xff]
          %v3602 = vld [vmem:[#allocation2 + $0xa8] sm:$0xff]
          %v3603 = vld [vmem:[#allocation2 + $0xb0] sm:$0xff]
          %v3604 = vld [vmem:[#allocation2 + $0xb8] sm:$0xff]
          %v3605 = vld [vmem:[#allocation2 + $0xc0] sm:$0xff]
          %v3606 = vld [vmem:[#allocation2 + $0xc8] sm:$0xff]
          %v3607 = vld [vmem:[#allocation2 + $0xd0] sm:$0xff]
          %v3608 = vld [vmem:[#allocation2 + $0xd8] sm:$0xff]
          %v3609 = vld [vmem:[#allocation2 + $0xe0] sm:$0xff]
          %v3610 = vld [vmem:[#allocation2 + $0xe8] sm:$0xff]
          %v3611 = vld [vmem:[#allocation2 + $0xf0] sm:$0xff]
          %v3612 = vld [vmem:[#allocation2 + $0xf8] sm:$0xff]
          %v3613 = vld [vmem:[#allocation2 + $0x100] sm:$0xff]
          %v3614 = vld [vmem:[#allocation2 + $0x108] sm:$0xff]
          %v3615 = vld [vmem:[#allocation2 + $0x110] sm:$0xff]
          %v3616 = vld [vmem:[#allocation2 + $0x118] sm:$0xff]
          %v3617 = vld [vmem:[#allocation2 + $0x120] sm:$0xff]
          %v3618 = vld [vmem:[#allocation2 + $0x128] sm:$0xff]
          %v3619 = vld [vmem:[#allocation2 + $0x130] sm:$0xff]
          %v3620 = vld [vmem:[#allocation2 + $0x138] sm:$0xff]
          %v3621 = vld [vmem:[#allocation2 + $0x140] sm:$0xff]
          %v3622 = vld [vmem:[#allocation2 + $0x148] sm:$0xff]
          %v3623 = vld [vmem:[#allocation2 + $0x150] sm:$0xff]
          %v3624 = vld [vmem:[#allocation2 + $0x158] sm:$0xff]
          %v3625 = vld [vmem:[#allocation2 + $0x160] sm:$0xff]
          %v3626 = vld [vmem:[#allocation2 + $0x168] sm:$0xff]
          %v3627 = vld [vmem:[#allocation2 + $0x170] sm:$0xff]
          %v3628 = vld [vmem:[#allocation2 + $0x178] sm:$0xff]
          %v3629 = vld [vmem:[#allocation2 + $0x180] sm:$0xff]
          %v3630 = vld [vmem:[#allocation2 + $0x188] sm:$0xff]
          %v3631 = vld [vmem:[#allocation2 + $0x190] sm:$0xff]
          %v3632 = vld [vmem:[#allocation2 + $0x198] sm:$0xff]
          %v3633 = vld [vmem:[#allocation2 + $0x1a0] sm:$0xff]
          %v3634 = vld [vmem:[#allocation2 + $0x1a8] sm:$0xff]
          %v3635 = vld [vmem:[#allocation2 + $0x1b0] sm:$0xff]
          %v3636 = vld [vmem:[#allocation2 + $0x1b8] sm:$0xff]
          %v3637 = vld [vmem:[#allocation2 + $0x1c0] sm:$0xff]
          %v3638 = vld [vmem:[#allocation2 + $0x1c8] sm:$0xff]
          %v3639 = vld [vmem:[#allocation2 + $0x1d0] sm:$0xff]
          %v3640 = vld [vmem:[#allocation2 + $0x1d8] sm:$0xff]
          %v3641 = vld [vmem:[#allocation2 + $0x1e0] sm:$0xff]
          %v3642 = vld [vmem:[#allocation2 + $0x1e8] sm:$0xff]
          %v3643 = vld [vmem:[#allocation2 + $0x1f0] sm:$0xff]
          %v3644 = vld [vmem:[#allocation2 + $0x1f8] sm:$0xff]
          %v3645 = vld [vmem:[%s310] sm:$0x1]
          %v3647 = vperm.slane %v3645, 0
          %v3649 = vadd.f32 %v3581, %v3647
          %v3650 = vadd.f32 %v3582, %v3647
          %v3651 = vadd.f32 %v3583, %v3647
          %v3652 = vadd.f32 %v3584, %v3647
          %v3653 = vadd.f32 %v3585, %v3647
          %v3654 = vadd.f32 %v3586, %v3647
          %v3655 = vadd.f32 %v3587, %v3647
          %v3656 = vadd.f32 %v3588, %v3647
          %v3657 = vadd.f32 %v3589, %v3647
          %v3658 = vadd.f32 %v3590, %v3647
          %v3659 = vadd.f32 %v3591, %v3647
          %v3660 = vadd.f32 %v3592, %v3647
          %v3661 = vadd.f32 %v3593, %v3647
          %v3662 = vadd.f32 %v3594, %v3647
          %v3663 = vadd.f32 %v3595, %v3647
          %v3664 = vadd.f32 %v3596, %v3647
          %v3665 = vadd.f32 %v3597, %v3647
          %v3666 = vadd.f32 %v3598, %v3647
          %v3667 = vadd.f32 %v3599, %v3647
          %v3668 = vadd.f32 %v3600, %v3647
          %v3669 = vadd.f32 %v3601, %v3647
          %v3670 = vadd.f32 %v3602, %v3647
          %v3671 = vadd.f32 %v3603, %v3647
          %v3672 = vadd.f32 %v3604, %v3647
          %v3673 = vadd.f32 %v3605, %v3647
          %v3674 = vadd.f32 %v3606, %v3647
          %v3675 = vadd.f32 %v3607, %v3647
          %v3676 = vadd.f32 %v3608, %v3647
          %v3677 = vadd.f32 %v3609, %v3647
          %v3678 = vadd.f32 %v3610, %v3647
          %v3679 = vadd.f32 %v3611, %v3647
          %v3680 = vadd.f32 %v3612, %v3647
          %v3681 = vadd.f32 %v3613, %v3647
          %v3682 = vadd.f32 %v3614, %v3647
          %v3683 = vadd.f32 %v3615, %v3647
          %v3684 = vadd.f32 %v3616, %v3647
          %v3685 = vadd.f32 %v3617, %v3647
          %v3686 = vadd.f32 %v3618, %v3647
          %v3687 = vadd.f32 %v3619, %v3647
          %v3688 = vadd.f32 %v3620, %v3647
          %v3689 = vadd.f32 %v3621, %v3647
          %v3690 = vadd.f32 %v3622, %v3647
          %v3691 = vadd.f32 %v3623, %v3647
          %v3692 = vadd.f32 %v3624, %v3647
          %v3693 = vadd.f32 %v3625, %v3647
          %v3694 = vadd.f32 %v3626, %v3647
          %v3695 = vadd.f32 %v3627, %v3647
          %v3696 = vadd.f32 %v3628, %v3647
          %v3697 = vadd.f32 %v3629, %v3647
          %v3698 = vadd.f32 %v3630, %v3647
          %v3699 = vadd.f32 %v3631, %v3647
          %v3700 = vadd.f32 %v3632, %v3647
          %v3701 = vadd.f32 %v3633, %v3647
          %v3702 = vadd.f32 %v3634, %v3647
          %v3703 = vadd.f32 %v3635, %v3647
          %v3704 = vadd.f32 %v3636, %v3647
          %v3705 = vadd.f32 %v3637, %v3647
          %v3706 = vadd.f32 %v3638, %v3647
          %v3707 = vadd.f32 %v3639, %v3647
          %v3708 = vadd.f32 %v3640, %v3647
          %v3709 = vadd.f32 %v3641, %v3647
          %v3710 = vadd.f32 %v3642, %v3647
          %v3711 = vadd.f32 %v3643, %v3647
          %v3712 = vadd.f32 %v3644, %v3647
          %3713 = vst [vmem:[%s344] sm:$0xff] %v3649
          %3714 = vst [vmem:[%s344 + $0x8] sm:$0xff] %v3650
          %3715 = vst [vmem:[%s344 + $0x10] sm:$0xff] %v3651
          %3716 = vst [vmem:[%s344 + $0x18] sm:$0xff] %v3652
          %3717 = vst [vmem:[%s344 + $0x20] sm:$0xff] %v3653
          %3718 = vst [vmem:[%s344 + $0x28] sm:$0xff] %v3654
          %3719 = vst [vmem:[%s344 + $0x30] sm:$0xff] %v3655
          %3720 = vst [vmem:[%s344 + $0x38] sm:$0xff] %v3656
          %3721 = vst [vmem:[%s344 + $0x40] sm:$0xff] %v3657
          %3722 = vst [vmem:[%s344 + $0x48] sm:$0xff] %v3658
          %3723 = vst [vmem:[%s344 + $0x50] sm:$0xff] %v3659
          %3724 = vst [vmem:[%s344 + $0x58] sm:$0xff] %v3660
          %3725 = vst [vmem:[%s344 + $0x60] sm:$0xff] %v3661
          %3726 = vst [vmem:[%s344 + $0x68] sm:$0xff] %v3662
          %3727 = vst [vmem:[%s344 + $0x70] sm:$0xff] %v3663
          %3728 = vst [vmem:[%s344 + $0x78] sm:$0xff] %v3664
          %3729 = vst [vmem:[%s344 + $0x80] sm:$0xff] %v3665
          %3730 = vst [vmem:[%s344 + $0x88] sm:$0xff] %v3666
          %3731 = vst [vmem:[%s344 + $0x90] sm:$0xff] %v3667
          %3732 = vst [vmem:[%s344 + $0x98] sm:$0xff] %v3668
          %3733 = vst [vmem:[%s344 + $0xa0] sm:$0xff] %v3669
          %3734 = vst [vmem:[%s344 + $0xa8] sm:$0xff] %v3670
          %3735 = vst [vmem:[%s344 + $0xb0] sm:$0xff] %v3671
          %3736 = vst [vmem:[%s344 + $0xb8] sm:$0xff] %v3672
          %3737 = vst [vmem:[%s344 + $0xc0] sm:$0xff] %v3673
          %3738 = vst [vmem:[%s344 + $0xc8] sm:$0xff] %v3674
          %3739 = vst [vmem:[%s344 + $0xd0] sm:$0xff] %v3675
          %3740 = vst [vmem:[%s344 + $0xd8] sm:$0xff] %v3676
          %3741 = vst [vmem:[%s344 + $0xe0] sm:$0xff] %v3677
          %3742 = vst [vmem:[%s344 + $0xe8] sm:$0xff] %v3678
          %3743 = vst [vmem:[%s344 + $0xf0] sm:$0xff] %v3679
          %3744 = vst [vmem:[%s344 + $0xf8] sm:$0xff] %v3680
          %3745 = vst [vmem:[%s344 + $0x100] sm:$0xff] %v3681
          %3746 = vst [vmem:[%s344 + $0x108] sm:$0xff] %v3682
          %3747 = vst [vmem:[%s344 + $0x110] sm:$0xff] %v3683
          %3748 = vst [vmem:[%s344 + $0x118] sm:$0xff] %v3684
          %3749 = vst [vmem:[%s344 + $0x120] sm:$0xff] %v3685
          %3750 = vst [vmem:[%s344 + $0x128] sm:$0xff] %v3686
          %3751 = vst [vmem:[%s344 + $0x130] sm:$0xff] %v3687
          %3752 = vst [vmem:[%s344 + $0x138] sm:$0xff] %v3688
          %3753 = vst [vmem:[%s344 + $0x140] sm:$0xff] %v3689
          %3754 = vst [vmem:[%s344 + $0x148] sm:$0xff] %v3690
          %3755 = vst [vmem:[%s344 + $0x150] sm:$0xff] %v3691
          %3756 = vst [vmem:[%s344 + $0x158] sm:$0xff] %v3692
          %3757 = vst [vmem:[%s344 + $0x160] sm:$0xff] %v3693
          %3758 = vst [vmem:[%s344 + $0x168] sm:$0xff] %v3694
          %3759 = vst [vmem:[%s344 + $0x170] sm:$0xff] %v3695
          %3760 = vst [vmem:[%s344 + $0x178] sm:$0xff] %v3696
          %3761 = vst [vmem:[%s344 + $0x180] sm:$0xff] %v3697
          %3762 = vst [vmem:[%s344 + $0x188] sm:$0xff] %v3698
          %3763 = vst [vmem:[%s344 + $0x190] sm:$0xff] %v3699
          %3764 = vst [vmem:[%s344 + $0x198] sm:$0xff] %v3700
          %3765 = vst [vmem:[%s344 + $0x1a0] sm:$0xff] %v3701
          %3766 = vst [vmem:[%s344 + $0x1a8] sm:$0xff] %v3702
          %3767 = vst [vmem:[%s344 + $0x1b0] sm:$0xff] %v3703
          %3768 = vst [vmem:[%s344 + $0x1b8] sm:$0xff] %v3704
          %3769 = vst [vmem:[%s344 + $0x1c0] sm:$0xff] %v3705
          %3770 = vst [vmem:[%s344 + $0x1c8] sm:$0xff] %v3706
          %3771 = vst [vmem:[%s344 + $0x1d0] sm:$0xff] %v3707
          %3772 = vst [vmem:[%s344 + $0x1d8] sm:$0xff] %v3708
          %3773 = vst [vmem:[%s344 + $0x1e0] sm:$0xff] %v3709
          %3774 = vst [vmem:[%s344 + $0x1e8] sm:$0xff] %v3710
          %3775 = vst [vmem:[%s344 + $0x1f0] sm:$0xff] %v3711
          %3776 = vst [vmem:[%s344 + $0x1f8] sm:$0xff] %v3712
          %v3777 = vmax.f32 %v3649, 0.0
          %v3778 = vmax.f32 %v3650, 0.0
          %v3779 = vmax.f32 %v3651, 0.0
          %v3780 = vmax.f32 %v3652, 0.0
          %v3781 = vmax.f32 %v3653, 0.0
          %v3782 = vmax.f32 %v3654, 0.0
          %v3783 = vmax.f32 %v3655, 0.0
          %v3784 = vmax.f32 %v3656, 0.0
          %v3785 = vmax.f32 %v3657, 0.0
          %v3786 = vmax.f32 %v3658, 0.0
          %v3787 = vmax.f32 %v3659, 0.0
          %v3788 = vmax.f32 %v3660, 0.0
          %v3789 = vmax.f32 %v3661, 0.0
          %v3790 = vmax.f32 %v3662, 0.0
          %v3791 = vmax.f32 %v3663, 0.0
          %v3792 = vmax.f32 %v3664, 0.0
          %v3793 = vmax.f32 %v3665, 0.0
          %v3794 = vmax.f32 %v3666, 0.0
          %v3795 = vmax.f32 %v3667, 0.0
          %v3796 = vmax.f32 %v3668, 0.0
          %v3797 = vmax.f32 %v3669, 0.0
          %v3798 = vmax.f32 %v3670, 0.0
          %v3799 = vmax.f32 %v3671, 0.0
          %v3800 = vmax.f32 %v3672, 0.0
          %v3801 = vmax.f32 %v3673, 0.0
          %v3802 = vmax.f32 %v3674, 0.0
          %v3803 = vmax.f32 %v3675, 0.0
          %v3804 = vmax.f32 %v3676, 0.0
          %v3805 = vmax.f32 %v3677, 0.0
          %v3806 = vmax.f32 %v3678, 0.0
          %v3807 = vmax.f32 %v3679, 0.0
          %v3808 = vmax.f32 %v3680, 0.0
          %v3809 = vmax.f32 %v3681, 0.0
          %v3810 = vmax.f32 %v3682, 0.0
          %v3811 = vmax.f32 %v3683, 0.0
          %v3812 = vmax.f32 %v3684, 0.0
          %v3813 = vmax.f32 %v3685, 0.0
          %v3814 = vmax.f32 %v3686, 0.0
          %v3815 = vmax.f32 %v3687, 0.0
          %v3816 = vmax.f32 %v3688, 0.0
          %v3817 = vmax.f32 %v3689, 0.0
          %v3818 = vmax.f32 %v3690, 0.0
          %v3819 = vmax.f32 %v3691, 0.0
          %v3820 = vmax.f32 %v3692, 0.0
          %v3821 = vmax.f32 %v3693, 0.0
          %v3822 = vmax.f32 %v3694, 0.0
          %v3823 = vmax.f32 %v3695, 0.0
          %v3824 = vmax.f32 %v3696, 0.0
          %v3825 = vmax.f32 %v3697, 0.0
          %v3826 = vmax.f32 %v3698, 0.0
          %v3827 = vmax.f32 %v3699, 0.0
          %v3828 = vmax.f32 %v3700, 0.0
          %v3829 = vmax.f32 %v3701, 0.0
          %v3830 = vmax.f32 %v3702, 0.0
          %v3831 = vmax.f32 %v3703, 0.0
          %v3832 = vmax.f32 %v3704, 0.0
          %v3833 = vmax.f32 %v3705, 0.0
          %v3834 = vmax.f32 %v3706, 0.0
          %v3835 = vmax.f32 %v3707, 0.0
          %v3836 = vmax.f32 %v3708, 0.0
          %v3837 = vmax.f32 %v3709, 0.0
          %v3838 = vmax.f32 %v3710, 0.0
          %v3839 = vmax.f32 %v3711, 0.0
          %v3840 = vmax.f32 %v3712, 0.0
          %v3841 = vpack.c.bf16 %v3777, %v3777
          %v3842 = vpack.c.bf16 %v3778, %v3778
          %v3843 = vpack.c.bf16 %v3779, %v3779
          %v3844 = vpack.c.bf16 %v3780, %v3780
          %v3845 = vpack.c.bf16 %v3781, %v3781
          %v3846 = vpack.c.bf16 %v3782, %v3782
          %v3847 = vpack.c.bf16 %v3783, %v3783
          %v3848 = vpack.c.bf16 %v3784, %v3784
          %v3849 = vpack.c.bf16 %v3785, %v3785
          %v3850 = vpack.c.bf16 %v3786, %v3786
          %v3851 = vpack.c.bf16 %v3787, %v3787
          %v3852 = vpack.c.bf16 %v3788, %v3788
          %v3853 = vpack.c.bf16 %v3789, %v3789
          %v3854 = vpack.c.bf16 %v3790, %v3790
          %v3855 = vpack.c.bf16 %v3791, %v3791
          %v3856 = vpack.c.bf16 %v3792, %v3792
          %v3857 = vpack.c.bf16 %v3793, %v3793
          %v3858 = vpack.c.bf16 %v3794, %v3794
          %v3859 = vpack.c.bf16 %v3795, %v3795
          %v3860 = vpack.c.bf16 %v3796, %v3796
          %v3861 = vpack.c.bf16 %v3797, %v3797
          %v3862 = vpack.c.bf16 %v3798, %v3798
          %v3863 = vpack.c.bf16 %v3799, %v3799
          %v3864 = vpack.c.bf16 %v3800, %v3800
          %v3865 = vpack.c.bf16 %v3801, %v3801
          %v3866 = vpack.c.bf16 %v3802, %v3802
          %v3867 = vpack.c.bf16 %v3803, %v3803
          %v3868 = vpack.c.bf16 %v3804, %v3804
          %v3869 = vpack.c.bf16 %v3805, %v3805
          %v3870 = vpack.c.bf16 %v3806, %v3806
          %v3871 = vpack.c.bf16 %v3807, %v3807
          %v3872 = vpack.c.bf16 %v3808, %v3808
          %v3873 = vpack.c.bf16 %v3809, %v3809
          %v3874 = vpack.c.bf16 %v3810, %v3810
          %v3875 = vpack.c.bf16 %v3811, %v3811
          %v3876 = vpack.c.bf16 %v3812, %v3812
          %v3877 = vpack.c.bf16 %v3813, %v3813
          %v3878 = vpack.c.bf16 %v3814, %v3814
          %v3879 = vpack.c.bf16 %v3815, %v3815
          %v3880 = vpack.c.bf16 %v3816, %v3816
          %v3881 = vpack.c.bf16 %v3817, %v3817
          %v3882 = vpack.c.bf16 %v3818, %v3818
          %v3883 = vpack.c.bf16 %v3819, %v3819
          %v3884 = vpack.c.bf16 %v3820, %v3820
          %v3885 = vpack.c.bf16 %v3821, %v3821
          %v3886 = vpack.c.bf16 %v3822, %v3822
          %v3887 = vpack.c.bf16 %v3823, %v3823
          %v3888 = vpack.c.bf16 %v3824, %v3824
          %v3889 = vpack.c.bf16 %v3825, %v3825
          %v3890 = vpack.c.bf16 %v3826, %v3826
          %v3891 = vpack.c.bf16 %v3827, %v3827
          %v3892 = vpack.c.bf16 %v3828, %v3828
          %v3893 = vpack.c.bf16 %v3829, %v3829
          %v3894 = vpack.c.bf16 %v3830, %v3830
          %v3895 = vpack.c.bf16 %v3831, %v3831
          %v3896 = vpack.c.bf16 %v3832, %v3832
          %v3897 = vpack.c.bf16 %v3833, %v3833
          %v3898 = vpack.c.bf16 %v3834, %v3834
          %v3899 = vpack.c.bf16 %v3835, %v3835
          %v3900 = vpack.c.bf16 %v3836, %v3836
          %v3901 = vpack.c.bf16 %v3837, %v3837
          %v3902 = vpack.c.bf16 %v3838, %v3838
          %v3903 = vpack.c.bf16 %v3839, %v3839
          %v3904 = vpack.c.bf16 %v3840, %v3840
          %s3905 = smul.addr %s1677, 4
          %s3906 = scalar_lea.vmem [#allocation4], %s3905
          %3907 = vst [vmem:[%s3906] sm:$0xf] %v3841
          %3908 = vst [vmem:[%s3906 + $0x4] sm:$0xf] %v3842
          %3909 = vst [vmem:[%s3906 + $0x8] sm:$0xf] %v3843
          %3910 = vst [vmem:[%s3906 + $0xc] sm:$0xf] %v3844
          %3911 = vst [vmem:[%s3906 + $0x10] sm:$0xf] %v3845
          %3912 = vst [vmem:[%s3906 + $0x14] sm:$0xf] %v3846
          %3913 = vst [vmem:[%s3906 + $0x18] sm:$0xf] %v3847
          %3914 = vst [vmem:[%s3906 + $0x1c] sm:$0xf] %v3848
          %3915 = vst [vmem:[%s3906 + $0x20] sm:$0xf] %v3849
          %3916 = vst [vmem:[%s3906 + $0x24] sm:$0xf] %v3850
          %3917 = vst [vmem:[%s3906 + $0x28] sm:$0xf] %v3851
          %3918 = vst [vmem:[%s3906 + $0x2c] sm:$0xf] %v3852
          %3919 = vst [vmem:[%s3906 + $0x30] sm:$0xf] %v3853
          %3920 = vst [vmem:[%s3906 + $0x34] sm:$0xf] %v3854
          %3921 = vst [vmem:[%s3906 + $0x38] sm:$0xf] %v3855
          %3922 = vst [vmem:[%s3906 + $0x3c] sm:$0xf] %v3856
          %3923 = vst [vmem:[%s3906 + $0x40] sm:$0xf] %v3857
          %3924 = vst [vmem:[%s3906 + $0x44] sm:$0xf] %v3858
          %3925 = vst [vmem:[%s3906 + $0x48] sm:$0xf] %v3859
          %3926 = vst [vmem:[%s3906 + $0x4c] sm:$0xf] %v3860
          %3927 = vst [vmem:[%s3906 + $0x50] sm:$0xf] %v3861
          %3928 = vst [vmem:[%s3906 + $0x54] sm:$0xf] %v3862
          %3929 = vst [vmem:[%s3906 + $0x58] sm:$0xf] %v3863
          %3930 = vst [vmem:[%s3906 + $0x5c] sm:$0xf] %v3864
          %3931 = vst [vmem:[%s3906 + $0x60] sm:$0xf] %v3865
          %3932 = vst [vmem:[%s3906 + $0x64] sm:$0xf] %v3866
          %3933 = vst [vmem:[%s3906 + $0x68] sm:$0xf] %v3867
          %3934 = vst [vmem:[%s3906 + $0x6c] sm:$0xf] %v3868
          %3935 = vst [vmem:[%s3906 + $0x70] sm:$0xf] %v3869
          %3936 = vst [vmem:[%s3906 + $0x74] sm:$0xf] %v3870
          %3937 = vst [vmem:[%s3906 + $0x78] sm:$0xf] %v3871
          %3938 = vst [vmem:[%s3906 + $0x7c] sm:$0xf] %v3872
          %3939 = vst [vmem:[%s3906 + $0x80] sm:$0xf] %v3873
          %3940 = vst [vmem:[%s3906 + $0x84] sm:$0xf] %v3874
          %3941 = vst [vmem:[%s3906 + $0x88] sm:$0xf] %v3875
          %3942 = vst [vmem:[%s3906 + $0x8c] sm:$0xf] %v3876
          %3943 = vst [vmem:[%s3906 + $0x90] sm:$0xf] %v3877
          %3944 = vst [vmem:[%s3906 + $0x94] sm:$0xf] %v3878
          %3945 = vst [vmem:[%s3906 + $0x98] sm:$0xf] %v3879
          %3946 = vst [vmem:[%s3906 + $0x9c] sm:$0xf] %v3880
          %3947 = vst [vmem:[%s3906 + $0xa0] sm:$0xf] %v3881
          %3948 = vst [vmem:[%s3906 + $0xa4] sm:$0xf] %v3882
          %3949 = vst [vmem:[%s3906 + $0xa8] sm:$0xf] %v3883
          %3950 = vst [vmem:[%s3906 + $0xac] sm:$0xf] %v3884
          %3951 = vst [vmem:[%s3906 + $0xb0] sm:$0xf] %v3885
          %3952 = vst [vmem:[%s3906 + $0xb4] sm:$0xf] %v3886
          %3953 = vst [vmem:[%s3906 + $0xb8] sm:$0xf] %v3887
          %3954 = vst [vmem:[%s3906 + $0xbc] sm:$0xf] %v3888
          %3955 = vst [vmem:[%s3906 + $0xc0] sm:$0xf] %v3889
          %3956 = vst [vmem:[%s3906 + $0xc4] sm:$0xf] %v3890
          %3957 = vst [vmem:[%s3906 + $0xc8] sm:$0xf] %v3891
          %3958 = vst [vmem:[%s3906 + $0xcc] sm:$0xf] %v3892
          %3959 = vst [vmem:[%s3906 + $0xd0] sm:$0xf] %v3893
          %3960 = vst [vmem:[%s3906 + $0xd4] sm:$0xf] %v3894
          %3961 = vst [vmem:[%s3906 + $0xd8] sm:$0xf] %v3895
          %3962 = vst [vmem:[%s3906 + $0xdc] sm:$0xf] %v3896
          %3963 = vst [vmem:[%s3906 + $0xe0] sm:$0xf] %v3897
          %3964 = vst [vmem:[%s3906 + $0xe4] sm:$0xf] %v3898
          %3965 = vst [vmem:[%s3906 + $0xe8] sm:$0xf] %v3899
          %3966 = vst [vmem:[%s3906 + $0xec] sm:$0xf] %v3900
          %3967 = vst [vmem:[%s3906 + $0xf0] sm:$0xf] %v3901
          %3968 = vst [vmem:[%s3906 + $0xf4] sm:$0xf] %v3902
          %3969 = vst [vmem:[%s3906 + $0xf8] sm:$0xf] %v3903
          %3970 = vst [vmem:[%s3906 + $0xfc] sm:$0xf] %v3904
        $region68: #{tpu_custom_call.1} parent=35 // pred_fallthru
          _
        %s3971 = sand.u32 %s163, 1
        %s3972 = scalar_lea.sflag [#allocation7], %s3971
        %s3973 = sand.u32 %s163, 1
        %s3974 = smul.addr %s3973, 512
        %s3975 = scalar_lea.vmem [#allocation13], %s3974
        // Predicated region
        $region69: #{tpu_custom_call.1} parent=35 // pred_check
          %p3976 = pneg %p173
        $region70: #{tpu_custom_call.1} parent=35 // pred_check_branch
          %3978 = sbr.rel (%p3976) target = $region72
        $region71: #{tpu_custom_call.1} parent=35 // pred_region
          %s3979 = smul.u32 64, %s31
          %3981 = vsyncadd %s3972, 0
          %s3982 = smul.addr %s3979, 3
          %s3983 = sadd.s32 %s30, %s3982
          %s3984 = smul.addr %s3983, 8
          %s3985 = scalar_lea.hbm %s4, %s3984
          %s3986 = sshll.u32 %s3975, 4
          %s3987 = int_to_ptr.vmem [resolvable:$true] %s3986
          %s3988 = sshll.u32 %s3985, 4
          %s3989 = int_to_ptr.hbm [resolvable:$true] %s3988
          %3994 = dma.vmem_to_hbm [thread:$0]  %s3987, 8192, %s3989, %s3972, 128, 384, 8
        $region72: #{tpu_custom_call.1} parent=35 // pred_fallthru
          _
      $region36: #{tpu_custom_call.1} parent=5 // pred_fallthru
        _
      %p3995 = scmp.le.s32.totalorder 2, %s20
      // Predicated region
      $region73: #{tpu_custom_call.1} parent=5 // pred_check
        %p3996 = pneg %p3995
      $region74: #{tpu_custom_call.1} parent=5 // pred_check_branch
        %3998 = sbr.rel (%p3996) target = $region76
      $region75: #{tpu_custom_call.1} parent=5 // pred_region
        %s3999 = ssub.s32 %s20, 2
        // Predicated region
        $region77: #{tpu_custom_call.1} parent=75 // pred_check
          %p4000 = pneg %p179
        $region78: #{tpu_custom_call.1} parent=75 // pred_check_branch
          %4002 = sbr.rel (%p4000) target = $region80
        $region79: #{tpu_custom_call.1} parent=75 // pred_region
          %s4003 = sand.u32 %s164, 1
          %s4004 = scalar_lea.sflag [#allocation7], %s4003
          %s4005 = sand.u32 %s164, 1
          %s4006 = smul.addr %s4005, 512
          %s4007 = scalar_lea.vmem [#allocation13], %s4006
          %4009 = dma.done %s4004, 8192
        $region80: #{tpu_custom_call.1} parent=75 // pred_fallthru
          _
      $region76: #{tpu_custom_call.1} parent=5 // pred_fallthru
        _
    $region6: #{tpu_custom_call.1} parent=1 // loop_footer
      %s24 = sadd.s32 1, %s20
    $region7: #{tpu_custom_call.1} parent=1 // loop_footer_branch
      %19 = sbr.rel target = $region3
    $region8: #{tpu_custom_call.1} parent=1 // loop_exit
      _
    %4010 = vsyncpa [#allocation6], 1
    %s4011 = scalar_lea.sflag [#allocation6], 1
    %4012 = vsyncpa %s4011, 1
    %4013 = vsyncpa [#allocation9], 1
    %s4014 = scalar_lea.sflag [#allocation9], 1
    %4015 = vsyncpa %s4014, 1
    %4016 = vsyncpa [#allocation12], 1
    %s4017 = scalar_lea.sflag [#allocation12], 1
    %4018 = vsyncpa %s4017, 1
    %4019 = vsyncpa [#allocation7], 1
    %s4020 = scalar_lea.sflag [#allocation7], 1
    %4021 = vsyncpa %s4020, 1

</llo_original>
